<compile_context>
chip_gen: v7x
topology: tpu7x:2x2x1
jax: 0.10.0
libtpu: 0.0.40
codegen_flags: <defaults>
</compile_context>

<pallas_src>
import jax
import jax.numpy as jnp
from jax.experimental import pallas as pl
from jax.experimental.pallas import tpu as pltpu


def _round_up(x, m):
    return (x + m - 1) // m * m


def _fc3_kernel(x_ref, w1_ref, s1_ref, t1_ref, w2_ref, s2_ref, t2_ref,
                w3_ref, t3_ref, o_ref):
    """One M-tile of the fully fused 3-layer MLP.

    Layer 1/2:  relu((x @ w) * scale + shift)   (bias folded into shift)
    Layer 3:    x @ w + bias                    (lane-padded output)
    All matmuls accumulate in f32; inter-layer activations are bf16 (fp16
    stand-in), BN affine applied in f32 as in the reference.
    """
    h = jnp.dot(x_ref[...], w1_ref[...], preferred_element_type=jnp.float32)
    h = jnp.maximum(h * s1_ref[...] + t1_ref[...], 0.0).astype(jnp.bfloat16)

    h = jnp.dot(h, w2_ref[...], preferred_element_type=jnp.float32)
    h = jnp.maximum(h * s2_ref[...] + t2_ref[...], 0.0).astype(jnp.bfloat16)

    y = jnp.dot(h, w3_ref[...], preferred_element_type=jnp.float32) + t3_ref[...]
    o_ref[...] = y.astype(o_ref.dtype)


def fc3_forward(x, params, eps=1e-5, out_dtype=jnp.bfloat16):
    """Pallas forward pass of FC_3 (dropout_1 = dropout_2 = 0)."""
    B = x.shape[0]
    # torch.flatten(x, 1): metadata-only reshape of the row-major NCHW stream.
    h = jnp.reshape(x, (B, -1)).astype(jnp.bfloat16)
    K1 = h.shape[1]                       # 3 * image_size**2
    alpha = params["w1_t"].shape[1]       # hidden width
    n_out = params["w3_t"].shape[1]       # true output classes

    # --- Fold BatchNorm + Linear bias into per-column scale / shift (f32). ---
    s1 = params["bn1_gamma"] / jnp.sqrt(params["bn1_var"] + eps)
    t1 = params["bn1_beta"] + (params["b1"] - params["bn1_mean"]) * s1
    s2 = params["bn2_gamma"] / jnp.sqrt(params["bn2_var"] + eps)
    t2 = params["bn2_beta"] + (params["b2"] - params["bn2_mean"]) * s2

    # --- Lane-dense padding of the final (alpha, n_out) layer to 128 cols. ---
    n_pad = _round_up(max(n_out, 128), 128)
    w3 = jnp.zeros((alpha, n_pad), jnp.bfloat16).at[:, :n_out].set(
        params["w3_t"].astype(jnp.bfloat16))
    t3 = jnp.zeros((n_pad,), jnp.float32).at[:n_out].set(
        params["b3"].astype(jnp.float32))

    # --- Pad batch to a sublane-friendly M tile; tile M for large batches. ---
    tm = min(256, _round_up(B, 16))
    m_pad = _round_up(B, tm)
    if m_pad != B:
        h = jnp.pad(h, ((0, m_pad - B), (0, 0)))

    s1_2d = jnp.reshape(s1.astype(jnp.float32), (1, alpha))
    t1_2d = jnp.reshape(t1.astype(jnp.float32), (1, alpha))
    s2_2d = jnp.reshape(s2.astype(jnp.float32), (1, alpha))
    t2_2d = jnp.reshape(t2.astype(jnp.float32), (1, alpha))
    t3_2d = jnp.reshape(t3, (1, n_pad))

    w1 = params["w1_t"].astype(jnp.bfloat16)
    w2 = params["w2_t"].astype(jnp.bfloat16)

    grid = (m_pad // tm,)

    flops = 2 * m_pad * (K1 * alpha + alpha * alpha + alpha * n_pad)
    bytes_accessed = (h.size * h.dtype.itemsize
                      + w1.size * 2 + w2.size * 2 + w3.size * 2
                      + (4 * alpha + n_pad) * 4
                      + m_pad * n_pad * jnp.dtype(out_dtype).itemsize)

    out = pl.pallas_call(
        _fc3_kernel,
        out_shape=jax.ShapeDtypeStruct((m_pad, n_pad), out_dtype),
        grid_spec=pltpu.PrefetchScalarGridSpec(
            num_scalar_prefetch=0,
            grid=grid,
            in_specs=[
                pl.BlockSpec((tm, K1), lambda i: (i, 0)),        # activations
                pl.BlockSpec((K1, alpha), lambda i: (0, 0)),     # w1 (resident)
                pl.BlockSpec((1, alpha), lambda i: (0, 0)),      # bn1 scale
                pl.BlockSpec((1, alpha), lambda i: (0, 0)),      # bn1 shift+b1
                pl.BlockSpec((alpha, alpha), lambda i: (0, 0)),  # w2 (resident)
                pl.BlockSpec((1, alpha), lambda i: (0, 0)),      # bn2 scale
                pl.BlockSpec((1, alpha), lambda i: (0, 0)),      # bn2 shift+b2
                pl.BlockSpec((alpha, n_pad), lambda i: (0, 0)),  # w3 (padded)
                pl.BlockSpec((1, n_pad), lambda i: (0, 0)),      # b3 (padded)
            ],
            out_specs=pl.BlockSpec((tm, n_pad), lambda i: (i, 0)),
        ),
        compiler_params=pltpu.CompilerParams(
            dimension_semantics=("parallel",),
            vmem_limit_bytes=32 * 1024 * 1024,
        ),
        cost_estimate=pl.CostEstimate(
            flops=flops, transcendentals=0, bytes_accessed=bytes_accessed),
    )(h, w1, s1_2d, t1_2d, w2, s2_2d, t2_2d, w3, t3_2d)

    # Strip the batch and lane padding.
    return out[:B, :n_out]


def fc3_reference(x, params, eps=1e-5):
    """Pure-JAX f32 reference with the same folded-BN semantics."""
    B = x.shape[0]
    h = jnp.reshape(x.astype(jnp.float32), (B, -1))

    def bn(y, g, b, m, v):
        return (y - m) / jnp.sqrt(v + eps) * g + b

    h = h @ params["w1_t"].astype(jnp.float32) + params["b1"]
    h = jnp.maximum(bn(h, params["bn1_gamma"], params["bn1_beta"],
                       params["bn1_mean"], params["bn1_var"]), 0.0)
    h = h @ params["w2_t"].astype(jnp.float32) + params["b2"]
    h = jnp.maximum(bn(h, params["bn2_gamma"], params["bn2_beta"],
                       params["bn2_mean"], params["bn2_var"]), 0.0)
    return h @ params["w3_t"].astype(jnp.float32) + params["b3"]


if __name__ == "__main__":
    key = jax.random.PRNGKey(0)
    base_size, image_size, out_size = 4, 16, 10
    B = 2
    alpha = base_size * image_size ** 2          # 1024
    in_features = 3 * image_size * image_size    # 768

    ks = jax.random.split(key, 15)

    def w_init(k, shape, scale=0.05):
        return jax.random.normal(k, shape, jnp.float32) * scale

    x = jax.random.normal(ks[0], (B, 3, image_size, image_size),
                          jnp.float32).astype(jnp.bfloat16)

    params = dict(
        # weights pre-transposed to (in, out); "half" emulated with bf16
        w1_t=w_init(ks[1], (in_features, alpha)).astype(jnp.bfloat16),
        b1=w_init(ks[2], (alpha,)),
        bn1_gamma=1.0 + 0.1 * jax.random.normal(ks[3], (alpha,), jnp.float32),
        bn1_beta=0.1 * jax.random.normal(ks[4], (alpha,), jnp.float32),
        bn1_mean=0.1 * jax.random.normal(ks[5], (alpha,), jnp.float32),
        bn1_var=jax.random.uniform(ks[6], (alpha,), jnp.float32, 0.5, 1.5),
        w2_t=w_init(ks[7], (alpha, alpha)).astype(jnp.bfloat16),
        b2=w_init(ks[8], (alpha,)),
        bn2_gamma=1.0 + 0.1 * jax.random.normal(ks[9], (alpha,), jnp.float32),
        bn2_beta=0.1 * jax.random.normal(ks[10], (alpha,), jnp.float32),
        bn2_mean=0.1 * jax.random.normal(ks[11], (alpha,), jnp.float32),
        bn2_var=jax.random.uniform(ks[12], (alpha,), jnp.float32, 0.5, 1.5),
        w3_t=w_init(ks[13], (alpha, out_size)).astype(jnp.bfloat16),
        b3=w_init(ks[14], (out_size,)),
    )

    y = fc3_forward(x, params)
    jax.block_until_ready(y)

    y_ref = fc3_reference(x, params)

    assert y.shape == (B, out_size), y.shape
    assert y.dtype == jnp.bfloat16, y.dtype
    assert bool(jnp.allclose(y.astype(jnp.float32), y_ref,
                             rtol=5e-2, atol=1e-1)), (y, y_ref)

    print("KERNEL_OK")
</pallas_src>

<mosaic_0001>
module attributes {stable_mosaic.version = 11 : i64} {
  func.func @_fc3_kernel(%arg0: i32, %arg1: memref<16x768xbf16, #tpu.memory_space<vmem>>, %arg2: memref<768x1024xbf16, #tpu.memory_space<vmem>>, %arg3: memref<1x1024xf32, #tpu.memory_space<vmem>>, %arg4: memref<1x1024xf32, #tpu.memory_space<vmem>>, %arg5: memref<1024x1024xbf16, #tpu.memory_space<vmem>>, %arg6: memref<1x1024xf32, #tpu.memory_space<vmem>>, %arg7: memref<1x1024xf32, #tpu.memory_space<vmem>>, %arg8: memref<1024x128xbf16, #tpu.memory_space<vmem>>, %arg9: memref<1x128xf32, #tpu.memory_space<vmem>>, %arg10: memref<16x128xbf16, #tpu.memory_space<vmem>>) attributes {dimension_semantics = [#tpu.dimension_semantics<parallel>], iteration_bounds = array<i64: 1>, scalar_prefetch = 0 : i64, scratch_operands = 0 : i64, tpu.core_type = #tpu.core_type<tc>, window_params = [{transform_indices = @transform_0, window_bounds = array<i64: 16, 768>}, {pipeline_mode = #tpu.pipeline_mode<synchronous>, transform_indices = @transform_1, window_bounds = array<i64: 768, 1024>}, {pipeline_mode = #tpu.pipeline_mode<synchronous>, transform_indices = @transform_2, window_bounds = array<i64: 1, 1024>}, {pipeline_mode = #tpu.pipeline_mode<synchronous>, transform_indices = @transform_3, window_bounds = array<i64: 1, 1024>}, {pipeline_mode = #tpu.pipeline_mode<synchronous>, transform_indices = @transform_4, window_bounds = array<i64: 1024, 1024>}, {pipeline_mode = #tpu.pipeline_mode<synchronous>, transform_indices = @transform_5, window_bounds = array<i64: 1, 1024>}, {pipeline_mode = #tpu.pipeline_mode<synchronous>, transform_indices = @transform_6, window_bounds = array<i64: 1, 1024>}, {pipeline_mode = #tpu.pipeline_mode<synchronous>, transform_indices = @transform_7, window_bounds = array<i64: 1024, 128>}, {pipeline_mode = #tpu.pipeline_mode<synchronous>, transform_indices = @transform_8, window_bounds = array<i64: 1, 128>}, {transform_indices = @transform_9, window_bounds = array<i64: 16, 128>}]} {
    %c0 = arith.constant 0 : index
    %c0_0 = arith.constant 0 : index
    %0 = vector.load %arg1[%c0, %c0_0] : memref<16x768xbf16, #tpu.memory_space<vmem>>, vector<16x768xbf16>
    %c0_1 = arith.constant 0 : index
    %c0_2 = arith.constant 0 : index
    %1 = vector.load %arg2[%c0_1, %c0_2] : memref<768x1024xbf16, #tpu.memory_space<vmem>>, vector<768x1024xbf16>
    %cst = arith.constant dense<0.000000e+00> : vector<16x1024xf32>
    %2 = tpu.matmul %0, %1, %cst {dimension_numbers = #tpu.dot_dimension_numbers<[1], [0], [0], [1], [0, 0, 1, 1], [], []>} : vector<16x768xbf16>, vector<768x1024xbf16>, vector<16x1024xf32> -> vector<16x1024xf32>
    %c0_3 = arith.constant 0 : index
    %c0_4 = arith.constant 0 : index
    %3 = vector.load %arg3[%c0_3, %c0_4] : memref<1x1024xf32, #tpu.memory_space<vmem>>, vector<1x1024xf32>
    %4 = vector.broadcast %3 : vector<1x1024xf32> to vector<16x1024xf32>
    %5 = arith.mulf %2, %4 : vector<16x1024xf32>
    %c0_5 = arith.constant 0 : index
    %c0_6 = arith.constant 0 : index
    %6 = vector.load %arg4[%c0_5, %c0_6] : memref<1x1024xf32, #tpu.memory_space<vmem>>, vector<1x1024xf32>
    %7 = vector.broadcast %6 : vector<1x1024xf32> to vector<16x1024xf32>
    %8 = arith.addf %5, %7 : vector<16x1024xf32>
    %cst_7 = arith.constant 0.000000e+00 : f32
    %9 = vector.broadcast %cst_7 : f32 to vector<16x1024xf32>
    %10 = arith.maximumf %8, %9 : vector<16x1024xf32>
    %11 = arith.truncf %10 : vector<16x1024xf32> to vector<16x1024xbf16>
    %c0_8 = arith.constant 0 : index
    %c0_9 = arith.constant 0 : index
    %12 = vector.load %arg5[%c0_8, %c0_9] : memref<1024x1024xbf16, #tpu.memory_space<vmem>>, vector<1024x1024xbf16>
    %cst_10 = arith.constant dense<0.000000e+00> : vector<16x1024xf32>
    %13 = tpu.matmul %11, %12, %cst_10 {dimension_numbers = #tpu.dot_dimension_numbers<[1], [0], [0], [1], [0, 0, 1, 1], [], []>} : vector<16x1024xbf16>, vector<1024x1024xbf16>, vector<16x1024xf32> -> vector<16x1024xf32>
    %c0_11 = arith.constant 0 : index
    %c0_12 = arith.constant 0 : index
    %14 = vector.load %arg6[%c0_11, %c0_12] : memref<1x1024xf32, #tpu.memory_space<vmem>>, vector<1x1024xf32>
    %15 = vector.broadcast %14 : vector<1x1024xf32> to vector<16x1024xf32>
    %16 = arith.mulf %13, %15 : vector<16x1024xf32>
    %c0_13 = arith.constant 0 : index
    %c0_14 = arith.constant 0 : index
    %17 = vector.load %arg7[%c0_13, %c0_14] : memref<1x1024xf32, #tpu.memory_space<vmem>>, vector<1x1024xf32>
    %18 = vector.broadcast %17 : vector<1x1024xf32> to vector<16x1024xf32>
    %19 = arith.addf %16, %18 : vector<16x1024xf32>
    %cst_15 = arith.constant 0.000000e+00 : f32
    %20 = vector.broadcast %cst_15 : f32 to vector<16x1024xf32>
    %21 = arith.maximumf %19, %20 : vector<16x1024xf32>
    %22 = arith.truncf %21 : vector<16x1024xf32> to vector<16x1024xbf16>
    %c0_16 = arith.constant 0 : index
    %c0_17 = arith.constant 0 : index
    %23 = vector.load %arg8[%c0_16, %c0_17] : memref<1024x128xbf16, #tpu.memory_space<vmem>>, vector<1024x128xbf16>
    %cst_18 = arith.constant dense<0.000000e+00> : vector<16x128xf32>
    %24 = tpu.matmul %22, %23, %cst_18 {dimension_numbers = #tpu.dot_dimension_numbers<[1], [0], [0], [1], [0, 0, 1, 1], [], []>} : vector<16x1024xbf16>, vector<1024x128xbf16>, vector<16x128xf32> -> vector<16x128xf32>
    %c0_19 = arith.constant 0 : index
    %c0_20 = arith.constant 0 : index
    %25 = vector.load %arg9[%c0_19, %c0_20] : memref<1x128xf32, #tpu.memory_space<vmem>>, vector<1x128xf32>
    %26 = vector.broadcast %25 : vector<1x128xf32> to vector<16x128xf32>
    %27 = arith.addf %24, %26 : vector<16x128xf32>
    %28 = arith.truncf %27 : vector<16x128xf32> to vector<16x128xbf16>
    %c0_21 = arith.constant 0 : index
    %c0_22 = arith.constant 0 : index
    %29 = vector.load %arg10[%c0_21, %c0_22] : memref<16x128xbf16, #tpu.memory_space<vmem>>, vector<16x128xbf16>
    tpu.vector_store %arg10[%c0_21, %c0_22], %28 {strides = array<i32>} : memref<16x128xbf16, #tpu.memory_space<vmem>>, vector<16x128xbf16>,
    return
  }
  func.func @transform_0(%arg0: i32) -> (i32, i32) {
    %c0_i32 = arith.constant 0 : i32
    %c0_i32_0 = arith.constant 0 : i32
    return %arg0, %c0_i32 : i32, i32
  }
  func.func @transform_1(%arg0: i32) -> (i32, i32) {
    %c0_i32 = arith.constant 0 : i32
    %c0_i32_0 = arith.constant 0 : i32
    %c0_i32_1 = arith.constant 0 : i32
    return %c0_i32, %c0_i32_0 : i32, i32
  }
  func.func @transform_2(%arg0: i32) -> (i32, i32) {
    %c0_i32 = arith.constant 0 : i32
    %c0_i32_0 = arith.constant 0 : i32
    %c0_i32_1 = arith.constant 0 : i32
    return %c0_i32, %c0_i32_0 : i32, i32
  }
  func.func @transform_3(%arg0: i32) -> (i32, i32) {
    %c0_i32 = arith.constant 0 : i32
    %c0_i32_0 = arith.constant 0 : i32
    %c0_i32_1 = arith.constant 0 : i32
    return %c0_i32, %c0_i32_0 : i32, i32
  }
  func.func @transform_4(%arg0: i32) -> (i32, i32) {
    %c0_i32 = arith.constant 0 : i32
    %c0_i32_0 = arith.constant 0 : i32
    %c0_i32_1 = arith.constant 0 : i32
    return %c0_i32, %c0_i32_0 : i32, i32
  }
  func.func @transform_5(%arg0: i32) -> (i32, i32) {
    %c0_i32 = arith.constant 0 : i32
    %c0_i32_0 = arith.constant 0 : i32
    %c0_i32_1 = arith.constant 0 : i32
    return %c0_i32, %c0_i32_0 : i32, i32
  }
  func.func @transform_6(%arg0: i32) -> (i32, i32) {
    %c0_i32 = arith.constant 0 : i32
    %c0_i32_0 = arith.constant 0 : i32
    %c0_i32_1 = arith.constant 0 : i32
    return %c0_i32, %c0_i32_0 : i32, i32
  }
  func.func @transform_7(%arg0: i32) -> (i32, i32) {
    %c0_i32 = arith.constant 0 : i32
    %c0_i32_0 = arith.constant 0 : i32
    %c0_i32_1 = arith.constant 0 : i32
    return %c0_i32, %c0_i32_0 : i32, i32
  }
  func.func @transform_8(%arg0: i32) -> (i32, i32) {
    %c0_i32 = arith.constant 0 : i32
    %c0_i32_0 = arith.constant 0 : i32
    %c0_i32_1 = arith.constant 0 : i32
    return %c0_i32, %c0_i32_0 : i32, i32
  }
  func.func @transform_9(%arg0: i32) -> (i32, i32) {
    %c0_i32 = arith.constant 0 : i32
    %c0_i32_0 = arith.constant 0 : i32
    return %arg0, %c0_i32 : i32, i32
  }
}

</mosaic_0001>

<llo_original>
// kernel: tpu_custom_call.1
$region0: #{tpu_custom_call.1}
  #allocation0 [shape = 'u32[]', space=smem, size = 0x4, offset = 0x4, fixed_abs, tag = 'smem constant byte address 0x4 - core index']
  #allocation1 [shape = 'u32[144,128]{1,0:T(1,128)}', space=vmem, size = 0x12000, scoped, tag = 'internal scratch']
  %s0 = inlined_call_operand.hbm [shape: bf16[16,768], index: 0, kind: input, shape index: {}]
  %s1 = inlined_call_operand.hbm [shape: bf16[768,1024], index: 1, kind: input, shape index: {}]
  %s2 = inlined_call_operand.hbm [shape: f32[1,1024], index: 2, kind: input, shape index: {}]
  %s3 = inlined_call_operand.hbm [shape: f32[1,1024], index: 3, kind: input, shape index: {}]
  %s4 = inlined_call_operand.hbm [shape: bf16[1024,1024], index: 4, kind: input, shape index: {}]
  %s5 = inlined_call_operand.hbm [shape: f32[1,1024], index: 5, kind: input, shape index: {}]
  %s6 = inlined_call_operand.hbm [shape: f32[1,1024], index: 6, kind: input, shape index: {}]
  %s7 = inlined_call_operand.hbm [shape: bf16[1024,128], index: 7, kind: input, shape index: {}]
  %s8 = inlined_call_operand.hbm [shape: f32[1,128], index: 8, kind: input, shape index: {}]
  %s9 = inlined_call_operand.hbm [shape: bf16[16,128], index: 9, kind: output, shape index: {}]
  %s10 = sld [smem:[#allocation0]]
  $region82: #{tpu_custom_call.1} parent=0
    _
  %s12 = ssub.s32 1, %s10
  %s13 = scalar_select 0, %s12, %s10
  $region1: #{tpu_custom_call.1} parent=0
    #allocation2 [shape = 'u8[24576]{0}', space=vmem, size = 0x6000, scoped, tag = 'input window, operand 0, single buffered']
    #allocation3 [shape = 's32[1]{0}', space=sflag, size = 0x4, scoped, tag = 'scoped memory for tpu_custom_call.1']
    #allocation4 [shape = 's32[1]{0}', space=sflag, size = 0x4, scoped, tag = 'scoped memory for tpu_custom_call.1']
    #allocation5 [shape = 'u8[1572864]{0}', space=vmem, size = 0x180000, scoped, tag = 'input window, operand 1, single buffered']
    #allocation6 [shape = 's32[1]{0}', space=sflag, size = 0x4, scoped, tag = 'scoped memory for tpu_custom_call.1']
    #allocation7 [shape = 'u8[4096]{0}', space=vmem, size = 0x1000, scoped, tag = 'input window, operand 2, single buffered']
    #allocation8 [shape = 'u8[4096]{0}', space=vmem, size = 0x1000, scoped, tag = 'input window, operand 3, single buffered']
    #allocation9 [shape = 's32[1]{0}', space=sflag, size = 0x4, scoped, tag = 'scoped memory for tpu_custom_call.1']
    #allocation10 [shape = 'u8[2097152]{0}', space=vmem, size = 0x200000, scoped, tag = 'input window, operand 4, single buffered']
    #allocation11 [shape = 'u8[4096]{0}', space=vmem, size = 0x1000, scoped, tag = 'input window, operand 5, single buffered']
    #allocation12 [shape = 's32[1]{0}', space=sflag, size = 0x4, scoped, tag = 'scoped memory for tpu_custom_call.1']
    #allocation13 [shape = 'u8[4096]{0}', space=vmem, size = 0x1000, scoped, tag = 'input window, operand 6, single buffered']
    #allocation14 [shape = 'u8[262144]{0}', space=vmem, size = 0x40000, scoped, tag = 'input window, operand 7, single buffered']
    #allocation15 [shape = 's32[1]{0}', space=sflag, size = 0x4, scoped, tag = 'scoped memory for tpu_custom_call.1']
    #allocation16 [shape = 'u8[512]{0}', space=vmem, size = 0x400, scoped, tag = 'input window, operand 8, single buffered']
    #allocation17 [shape = 'u8[4096]{0}', space=vmem, size = 0x1000, scoped, tag = 'output window, operand 0, single buffered']
    %14 = vsyncpa [#allocation3], 0
    %15 = vsyncpa [#allocation6], 0
    %16 = vsyncpa [#allocation9], 0
    %17 = vsyncpa [#allocation12], 0
    %18 = vsyncpa [#allocation15], 0
    %19 = vsyncpa [#allocation4], 0
    // Predicated region
    $region2: #{tpu_custom_call.1} parent=1 // pred_check
      _
    $region3: #{tpu_custom_call.1} parent=1 // pred_check_branch
      %21 = sbr.rel (0) target = $region5
    $region4: #{tpu_custom_call.1} parent=1 // pred_region
      %s23 = ssub.s32 768, 768
      %24 = vsyncadd [#allocation3], %s23
      %s25 = sshll.u32 [#allocation2], 4
      %s26 = int_to_ptr.vmem [resolvable:$true] %s25
      %31 = dma.hbm_to_vmem [thread:$0]  %s0, 768, %s26, [#allocation3], 384, 384, 24
    $region5: #{tpu_custom_call.1} parent=1 // pred_fallthru
      _
    // Predicated region
    $region6: #{tpu_custom_call.1} parent=1 // pred_check
      _
    $region7: #{tpu_custom_call.1} parent=1 // pred_check_branch
      %33 = sbr.rel (0) target = $region9
    $region8: #{tpu_custom_call.1} parent=1 // pred_region
      %s35 = ssub.s32 49152, 49152
      %36 = vsyncadd [#allocation6], %s35
      %s37 = sshll.u32 [#allocation5], 4
      %s38 = int_to_ptr.vmem [resolvable:$true] %s37
      %43 = dma.hbm_to_vmem [thread:$0]  %s1, 49152, %s38, [#allocation6], 512, 512, 32
    $region9: #{tpu_custom_call.1} parent=1 // pred_fallthru
      _
    // Predicated region
    $region10: #{tpu_custom_call.1} parent=1 // pred_check
      _
    $region11: #{tpu_custom_call.1} parent=1 // pred_check_branch
      %45 = sbr.rel (0) target = $region13
    $region12: #{tpu_custom_call.1} parent=1 // pred_region
      %s47 = ssub.s32 128, 128
      %48 = vsyncadd [#allocation6], %s47
      %s50 = sshll.u32 [#allocation7], 4
      %s51 = int_to_ptr.vmem [resolvable:$true] %s50
      %53 = dma.hbm_to_vmem [thread:$0]  %s2, 128, %s51, [#allocation6]
    $region13: #{tpu_custom_call.1} parent=1 // pred_fallthru
      _
    // Predicated region
    $region14: #{tpu_custom_call.1} parent=1 // pred_check
      _
    $region15: #{tpu_custom_call.1} parent=1 // pred_check_branch
      %55 = sbr.rel (0) target = $region17
    $region16: #{tpu_custom_call.1} parent=1 // pred_region
      %s57 = ssub.s32 128, 128
      %58 = vsyncadd [#allocation9], %s57
      %s60 = sshll.u32 [#allocation8], 4
      %s61 = int_to_ptr.vmem [resolvable:$true] %s60
      %63 = dma.hbm_to_vmem [thread:$0]  %s3, 128, %s61, [#allocation9]
    $region17: #{tpu_custom_call.1} parent=1 // pred_fallthru
      _
    // Predicated region
    $region18: #{tpu_custom_call.1} parent=1 // pred_check
      _
    $region19: #{tpu_custom_call.1} parent=1 // pred_check_branch
      %65 = sbr.rel (0) target = $region21
    $region20: #{tpu_custom_call.1} parent=1 // pred_region
      %s67 = ssub.s32 65536, 65536
      %68 = vsyncadd [#allocation9], %s67
      %s69 = sshll.u32 [#allocation10], 4
      %s70 = int_to_ptr.vmem [resolvable:$true] %s69
      %75 = dma.hbm_to_vmem [thread:$0]  %s4, 65536, %s70, [#allocation9], 512, 512, 32
    $region21: #{tpu_custom_call.1} parent=1 // pred_fallthru
      _
    // Predicated region
    $region22: #{tpu_custom_call.1} parent=1 // pred_check
      _
    $region23: #{tpu_custom_call.1} parent=1 // pred_check_branch
      %77 = sbr.rel (0) target = $region25
    $region24: #{tpu_custom_call.1} parent=1 // pred_region
      %s79 = ssub.s32 128, 128
      %80 = vsyncadd [#allocation12], %s79
      %s82 = sshll.u32 [#allocation11], 4
      %s83 = int_to_ptr.vmem [resolvable:$true] %s82
      %85 = dma.hbm_to_vmem [thread:$0]  %s5, 128, %s83, [#allocation12]
    $region25: #{tpu_custom_call.1} parent=1 // pred_fallthru
      _
    // Predicated region
    $region26: #{tpu_custom_call.1} parent=1 // pred_check
      _
    $region27: #{tpu_custom_call.1} parent=1 // pred_check_branch
      %87 = sbr.rel (0) target = $region29
    $region28: #{tpu_custom_call.1} parent=1 // pred_region
      %s89 = ssub.s32 128, 128
      %90 = vsyncadd [#allocation12], %s89
      %s92 = sshll.u32 [#allocation13], 4
      %s93 = int_to_ptr.vmem [resolvable:$true] %s92
      %95 = dma.hbm_to_vmem [thread:$0]  %s6, 128, %s93, [#allocation12]
    $region29: #{tpu_custom_call.1} parent=1 // pred_fallthru
      _
    // Predicated region
    $region30: #{tpu_custom_call.1} parent=1 // pred_check
      _
    $region31: #{tpu_custom_call.1} parent=1 // pred_check_branch
      %97 = sbr.rel (0) target = $region33
    $region32: #{tpu_custom_call.1} parent=1 // pred_region
      %s99 = ssub.s32 8192, 8192
      %100 = vsyncadd [#allocation15], %s99
      %s101 = sshll.u32 [#allocation14], 4
      %s102 = int_to_ptr.vmem [resolvable:$true] %s101
      %107 = dma.hbm_to_vmem [thread:$0]  %s7, 8192, %s102, [#allocation15], 64, 64, 4
    $region33: #{tpu_custom_call.1} parent=1 // pred_fallthru
      _
    // Predicated region
    $region34: #{tpu_custom_call.1} parent=1 // pred_check
      _
    $region35: #{tpu_custom_call.1} parent=1 // pred_check_branch
      %109 = sbr.rel (0) target = $region37
    $region36: #{tpu_custom_call.1} parent=1 // pred_region
      %s111 = ssub.s32 16, 16
      %112 = vsyncadd [#allocation15], %s111
      %s114 = sshll.u32 [#allocation16], 4
      %s115 = int_to_ptr.vmem [resolvable:$true] %s114
      %117 = dma.hbm_to_vmem [thread:$0]  %s8, 16, %s115, [#allocation15]
    $region37: #{tpu_custom_call.1} parent=1 // pred_fallthru
      _
    // Predicated region
    $region38: #{tpu_custom_call.1} parent=1 // pred_check
      _
    $region39: #{tpu_custom_call.1} parent=1 // pred_check_branch
      %119 = sbr.rel (0) target = $region41
    $region40: #{tpu_custom_call.1} parent=1 // pred_region
      %120 = dma.done [#allocation3], 768
    $region41: #{tpu_custom_call.1} parent=1 // pred_fallthru
      _
    // Predicated region
    $region42: #{tpu_custom_call.1} parent=1 // pred_check
      _
    $region43: #{tpu_custom_call.1} parent=1 // pred_check_branch
      %122 = sbr.rel (0) target = $region45
    $region44: #{tpu_custom_call.1} parent=1 // pred_region
      %123 = dma.done [#allocation6], 49152
    $region45: #{tpu_custom_call.1} parent=1 // pred_fallthru
      _
    // Predicated region
    $region46: #{tpu_custom_call.1} parent=1 // pred_check
      _
    $region47: #{tpu_custom_call.1} parent=1 // pred_check_branch
      %125 = sbr.rel (0) target = $region49
    $region48: #{tpu_custom_call.1} parent=1 // pred_region
      %126 = dma.done [#allocation6], 128
    $region49: #{tpu_custom_call.1} parent=1 // pred_fallthru
      _
    // Predicated region
    $region50: #{tpu_custom_call.1} parent=1 // pred_check
      _
    $region51: #{tpu_custom_call.1} parent=1 // pred_check_branch
      %128 = sbr.rel (0) target = $region53
    $region52: #{tpu_custom_call.1} parent=1 // pred_region
      %129 = dma.done [#allocation9], 128
    $region53: #{tpu_custom_call.1} parent=1 // pred_fallthru
      _
    // Predicated region
    $region54: #{tpu_custom_call.1} parent=1 // pred_check
      _
    $region55: #{tpu_custom_call.1} parent=1 // pred_check_branch
      %131 = sbr.rel (0) target = $region57
    $region56: #{tpu_custom_call.1} parent=1 // pred_region
      %132 = dma.done [#allocation9], 65536
    $region57: #{tpu_custom_call.1} parent=1 // pred_fallthru
      _
    // Predicated region
    $region58: #{tpu_custom_call.1} parent=1 // pred_check
      _
    $region59: #{tpu_custom_call.1} parent=1 // pred_check_branch
      %134 = sbr.rel (0) target = $region61
    $region60: #{tpu_custom_call.1} parent=1 // pred_region
      %135 = dma.done [#allocation12], 128
    $region61: #{tpu_custom_call.1} parent=1 // pred_fallthru
      _
    // Predicated region
    $region62: #{tpu_custom_call.1} parent=1 // pred_check
      _
    $region63: #{tpu_custom_call.1} parent=1 // pred_check_branch
      %137 = sbr.rel (0) target = $region65
    $region64: #{tpu_custom_call.1} parent=1 // pred_region
      %138 = dma.done [#allocation12], 128
    $region65: #{tpu_custom_call.1} parent=1 // pred_fallthru
      _
    // Predicated region
    $region66: #{tpu_custom_call.1} parent=1 // pred_check
      _
    $region67: #{tpu_custom_call.1} parent=1 // pred_check_branch
      %140 = sbr.rel (0) target = $region69
    $region68: #{tpu_custom_call.1} parent=1 // pred_region
      %141 = dma.done [#allocation15], 8192
    $region69: #{tpu_custom_call.1} parent=1 // pred_fallthru
      _
    // Predicated region
    $region70: #{tpu_custom_call.1} parent=1 // pred_check
      _
    $region71: #{tpu_custom_call.1} parent=1 // pred_check_branch
      %143 = sbr.rel (0) target = $region73
    $region72: #{tpu_custom_call.1} parent=1 // pred_region
      %144 = dma.done [#allocation15], 16
    $region73: #{tpu_custom_call.1} parent=1 // pred_fallthru
      _
    %v146 = vld [vmem:[#allocation2] sm:$0xff]
    %v147 = vld [vmem:[#allocation2 + $0x8] sm:$0xff]
    %v148 = vld [vmem:[#allocation2 + $0x10] sm:$0xff]
    %v149 = vld [vmem:[#allocation2 + $0x18] sm:$0xff]
    %v150 = vld [vmem:[#allocation2 + $0x20] sm:$0xff]
    %v151 = vld [vmem:[#allocation2 + $0x28] sm:$0xff]
    %v152 = vld [vmem:[#allocation5] sm:$0xff]
    %v153 = vld [vmem:[#allocation5 + $0x8] sm:$0xff]
    %v154 = vld [vmem:[#allocation5 + $0x10] sm:$0xff]
    %v155 = vld [vmem:[#allocation5 + $0x18] sm:$0xff]
    %v156 = vld [vmem:[#allocation5 + $0x20] sm:$0xff]
    %v157 = vld [vmem:[#allocation5 + $0x28] sm:$0xff]
    %v158 = vld [vmem:[#allocation5 + $0x30] sm:$0xff]
    %v159 = vld [vmem:[#allocation5 + $0x38] sm:$0xff]
    %v160 = vld [vmem:[#allocation5 + $0x40] sm:$0xff]
    %v161 = vld [vmem:[#allocation5 + $0x48] sm:$0xff]
    %v162 = vld [vmem:[#allocation5 + $0x50] sm:$0xff]
    %v163 = vld [vmem:[#allocation5 + $0x58] sm:$0xff]
    %v164 = vld [vmem:[#allocation5 + $0x60] sm:$0xff]
    %v165 = vld [vmem:[#allocation5 + $0x68] sm:$0xff]
    %v166 = vld [vmem:[#allocation5 + $0x70] sm:$0xff]
    %v167 = vld [vmem:[#allocation5 + $0x78] sm:$0xff]
    %v168 = vld [vmem:[#allocation5 + $0x80] sm:$0xff]
    %v169 = vld [vmem:[#allocation5 + $0x88] sm:$0xff]
    %v170 = vld [vmem:[#allocation5 + $0x90] sm:$0xff]
    %v171 = vld [vmem:[#allocation5 + $0x98] sm:$0xff]
    %v172 = vld [vmem:[#allocation5 + $0xa0] sm:$0xff]
    %v173 = vld [vmem:[#allocation5 + $0xa8] sm:$0xff]
    %v174 = vld [vmem:[#allocation5 + $0xb0] sm:$0xff]
    %v175 = vld [vmem:[#allocation5 + $0xb8] sm:$0xff]
    %v176 = vld [vmem:[#allocation5 + $0xc0] sm:$0xff]
    %v177 = vld [vmem:[#allocation5 + $0xc8] sm:$0xff]
    %v178 = vld [vmem:[#allocation5 + $0xd0] sm:$0xff]
    %v179 = vld [vmem:[#allocation5 + $0xd8] sm:$0xff]
    %v180 = vld [vmem:[#allocation5 + $0xe0] sm:$0xff]
    %v181 = vld [vmem:[#allocation5 + $0xe8] sm:$0xff]
    %v182 = vld [vmem:[#allocation5 + $0xf0] sm:$0xff]
    %v183 = vld [vmem:[#allocation5 + $0xf8] sm:$0xff]
    %v184 = vld [vmem:[#allocation5 + $0x100] sm:$0xff]
    %v185 = vld [vmem:[#allocation5 + $0x108] sm:$0xff]
    %v186 = vld [vmem:[#allocation5 + $0x110] sm:$0xff]
    %v187 = vld [vmem:[#allocation5 + $0x118] sm:$0xff]
    %v188 = vld [vmem:[#allocation5 + $0x120] sm:$0xff]
    %v189 = vld [vmem:[#allocation5 + $0x128] sm:$0xff]
    %v190 = vld [vmem:[#allocation5 + $0x130] sm:$0xff]
    %v191 = vld [vmem:[#allocation5 + $0x138] sm:$0xff]
    %v192 = vld [vmem:[#allocation5 + $0x140] sm:$0xff]
    %v193 = vld [vmem:[#allocation5 + $0x148] sm:$0xff]
    %v194 = vld [vmem:[#allocation5 + $0x150] sm:$0xff]
    %v195 = vld [vmem:[#allocation5 + $0x158] sm:$0xff]
    %v196 = vld [vmem:[#allocation5 + $0x160] sm:$0xff]
    %v197 = vld [vmem:[#allocation5 + $0x168] sm:$0xff]
    %v198 = vld [vmem:[#allocation5 + $0x170] sm:$0xff]
    %v199 = vld [vmem:[#allocation5 + $0x178] sm:$0xff]
    %v200 = vld [vmem:[#allocation5 + $0x180] sm:$0xff]
    %v201 = vld [vmem:[#allocation5 + $0x188] sm:$0xff]
    %v202 = vld [vmem:[#allocation5 + $0x190] sm:$0xff]
    %v203 = vld [vmem:[#allocation5 + $0x198] sm:$0xff]
    %v204 = vld [vmem:[#allocation5 + $0x1a0] sm:$0xff]
    %v205 = vld [vmem:[#allocation5 + $0x1a8] sm:$0xff]
    %v206 = vld [vmem:[#allocation5 + $0x1b0] sm:$0xff]
    %v207 = vld [vmem:[#allocation5 + $0x1b8] sm:$0xff]
    %v208 = vld [vmem:[#allocation5 + $0x1c0] sm:$0xff]
    %v209 = vld [vmem:[#allocation5 + $0x1c8] sm:$0xff]
    %v210 = vld [vmem:[#allocation5 + $0x1d0] sm:$0xff]
    %v211 = vld [vmem:[#allocation5 + $0x1d8] sm:$0xff]
    %v212 = vld [vmem:[#allocation5 + $0x1e0] sm:$0xff]
    %v213 = vld [vmem:[#allocation5 + $0x1e8] sm:$0xff]
    %v214 = vld [vmem:[#allocation5 + $0x1f0] sm:$0xff]
    %v215 = vld [vmem:[#allocation5 + $0x1f8] sm:$0xff]
    %v216 = vld [vmem:[#allocation5 + $0x200] sm:$0xff]
    %v217 = vld [vmem:[#allocation5 + $0x208] sm:$0xff]
    %v218 = vld [vmem:[#allocation5 + $0x210] sm:$0xff]
    %v219 = vld [vmem:[#allocation5 + $0x218] sm:$0xff]
    %v220 = vld [vmem:[#allocation5 + $0x220] sm:$0xff]
    %v221 = vld [vmem:[#allocation5 + $0x228] sm:$0xff]
    %v222 = vld [vmem:[#allocation5 + $0x230] sm:$0xff]
    %v223 = vld [vmem:[#allocation5 + $0x238] sm:$0xff]
    %v224 = vld [vmem:[#allocation5 + $0x240] sm:$0xff]
    %v225 = vld [vmem:[#allocation5 + $0x248] sm:$0xff]
    %v226 = vld [vmem:[#allocation5 + $0x250] sm:$0xff]
    %v227 = vld [vmem:[#allocation5 + $0x258] sm:$0xff]
    %v228 = vld [vmem:[#allocation5 + $0x260] sm:$0xff]
    %v229 = vld [vmem:[#allocation5 + $0x268] sm:$0xff]
    %v230 = vld [vmem:[#allocation5 + $0x270] sm:$0xff]
    %v231 = vld [vmem:[#allocation5 + $0x278] sm:$0xff]
    %v232 = vld [vmem:[#allocation5 + $0x280] sm:$0xff]
    %v233 = vld [vmem:[#allocation5 + $0x288] sm:$0xff]
    %v234 = vld [vmem:[#allocation5 + $0x290] sm:$0xff]
    %v235 = vld [vmem:[#allocation5 + $0x298] sm:$0xff]
    %v236 = vld [vmem:[#allocation5 + $0x2a0] sm:$0xff]
    %v237 = vld [vmem:[#allocation5 + $0x2a8] sm:$0xff]
    %v238 = vld [vmem:[#allocation5 + $0x2b0] sm:$0xff]
    %v239 = vld [vmem:[#allocation5 + $0x2b8] sm:$0xff]
    %v240 = vld [vmem:[#allocation5 + $0x2c0] sm:$0xff]
    %v241 = vld [vmem:[#allocation5 + $0x2c8] sm:$0xff]
    %v242 = vld [vmem:[#allocation5 + $0x2d0] sm:$0xff]
    %v243 = vld [vmem:[#allocation5 + $0x2d8] sm:$0xff]
    %v244 = vld [vmem:[#allocation5 + $0x2e0] sm:$0xff]
    %v245 = vld [vmem:[#allocation5 + $0x2e8] sm:$0xff]
    %v246 = vld [vmem:[#allocation5 + $0x2f0] sm:$0xff]
    %v247 = vld [vmem:[#allocation5 + $0x2f8] sm:$0xff]
    %v248 = vld [vmem:[#allocation5 + $0x300] sm:$0xff]
    %v249 = vld [vmem:[#allocation5 + $0x308] sm:$0xff]
    %v250 = vld [vmem:[#allocation5 + $0x310] sm:$0xff]
    %v251 = vld [vmem:[#allocation5 + $0x318] sm:$0xff]
    %v252 = vld [vmem:[#allocation5 + $0x320] sm:$0xff]
    %v253 = vld [vmem:[#allocation5 + $0x328] sm:$0xff]
    %v254 = vld [vmem:[#allocation5 + $0x330] sm:$0xff]
    %v255 = vld [vmem:[#allocation5 + $0x338] sm:$0xff]
    %v256 = vld [vmem:[#allocation5 + $0x340] sm:$0xff]
    %v257 = vld [vmem:[#allocation5 + $0x348] sm:$0xff]
    %v258 = vld [vmem:[#allocation5 + $0x350] sm:$0xff]
    %v259 = vld [vmem:[#allocation5 + $0x358] sm:$0xff]
    %v260 = vld [vmem:[#allocation5 + $0x360] sm:$0xff]
    %v261 = vld [vmem:[#allocation5 + $0x368] sm:$0xff]
    %v262 = vld [vmem:[#allocation5 + $0x370] sm:$0xff]
    %v263 = vld [vmem:[#allocation5 + $0x378] sm:$0xff]
    %v264 = vld [vmem:[#allocation5 + $0x380] sm:$0xff]
    %v265 = vld [vmem:[#allocation5 + $0x388] sm:$0xff]
    %v266 = vld [vmem:[#allocation5 + $0x390] sm:$0xff]
    %v267 = vld [vmem:[#allocation5 + $0x398] sm:$0xff]
    %v268 = vld [vmem:[#allocation5 + $0x3a0] sm:$0xff]
    %v269 = vld [vmem:[#allocation5 + $0x3a8] sm:$0xff]
    %v270 = vld [vmem:[#allocation5 + $0x3b0] sm:$0xff]
    %v271 = vld [vmem:[#allocation5 + $0x3b8] sm:$0xff]
    %v272 = vld [vmem:[#allocation5 + $0x3c0] sm:$0xff]
    %v273 = vld [vmem:[#allocation5 + $0x3c8] sm:$0xff]
    %v274 = vld [vmem:[#allocation5 + $0x3d0] sm:$0xff]
    %v275 = vld [vmem:[#allocation5 + $0x3d8] sm:$0xff]
    %v276 = vld [vmem:[#allocation5 + $0x3e0] sm:$0xff]
    %v277 = vld [vmem:[#allocation5 + $0x3e8] sm:$0xff]
    %v278 = vld [vmem:[#allocation5 + $0x3f0] sm:$0xff]
    %v279 = vld [vmem:[#allocation5 + $0x3f8] sm:$0xff]
    %v280 = vld [vmem:[#allocation5 + $0x400] sm:$0xff]
    %v281 = vld [vmem:[#allocation5 + $0x408] sm:$0xff]
    %v282 = vld [vmem:[#allocation5 + $0x410] sm:$0xff]
    %v283 = vld [vmem:[#allocation5 + $0x418] sm:$0xff]
    %v284 = vld [vmem:[#allocation5 + $0x420] sm:$0xff]
    %v285 = vld [vmem:[#allocation5 + $0x428] sm:$0xff]
    %v286 = vld [vmem:[#allocation5 + $0x430] sm:$0xff]
    %v287 = vld [vmem:[#allocation5 + $0x438] sm:$0xff]
    %v288 = vld [vmem:[#allocation5 + $0x440] sm:$0xff]
    %v289 = vld [vmem:[#allocation5 + $0x448] sm:$0xff]
    %v290 = vld [vmem:[#allocation5 + $0x450] sm:$0xff]
    %v291 = vld [vmem:[#allocation5 + $0x458] sm:$0xff]
    %v292 = vld [vmem:[#allocation5 + $0x460] sm:$0xff]
    %v293 = vld [vmem:[#allocation5 + $0x468] sm:$0xff]
    %v294 = vld [vmem:[#allocation5 + $0x470] sm:$0xff]
    %v295 = vld [vmem:[#allocation5 + $0x478] sm:$0xff]
    %v296 = vld [vmem:[#allocation5 + $0x480] sm:$0xff]
    %v297 = vld [vmem:[#allocation5 + $0x488] sm:$0xff]
    %v298 = vld [vmem:[#allocation5 + $0x490] sm:$0xff]
    %v299 = vld [vmem:[#allocation5 + $0x498] sm:$0xff]
    %v300 = vld [vmem:[#allocation5 + $0x4a0] sm:$0xff]
    %v301 = vld [vmem:[#allocation5 + $0x4a8] sm:$0xff]
    %v302 = vld [vmem:[#allocation5 + $0x4b0] sm:$0xff]
    %v303 = vld [vmem:[#allocation5 + $0x4b8] sm:$0xff]
    %v304 = vld [vmem:[#allocation5 + $0x4c0] sm:$0xff]
    %v305 = vld [vmem:[#allocation5 + $0x4c8] sm:$0xff]
    %v306 = vld [vmem:[#allocation5 + $0x4d0] sm:$0xff]
    %v307 = vld [vmem:[#allocation5 + $0x4d8] sm:$0xff]
    %v308 = vld [vmem:[#allocation5 + $0x4e0] sm:$0xff]
    %v309 = vld [vmem:[#allocation5 + $0x4e8] sm:$0xff]
    %v310 = vld [vmem:[#allocation5 + $0x4f0] sm:$0xff]
    %v311 = vld [vmem:[#allocation5 + $0x4f8] sm:$0xff]
    %v312 = vld [vmem:[#allocation5 + $0x500] sm:$0xff]
    %v313 = vld [vmem:[#allocation5 + $0x508] sm:$0xff]
    %v314 = vld [vmem:[#allocation5 + $0x510] sm:$0xff]
    %v315 = vld [vmem:[#allocation5 + $0x518] sm:$0xff]
    %v316 = vld [vmem:[#allocation5 + $0x520] sm:$0xff]
    %v317 = vld [vmem:[#allocation5 + $0x528] sm:$0xff]
    %v318 = vld [vmem:[#allocation5 + $0x530] sm:$0xff]
    %v319 = vld [vmem:[#allocation5 + $0x538] sm:$0xff]
    %v320 = vld [vmem:[#allocation5 + $0x540] sm:$0xff]
    %v321 = vld [vmem:[#allocation5 + $0x548] sm:$0xff]
    %v322 = vld [vmem:[#allocation5 + $0x550] sm:$0xff]
    %v323 = vld [vmem:[#allocation5 + $0x558] sm:$0xff]
    %v324 = vld [vmem:[#allocation5 + $0x560] sm:$0xff]
    %v325 = vld [vmem:[#allocation5 + $0x568] sm:$0xff]
    %v326 = vld [vmem:[#allocation5 + $0x570] sm:$0xff]
    %v327 = vld [vmem:[#allocation5 + $0x578] sm:$0xff]
    %v328 = vld [vmem:[#allocation5 + $0x580] sm:$0xff]
    %v329 = vld [vmem:[#allocation5 + $0x588] sm:$0xff]
    %v330 = vld [vmem:[#allocation5 + $0x590] sm:$0xff]
    %v331 = vld [vmem:[#allocation5 + $0x598] sm:$0xff]
    %v332 = vld [vmem:[#allocation5 + $0x5a0] sm:$0xff]
    %v333 = vld [vmem:[#allocation5 + $0x5a8] sm:$0xff]
    %v334 = vld [vmem:[#allocation5 + $0x5b0] sm:$0xff]
    %v335 = vld [vmem:[#allocation5 + $0x5b8] sm:$0xff]
    %v336 = vld [vmem:[#allocation5 + $0x5c0] sm:$0xff]
    %v337 = vld [vmem:[#allocation5 + $0x5c8] sm:$0xff]
    %v338 = vld [vmem:[#allocation5 + $0x5d0] sm:$0xff]
    %v339 = vld [vmem:[#allocation5 + $0x5d8] sm:$0xff]
    %v340 = vld [vmem:[#allocation5 + $0x5e0] sm:$0xff]
    %v341 = vld [vmem:[#allocation5 + $0x5e8] sm:$0xff]
    %v342 = vld [vmem:[#allocation5 + $0x5f0] sm:$0xff]
    %v343 = vld [vmem:[#allocation5 + $0x5f8] sm:$0xff]
    %v344 = vld [vmem:[#allocation5 + $0x600] sm:$0xff]
    %v345 = vld [vmem:[#allocation5 + $0x608] sm:$0xff]
    %v346 = vld [vmem:[#allocation5 + $0x610] sm:$0xff]
    %v347 = vld [vmem:[#allocation5 + $0x618] sm:$0xff]
    %v348 = vld [vmem:[#allocation5 + $0x620] sm:$0xff]
    %v349 = vld [vmem:[#allocation5 + $0x628] sm:$0xff]
    %v350 = vld [vmem:[#allocation5 + $0x630] sm:$0xff]
    %v351 = vld [vmem:[#allocation5 + $0x638] sm:$0xff]
    %v352 = vld [vmem:[#allocation5 + $0x640] sm:$0xff]
    %v353 = vld [vmem:[#allocation5 + $0x648] sm:$0xff]
    %v354 = vld [vmem:[#allocation5 + $0x650] sm:$0xff]
    %v355 = vld [vmem:[#allocation5 + $0x658] sm:$0xff]
    %v356 = vld [vmem:[#allocation5 + $0x660] sm:$0xff]
    %v357 = vld [vmem:[#allocation5 + $0x668] sm:$0xff]
    %v358 = vld [vmem:[#allocation5 + $0x670] sm:$0xff]
    %v359 = vld [vmem:[#allocation5 + $0x678] sm:$0xff]
    %v360 = vld [vmem:[#allocation5 + $0x680] sm:$0xff]
    %v361 = vld [vmem:[#allocation5 + $0x688] sm:$0xff]
    %v362 = vld [vmem:[#allocation5 + $0x690] sm:$0xff]
    %v363 = vld [vmem:[#allocation5 + $0x698] sm:$0xff]
    %v364 = vld [vmem:[#allocation5 + $0x6a0] sm:$0xff]
    %v365 = vld [vmem:[#allocation5 + $0x6a8] sm:$0xff]
    %v366 = vld [vmem:[#allocation5 + $0x6b0] sm:$0xff]
    %v367 = vld [vmem:[#allocation5 + $0x6b8] sm:$0xff]
    %v368 = vld [vmem:[#allocation5 + $0x6c0] sm:$0xff]
    %v369 = vld [vmem:[#allocation5 + $0x6c8] sm:$0xff]
    %v370 = vld [vmem:[#allocation5 + $0x6d0] sm:$0xff]
    %v371 = vld [vmem:[#allocation5 + $0x6d8] sm:$0xff]
    %v372 = vld [vmem:[#allocation5 + $0x6e0] sm:$0xff]
    %v373 = vld [vmem:[#allocation5 + $0x6e8] sm:$0xff]
    %v374 = vld [vmem:[#allocation5 + $0x6f0] sm:$0xff]
    %v375 = vld [vmem:[#allocation5 + $0x6f8] sm:$0xff]
    %v376 = vld [vmem:[#allocation5 + $0x700] sm:$0xff]
    %v377 = vld [vmem:[#allocation5 + $0x708] sm:$0xff]
    %v378 = vld [vmem:[#allocation5 + $0x710] sm:$0xff]
    %v379 = vld [vmem:[#allocation5 + $0x718] sm:$0xff]
    %v380 = vld [vmem:[#allocation5 + $0x720] sm:$0xff]
    %v381 = vld [vmem:[#allocation5 + $0x728] sm:$0xff]
    %v382 = vld [vmem:[#allocation5 + $0x730] sm:$0xff]
    %v383 = vld [vmem:[#allocation5 + $0x738] sm:$0xff]
    %v384 = vld [vmem:[#allocation5 + $0x740] sm:$0xff]
    %v385 = vld [vmem:[#allocation5 + $0x748] sm:$0xff]
    %v386 = vld [vmem:[#allocation5 + $0x750] sm:$0xff]
    %v387 = vld [vmem:[#allocation5 + $0x758] sm:$0xff]
    %v388 = vld [vmem:[#allocation5 + $0x760] sm:$0xff]
    %v389 = vld [vmem:[#allocation5 + $0x768] sm:$0xff]
    %v390 = vld [vmem:[#allocation5 + $0x770] sm:$0xff]
    %v391 = vld [vmem:[#allocation5 + $0x778] sm:$0xff]
    %v392 = vld [vmem:[#allocation5 + $0x780] sm:$0xff]
    %v393 = vld [vmem:[#allocation5 + $0x788] sm:$0xff]
    %v394 = vld [vmem:[#allocation5 + $0x790] sm:$0xff]
    %v395 = vld [vmem:[#allocation5 + $0x798] sm:$0xff]
    %v396 = vld [vmem:[#allocation5 + $0x7a0] sm:$0xff]
    %v397 = vld [vmem:[#allocation5 + $0x7a8] sm:$0xff]
    %v398 = vld [vmem:[#allocation5 + $0x7b0] sm:$0xff]
    %v399 = vld [vmem:[#allocation5 + $0x7b8] sm:$0xff]
    %v400 = vld [vmem:[#allocation5 + $0x7c0] sm:$0xff]
    %v401 = vld [vmem:[#allocation5 + $0x7c8] sm:$0xff]
    %v402 = vld [vmem:[#allocation5 + $0x7d0] sm:$0xff]
    %v403 = vld [vmem:[#allocation5 + $0x7d8] sm:$0xff]
    %v404 = vld [vmem:[#allocation5 + $0x7e0] sm:$0xff]
    %v405 = vld [vmem:[#allocation5 + $0x7e8] sm:$0xff]
    %v406 = vld [vmem:[#allocation5 + $0x7f0] sm:$0xff]
    %v407 = vld [vmem:[#allocation5 + $0x7f8] sm:$0xff]
    %v408 = vld [vmem:[#allocation5 + $0x800] sm:$0xff]
    %v409 = vld [vmem:[#allocation5 + $0x808] sm:$0xff]
    %v410 = vld [vmem:[#allocation5 + $0x810] sm:$0xff]
    %v411 = vld [vmem:[#allocation5 + $0x818] sm:$0xff]
    %v412 = vld [vmem:[#allocation5 + $0x820] sm:$0xff]
    %v413 = vld [vmem:[#allocation5 + $0x828] sm:$0xff]
    %v414 = vld [vmem:[#allocation5 + $0x830] sm:$0xff]
    %v415 = vld [vmem:[#allocation5 + $0x838] sm:$0xff]
    %v416 = vld [vmem:[#allocation5 + $0x840] sm:$0xff]
    %v417 = vld [vmem:[#allocation5 + $0x848] sm:$0xff]
    %v418 = vld [vmem:[#allocation5 + $0x850] sm:$0xff]
    %v419 = vld [vmem:[#allocation5 + $0x858] sm:$0xff]
    %v420 = vld [vmem:[#allocation5 + $0x860] sm:$0xff]
    %v421 = vld [vmem:[#allocation5 + $0x868] sm:$0xff]
    %v422 = vld [vmem:[#allocation5 + $0x870] sm:$0xff]
    %v423 = vld [vmem:[#allocation5 + $0x878] sm:$0xff]
    %v424 = vld [vmem:[#allocation5 + $0x880] sm:$0xff]
    %v425 = vld [vmem:[#allocation5 + $0x888] sm:$0xff]
    %v426 = vld [vmem:[#allocation5 + $0x890] sm:$0xff]
    %v427 = vld [vmem:[#allocation5 + $0x898] sm:$0xff]
    %v428 = vld [vmem:[#allocation5 + $0x8a0] sm:$0xff]
    %v429 = vld [vmem:[#allocation5 + $0x8a8] sm:$0xff]
    %v430 = vld [vmem:[#allocation5 + $0x8b0] sm:$0xff]
    %v431 = vld [vmem:[#allocation5 + $0x8b8] sm:$0xff]
    %v432 = vld [vmem:[#allocation5 + $0x8c0] sm:$0xff]
    %v433 = vld [vmem:[#allocation5 + $0x8c8] sm:$0xff]
    %v434 = vld [vmem:[#allocation5 + $0x8d0] sm:$0xff]
    %v435 = vld [vmem:[#allocation5 + $0x8d8] sm:$0xff]
    %v436 = vld [vmem:[#allocation5 + $0x8e0] sm:$0xff]
    %v437 = vld [vmem:[#allocation5 + $0x8e8] sm:$0xff]
    %v438 = vld [vmem:[#allocation5 + $0x8f0] sm:$0xff]
    %v439 = vld [vmem:[#allocation5 + $0x8f8] sm:$0xff]
    %v440 = vld [vmem:[#allocation5 + $0x900] sm:$0xff]
    %v441 = vld [vmem:[#allocation5 + $0x908] sm:$0xff]
    %v442 = vld [vmem:[#allocation5 + $0x910] sm:$0xff]
    %v443 = vld [vmem:[#allocation5 + $0x918] sm:$0xff]
    %v444 = vld [vmem:[#allocation5 + $0x920] sm:$0xff]
    %v445 = vld [vmem:[#allocation5 + $0x928] sm:$0xff]
    %v446 = vld [vmem:[#allocation5 + $0x930] sm:$0xff]
    %v447 = vld [vmem:[#allocation5 + $0x938] sm:$0xff]
    %v448 = vld [vmem:[#allocation5 + $0x940] sm:$0xff]
    %v449 = vld [vmem:[#allocation5 + $0x948] sm:$0xff]
    %v450 = vld [vmem:[#allocation5 + $0x950] sm:$0xff]
    %v451 = vld [vmem:[#allocation5 + $0x958] sm:$0xff]
    %v452 = vld [vmem:[#allocation5 + $0x960] sm:$0xff]
    %v453 = vld [vmem:[#allocation5 + $0x968] sm:$0xff]
    %v454 = vld [vmem:[#allocation5 + $0x970] sm:$0xff]
    %v455 = vld [vmem:[#allocation5 + $0x978] sm:$0xff]
    %v456 = vld [vmem:[#allocation5 + $0x980] sm:$0xff]
    %v457 = vld [vmem:[#allocation5 + $0x988] sm:$0xff]
    %v458 = vld [vmem:[#allocation5 + $0x990] sm:$0xff]
    %v459 = vld [vmem:[#allocation5 + $0x998] sm:$0xff]
    %v460 = vld [vmem:[#allocation5 + $0x9a0] sm:$0xff]
    %v461 = vld [vmem:[#allocation5 + $0x9a8] sm:$0xff]
    %v462 = vld [vmem:[#allocation5 + $0x9b0] sm:$0xff]
    %v463 = vld [vmem:[#allocation5 + $0x9b8] sm:$0xff]
    %v464 = vld [vmem:[#allocation5 + $0x9c0] sm:$0xff]
    %v465 = vld [vmem:[#allocation5 + $0x9c8] sm:$0xff]
    %v466 = vld [vmem:[#allocation5 + $0x9d0] sm:$0xff]
    %v467 = vld [vmem:[#allocation5 + $0x9d8] sm:$0xff]
    %v468 = vld [vmem:[#allocation5 + $0x9e0] sm:$0xff]
    %v469 = vld [vmem:[#allocation5 + $0x9e8] sm:$0xff]
    %v470 = vld [vmem:[#allocation5 + $0x9f0] sm:$0xff]
    %v471 = vld [vmem:[#allocation5 + $0x9f8] sm:$0xff]
    %v472 = vld [vmem:[#allocation5 + $0xa00] sm:$0xff]
    %v473 = vld [vmem:[#allocation5 + $0xa08] sm:$0xff]
    %v474 = vld [vmem:[#allocation5 + $0xa10] sm:$0xff]
    %v475 = vld [vmem:[#allocation5 + $0xa18] sm:$0xff]
    %v476 = vld [vmem:[#allocation5 + $0xa20] sm:$0xff]
    %v477 = vld [vmem:[#allocation5 + $0xa28] sm:$0xff]
    %v478 = vld [vmem:[#allocation5 + $0xa30] sm:$0xff]
    %v479 = vld [vmem:[#allocation5 + $0xa38] sm:$0xff]
    %v480 = vld [vmem:[#allocation5 + $0xa40] sm:$0xff]
    %v481 = vld [vmem:[#allocation5 + $0xa48] sm:$0xff]
    %v482 = vld [vmem:[#allocation5 + $0xa50] sm:$0xff]
    %v483 = vld [vmem:[#allocation5 + $0xa58] sm:$0xff]
    %v484 = vld [vmem:[#allocation5 + $0xa60] sm:$0xff]
    %v485 = vld [vmem:[#allocation5 + $0xa68] sm:$0xff]
    %v486 = vld [vmem:[#allocation5 + $0xa70] sm:$0xff]
    %v487 = vld [vmem:[#allocation5 + $0xa78] sm:$0xff]
    %v488 = vld [vmem:[#allocation5 + $0xa80] sm:$0xff]
    %v489 = vld [vmem:[#allocation5 + $0xa88] sm:$0xff]
    %v490 = vld [vmem:[#allocation5 + $0xa90] sm:$0xff]
    %v491 = vld [vmem:[#allocation5 + $0xa98] sm:$0xff]
    %v492 = vld [vmem:[#allocation5 + $0xaa0] sm:$0xff]
    %v493 = vld [vmem:[#allocation5 + $0xaa8] sm:$0xff]
    %v494 = vld [vmem:[#allocation5 + $0xab0] sm:$0xff]
    %v495 = vld [vmem:[#allocation5 + $0xab8] sm:$0xff]
    %v496 = vld [vmem:[#allocation5 + $0xac0] sm:$0xff]
    %v497 = vld [vmem:[#allocation5 + $0xac8] sm:$0xff]
    %v498 = vld [vmem:[#allocation5 + $0xad0] sm:$0xff]
    %v499 = vld [vmem:[#allocation5 + $0xad8] sm:$0xff]
    %v500 = vld [vmem:[#allocation5 + $0xae0] sm:$0xff]
    %v501 = vld [vmem:[#allocation5 + $0xae8] sm:$0xff]
    %v502 = vld [vmem:[#allocation5 + $0xaf0] sm:$0xff]
    %v503 = vld [vmem:[#allocation5 + $0xaf8] sm:$0xff]
    %v504 = vld [vmem:[#allocation5 + $0xb00] sm:$0xff]
    %v505 = vld [vmem:[#allocation5 + $0xb08] sm:$0xff]
    %v506 = vld [vmem:[#allocation5 + $0xb10] sm:$0xff]
    %v507 = vld [vmem:[#allocation5 + $0xb18] sm:$0xff]
    %v508 = vld [vmem:[#allocation5 + $0xb20] sm:$0xff]
    %v509 = vld [vmem:[#allocation5 + $0xb28] sm:$0xff]
    %v510 = vld [vmem:[#allocation5 + $0xb30] sm:$0xff]
    %v511 = vld [vmem:[#allocation5 + $0xb38] sm:$0xff]
    %v512 = vld [vmem:[#allocation5 + $0xb40] sm:$0xff]
    %v513 = vld [vmem:[#allocation5 + $0xb48] sm:$0xff]
    %v514 = vld [vmem:[#allocation5 + $0xb50] sm:$0xff]
    %v515 = vld [vmem:[#allocation5 + $0xb58] sm:$0xff]
    %v516 = vld [vmem:[#allocation5 + $0xb60] sm:$0xff]
    %v517 = vld [vmem:[#allocation5 + $0xb68] sm:$0xff]
    %v518 = vld [vmem:[#allocation5 + $0xb70] sm:$0xff]
    %v519 = vld [vmem:[#allocation5 + $0xb78] sm:$0xff]
    %v520 = vld [vmem:[#allocation5 + $0xb80] sm:$0xff]
    %v521 = vld [vmem:[#allocation5 + $0xb88] sm:$0xff]
    %v522 = vld [vmem:[#allocation5 + $0xb90] sm:$0xff]
    %v523 = vld [vmem:[#allocation5 + $0xb98] sm:$0xff]
    %v524 = vld [vmem:[#allocation5 + $0xba0] sm:$0xff]
    %v525 = vld [vmem:[#allocation5 + $0xba8] sm:$0xff]
    %v526 = vld [vmem:[#allocation5 + $0xbb0] sm:$0xff]
    %v527 = vld [vmem:[#allocation5 + $0xbb8] sm:$0xff]
    %v528 = vld [vmem:[#allocation5 + $0xbc0] sm:$0xff]
    %v529 = vld [vmem:[#allocation5 + $0xbc8] sm:$0xff]
    %v530 = vld [vmem:[#allocation5 + $0xbd0] sm:$0xff]
    %v531 = vld [vmem:[#allocation5 + $0xbd8] sm:$0xff]
    %v532 = vld [vmem:[#allocation5 + $0xbe0] sm:$0xff]
    %v533 = vld [vmem:[#allocation5 + $0xbe8] sm:$0xff]
    %v534 = vld [vmem:[#allocation5 + $0xbf0] sm:$0xff]
    %v535 = vld [vmem:[#allocation5 + $0xbf8] sm:$0xff]
    %v542 = vunpack.c.l.b16 %v146
    %v543 = vunpack.c.h.b16 %v146
    %v544 = vunpack.c.l.b16 %v147
    %v545 = vunpack.c.h.b16 %v147
    %v546 = vunpack.c.l.b16 %v148
    %v547 = vunpack.c.h.b16 %v148
    %v548 = vunpack.c.l.b16 %v149
    %v549 = vunpack.c.h.b16 %v149
    %v550 = vunpack.c.l.b16 %v150
    %v551 = vunpack.c.h.b16 %v150
    %v552 = vunpack.c.l.b16 %v151
    %v553 = vunpack.c.h.b16 %v151
    %v554 = vpack.c.b16 %v548, %v542
    %v555 = vpack.c.b16 %v549, %v543
    %v556 = vpack.c.b16 %v550, %v544
    %v557 = vpack.c.b16 %v551, %v545
    %v558 = vpack.c.b16 %v552, %v546
    %v559 = vpack.c.b16 %v553, %v547
    %v950 = vunpack.c.l.b16 %v152
    %v951 = vunpack.c.h.b16 %v152
    %v952 = vunpack.c.l.b16 %v153
    %v953 = vunpack.c.h.b16 %v153
    %v954 = vunpack.c.l.b16 %v154
    %v955 = vunpack.c.h.b16 %v154
    %v956 = vunpack.c.l.b16 %v155
    %v957 = vunpack.c.h.b16 %v155
    %v958 = vunpack.c.l.b16 %v156
    %v959 = vunpack.c.h.b16 %v156
    %v960 = vunpack.c.l.b16 %v157
    %v961 = vunpack.c.h.b16 %v157
    %v962 = vunpack.c.l.b16 %v158
    %v963 = vunpack.c.h.b16 %v158
    %v964 = vunpack.c.l.b16 %v159
    %v965 = vunpack.c.h.b16 %v159
    %v966 = vunpack.c.l.b16 %v160
    %v967 = vunpack.c.h.b16 %v160
    %v968 = vunpack.c.l.b16 %v161
    %v969 = vunpack.c.h.b16 %v161
    %v970 = vunpack.c.l.b16 %v162
    %v971 = vunpack.c.h.b16 %v162
    %v972 = vunpack.c.l.b16 %v163
    %v973 = vunpack.c.h.b16 %v163
    %v974 = vunpack.c.l.b16 %v164
    %v975 = vunpack.c.h.b16 %v164
    %v976 = vunpack.c.l.b16 %v165
    %v977 = vunpack.c.h.b16 %v165
    %v978 = vunpack.c.l.b16 %v166
    %v979 = vunpack.c.h.b16 %v166
    %v980 = vunpack.c.l.b16 %v167
    %v981 = vunpack.c.h.b16 %v167
    %v982 = vunpack.c.l.b16 %v168
    %v983 = vunpack.c.h.b16 %v168
    %v984 = vunpack.c.l.b16 %v169
    %v985 = vunpack.c.h.b16 %v169
    %v986 = vunpack.c.l.b16 %v170
    %v987 = vunpack.c.h.b16 %v170
    %v988 = vunpack.c.l.b16 %v171
    %v989 = vunpack.c.h.b16 %v171
    %v990 = vunpack.c.l.b16 %v172
    %v991 = vunpack.c.h.b16 %v172
    %v992 = vunpack.c.l.b16 %v173
    %v993 = vunpack.c.h.b16 %v173
    %v994 = vunpack.c.l.b16 %v174
    %v995 = vunpack.c.h.b16 %v174
    %v996 = vunpack.c.l.b16 %v175
    %v997 = vunpack.c.h.b16 %v175
    %v998 = vunpack.c.l.b16 %v176
    %v999 = vunpack.c.h.b16 %v176
    %v1000 = vunpack.c.l.b16 %v177
    %v1001 = vunpack.c.h.b16 %v177
    %v1002 = vunpack.c.l.b16 %v178
    %v1003 = vunpack.c.h.b16 %v178
    %v1004 = vunpack.c.l.b16 %v179
    %v1005 = vunpack.c.h.b16 %v179
    %v1006 = vunpack.c.l.b16 %v180
    %v1007 = vunpack.c.h.b16 %v180
    %v1008 = vunpack.c.l.b16 %v181
    %v1009 = vunpack.c.h.b16 %v181
    %v1010 = vunpack.c.l.b16 %v182
    %v1011 = vunpack.c.h.b16 %v182
    %v1012 = vunpack.c.l.b16 %v183
    %v1013 = vunpack.c.h.b16 %v183
    %v1014 = vunpack.c.l.b16 %v184
    %v1015 = vunpack.c.h.b16 %v184
    %v1016 = vunpack.c.l.b16 %v185
    %v1017 = vunpack.c.h.b16 %v185
    %v1018 = vunpack.c.l.b16 %v186
    %v1019 = vunpack.c.h.b16 %v186
    %v1020 = vunpack.c.l.b16 %v187
    %v1021 = vunpack.c.h.b16 %v187
    %v1022 = vunpack.c.l.b16 %v188
    %v1023 = vunpack.c.h.b16 %v188
    %v1024 = vunpack.c.l.b16 %v189
    %v1025 = vunpack.c.h.b16 %v189
    %v1026 = vunpack.c.l.b16 %v190
    %v1027 = vunpack.c.h.b16 %v190
    %v1028 = vunpack.c.l.b16 %v191
    %v1029 = vunpack.c.h.b16 %v191
    %v1030 = vunpack.c.l.b16 %v192
    %v1031 = vunpack.c.h.b16 %v192
    %v1032 = vunpack.c.l.b16 %v193
    %v1033 = vunpack.c.h.b16 %v193
    %v1034 = vunpack.c.l.b16 %v194
    %v1035 = vunpack.c.h.b16 %v194
    %v1036 = vunpack.c.l.b16 %v195
    %v1037 = vunpack.c.h.b16 %v195
    %v1038 = vunpack.c.l.b16 %v196
    %v1039 = vunpack.c.h.b16 %v196
    %v1040 = vunpack.c.l.b16 %v197
    %v1041 = vunpack.c.h.b16 %v197
    %v1042 = vunpack.c.l.b16 %v198
    %v1043 = vunpack.c.h.b16 %v198
    %v1044 = vunpack.c.l.b16 %v199
    %v1045 = vunpack.c.h.b16 %v199
    %v1046 = vunpack.c.l.b16 %v200
    %v1047 = vunpack.c.h.b16 %v200
    %v1048 = vunpack.c.l.b16 %v201
    %v1049 = vunpack.c.h.b16 %v201
    %v1050 = vunpack.c.l.b16 %v202
    %v1051 = vunpack.c.h.b16 %v202
    %v1052 = vunpack.c.l.b16 %v203
    %v1053 = vunpack.c.h.b16 %v203
    %v1054 = vunpack.c.l.b16 %v204
    %v1055 = vunpack.c.h.b16 %v204
    %v1056 = vunpack.c.l.b16 %v205
    %v1057 = vunpack.c.h.b16 %v205
    %v1058 = vunpack.c.l.b16 %v206
    %v1059 = vunpack.c.h.b16 %v206
    %v1060 = vunpack.c.l.b16 %v207
    %v1061 = vunpack.c.h.b16 %v207
    %v1062 = vunpack.c.l.b16 %v208
    %v1063 = vunpack.c.h.b16 %v208
    %v1064 = vunpack.c.l.b16 %v209
    %v1065 = vunpack.c.h.b16 %v209
    %v1066 = vunpack.c.l.b16 %v210
    %v1067 = vunpack.c.h.b16 %v210
    %v1068 = vunpack.c.l.b16 %v211
    %v1069 = vunpack.c.h.b16 %v211
    %v1070 = vunpack.c.l.b16 %v212
    %v1071 = vunpack.c.h.b16 %v212
    %v1072 = vunpack.c.l.b16 %v213
    %v1073 = vunpack.c.h.b16 %v213
    %v1074 = vunpack.c.l.b16 %v214
    %v1075 = vunpack.c.h.b16 %v214
    %v1076 = vunpack.c.l.b16 %v215
    %v1077 = vunpack.c.h.b16 %v215
    %v1078 = vunpack.c.l.b16 %v216
    %v1079 = vunpack.c.h.b16 %v216
    %v1080 = vunpack.c.l.b16 %v217
    %v1081 = vunpack.c.h.b16 %v217
    %v1082 = vunpack.c.l.b16 %v218
    %v1083 = vunpack.c.h.b16 %v218
    %v1084 = vunpack.c.l.b16 %v219
    %v1085 = vunpack.c.h.b16 %v219
    %v1086 = vunpack.c.l.b16 %v220
    %v1087 = vunpack.c.h.b16 %v220
    %v1088 = vunpack.c.l.b16 %v221
    %v1089 = vunpack.c.h.b16 %v221
    %v1090 = vunpack.c.l.b16 %v222
    %v1091 = vunpack.c.h.b16 %v222
    %v1092 = vunpack.c.l.b16 %v223
    %v1093 = vunpack.c.h.b16 %v223
    %v1094 = vunpack.c.l.b16 %v224
    %v1095 = vunpack.c.h.b16 %v224
    %v1096 = vunpack.c.l.b16 %v225
    %v1097 = vunpack.c.h.b16 %v225
    %v1098 = vunpack.c.l.b16 %v226
    %v1099 = vunpack.c.h.b16 %v226
    %v1100 = vunpack.c.l.b16 %v227
    %v1101 = vunpack.c.h.b16 %v227
    %v1102 = vunpack.c.l.b16 %v228
    %v1103 = vunpack.c.h.b16 %v228
    %v1104 = vunpack.c.l.b16 %v229
    %v1105 = vunpack.c.h.b16 %v229
    %v1106 = vunpack.c.l.b16 %v230
    %v1107 = vunpack.c.h.b16 %v230
    %v1108 = vunpack.c.l.b16 %v231
    %v1109 = vunpack.c.h.b16 %v231
    %v1110 = vunpack.c.l.b16 %v232
    %v1111 = vunpack.c.h.b16 %v232
    %v1112 = vunpack.c.l.b16 %v233
    %v1113 = vunpack.c.h.b16 %v233
    %v1114 = vunpack.c.l.b16 %v234
    %v1115 = vunpack.c.h.b16 %v234
    %v1116 = vunpack.c.l.b16 %v235
    %v1117 = vunpack.c.h.b16 %v235
    %v1118 = vunpack.c.l.b16 %v236
    %v1119 = vunpack.c.h.b16 %v236
    %v1120 = vunpack.c.l.b16 %v237
    %v1121 = vunpack.c.h.b16 %v237
    %v1122 = vunpack.c.l.b16 %v238
    %v1123 = vunpack.c.h.b16 %v238
    %v1124 = vunpack.c.l.b16 %v239
    %v1125 = vunpack.c.h.b16 %v239
    %v1126 = vunpack.c.l.b16 %v240
    %v1127 = vunpack.c.h.b16 %v240
    %v1128 = vunpack.c.l.b16 %v241
    %v1129 = vunpack.c.h.b16 %v241
    %v1130 = vunpack.c.l.b16 %v242
    %v1131 = vunpack.c.h.b16 %v242
    %v1132 = vunpack.c.l.b16 %v243
    %v1133 = vunpack.c.h.b16 %v243
    %v1134 = vunpack.c.l.b16 %v244
    %v1135 = vunpack.c.h.b16 %v244
    %v1136 = vunpack.c.l.b16 %v245
    %v1137 = vunpack.c.h.b16 %v245
    %v1138 = vunpack.c.l.b16 %v246
    %v1139 = vunpack.c.h.b16 %v246
    %v1140 = vunpack.c.l.b16 %v247
    %v1141 = vunpack.c.h.b16 %v247
    %v1142 = vunpack.c.l.b16 %v248
    %v1143 = vunpack.c.h.b16 %v248
    %v1144 = vunpack.c.l.b16 %v249
    %v1145 = vunpack.c.h.b16 %v249
    %v1146 = vunpack.c.l.b16 %v250
    %v1147 = vunpack.c.h.b16 %v250
    %v1148 = vunpack.c.l.b16 %v251
    %v1149 = vunpack.c.h.b16 %v251
    %v1150 = vunpack.c.l.b16 %v252
    %v1151 = vunpack.c.h.b16 %v252
    %v1152 = vunpack.c.l.b16 %v253
    %v1153 = vunpack.c.h.b16 %v253
    %v1154 = vunpack.c.l.b16 %v254
    %v1155 = vunpack.c.h.b16 %v254
    %v1156 = vunpack.c.l.b16 %v255
    %v1157 = vunpack.c.h.b16 %v255
    %v1158 = vunpack.c.l.b16 %v256
    %v1159 = vunpack.c.h.b16 %v256
    %v1160 = vunpack.c.l.b16 %v257
    %v1161 = vunpack.c.h.b16 %v257
    %v1162 = vunpack.c.l.b16 %v258
    %v1163 = vunpack.c.h.b16 %v258
    %v1164 = vunpack.c.l.b16 %v259
    %v1165 = vunpack.c.h.b16 %v259
    %v1166 = vunpack.c.l.b16 %v260
    %v1167 = vunpack.c.h.b16 %v260
    %v1168 = vunpack.c.l.b16 %v261
    %v1169 = vunpack.c.h.b16 %v261
    %v1170 = vunpack.c.l.b16 %v262
    %v1171 = vunpack.c.h.b16 %v262
    %v1172 = vunpack.c.l.b16 %v263
    %v1173 = vunpack.c.h.b16 %v263
    %v1174 = vunpack.c.l.b16 %v264
    %v1175 = vunpack.c.h.b16 %v264
    %v1176 = vunpack.c.l.b16 %v265
    %v1177 = vunpack.c.h.b16 %v265
    %v1178 = vunpack.c.l.b16 %v266
    %v1179 = vunpack.c.h.b16 %v266
    %v1180 = vunpack.c.l.b16 %v267
    %v1181 = vunpack.c.h.b16 %v267
    %v1182 = vunpack.c.l.b16 %v268
    %v1183 = vunpack.c.h.b16 %v268
    %v1184 = vunpack.c.l.b16 %v269
    %v1185 = vunpack.c.h.b16 %v269
    %v1186 = vunpack.c.l.b16 %v270
    %v1187 = vunpack.c.h.b16 %v270
    %v1188 = vunpack.c.l.b16 %v271
    %v1189 = vunpack.c.h.b16 %v271
    %v1190 = vunpack.c.l.b16 %v272
    %v1191 = vunpack.c.h.b16 %v272
    %v1192 = vunpack.c.l.b16 %v273
    %v1193 = vunpack.c.h.b16 %v273
    %v1194 = vunpack.c.l.b16 %v274
    %v1195 = vunpack.c.h.b16 %v274
    %v1196 = vunpack.c.l.b16 %v275
    %v1197 = vunpack.c.h.b16 %v275
    %v1198 = vunpack.c.l.b16 %v276
    %v1199 = vunpack.c.h.b16 %v276
    %v1200 = vunpack.c.l.b16 %v277
    %v1201 = vunpack.c.h.b16 %v277
    %v1202 = vunpack.c.l.b16 %v278
    %v1203 = vunpack.c.h.b16 %v278
    %v1204 = vunpack.c.l.b16 %v279
    %v1205 = vunpack.c.h.b16 %v279
    %v1206 = vunpack.c.l.b16 %v280
    %v1207 = vunpack.c.h.b16 %v280
    %v1208 = vunpack.c.l.b16 %v281
    %v1209 = vunpack.c.h.b16 %v281
    %v1210 = vunpack.c.l.b16 %v282
    %v1211 = vunpack.c.h.b16 %v282
    %v1212 = vunpack.c.l.b16 %v283
    %v1213 = vunpack.c.h.b16 %v283
    %v1214 = vunpack.c.l.b16 %v284
    %v1215 = vunpack.c.h.b16 %v284
    %v1216 = vunpack.c.l.b16 %v285
    %v1217 = vunpack.c.h.b16 %v285
    %v1218 = vunpack.c.l.b16 %v286
    %v1219 = vunpack.c.h.b16 %v286
    %v1220 = vunpack.c.l.b16 %v287
    %v1221 = vunpack.c.h.b16 %v287
    %v1222 = vunpack.c.l.b16 %v288
    %v1223 = vunpack.c.h.b16 %v288
    %v1224 = vunpack.c.l.b16 %v289
    %v1225 = vunpack.c.h.b16 %v289
    %v1226 = vunpack.c.l.b16 %v290
    %v1227 = vunpack.c.h.b16 %v290
    %v1228 = vunpack.c.l.b16 %v291
    %v1229 = vunpack.c.h.b16 %v291
    %v1230 = vunpack.c.l.b16 %v292
    %v1231 = vunpack.c.h.b16 %v292
    %v1232 = vunpack.c.l.b16 %v293
    %v1233 = vunpack.c.h.b16 %v293
    %v1234 = vunpack.c.l.b16 %v294
    %v1235 = vunpack.c.h.b16 %v294
    %v1236 = vunpack.c.l.b16 %v295
    %v1237 = vunpack.c.h.b16 %v295
    %v1238 = vunpack.c.l.b16 %v296
    %v1239 = vunpack.c.h.b16 %v296
    %v1240 = vunpack.c.l.b16 %v297
    %v1241 = vunpack.c.h.b16 %v297
    %v1242 = vunpack.c.l.b16 %v298
    %v1243 = vunpack.c.h.b16 %v298
    %v1244 = vunpack.c.l.b16 %v299
    %v1245 = vunpack.c.h.b16 %v299
    %v1246 = vunpack.c.l.b16 %v300
    %v1247 = vunpack.c.h.b16 %v300
    %v1248 = vunpack.c.l.b16 %v301
    %v1249 = vunpack.c.h.b16 %v301
    %v1250 = vunpack.c.l.b16 %v302
    %v1251 = vunpack.c.h.b16 %v302
    %v1252 = vunpack.c.l.b16 %v303
    %v1253 = vunpack.c.h.b16 %v303
    %v1254 = vunpack.c.l.b16 %v304
    %v1255 = vunpack.c.h.b16 %v304
    %v1256 = vunpack.c.l.b16 %v305
    %v1257 = vunpack.c.h.b16 %v305
    %v1258 = vunpack.c.l.b16 %v306
    %v1259 = vunpack.c.h.b16 %v306
    %v1260 = vunpack.c.l.b16 %v307
    %v1261 = vunpack.c.h.b16 %v307
    %v1262 = vunpack.c.l.b16 %v308
    %v1263 = vunpack.c.h.b16 %v308
    %v1264 = vunpack.c.l.b16 %v309
    %v1265 = vunpack.c.h.b16 %v309
    %v1266 = vunpack.c.l.b16 %v310
    %v1267 = vunpack.c.h.b16 %v310
    %v1268 = vunpack.c.l.b16 %v311
    %v1269 = vunpack.c.h.b16 %v311
    %v1270 = vunpack.c.l.b16 %v312
    %v1271 = vunpack.c.h.b16 %v312
    %v1272 = vunpack.c.l.b16 %v313
    %v1273 = vunpack.c.h.b16 %v313
    %v1274 = vunpack.c.l.b16 %v314
    %v1275 = vunpack.c.h.b16 %v314
    %v1276 = vunpack.c.l.b16 %v315
    %v1277 = vunpack.c.h.b16 %v315
    %v1278 = vunpack.c.l.b16 %v316
    %v1279 = vunpack.c.h.b16 %v316
    %v1280 = vunpack.c.l.b16 %v317
    %v1281 = vunpack.c.h.b16 %v317
    %v1282 = vunpack.c.l.b16 %v318
    %v1283 = vunpack.c.h.b16 %v318
    %v1284 = vunpack.c.l.b16 %v319
    %v1285 = vunpack.c.h.b16 %v319
    %v1286 = vunpack.c.l.b16 %v320
    %v1287 = vunpack.c.h.b16 %v320
    %v1288 = vunpack.c.l.b16 %v321
    %v1289 = vunpack.c.h.b16 %v321
    %v1290 = vunpack.c.l.b16 %v322
    %v1291 = vunpack.c.h.b16 %v322
    %v1292 = vunpack.c.l.b16 %v323
    %v1293 = vunpack.c.h.b16 %v323
    %v1294 = vunpack.c.l.b16 %v324
    %v1295 = vunpack.c.h.b16 %v324
    %v1296 = vunpack.c.l.b16 %v325
    %v1297 = vunpack.c.h.b16 %v325
    %v1298 = vunpack.c.l.b16 %v326
    %v1299 = vunpack.c.h.b16 %v326
    %v1300 = vunpack.c.l.b16 %v327
    %v1301 = vunpack.c.h.b16 %v327
    %v1302 = vunpack.c.l.b16 %v328
    %v1303 = vunpack.c.h.b16 %v328
    %v1304 = vunpack.c.l.b16 %v329
    %v1305 = vunpack.c.h.b16 %v329
    %v1306 = vunpack.c.l.b16 %v330
    %v1307 = vunpack.c.h.b16 %v330
    %v1308 = vunpack.c.l.b16 %v331
    %v1309 = vunpack.c.h.b16 %v331
    %v1310 = vunpack.c.l.b16 %v332
    %v1311 = vunpack.c.h.b16 %v332
    %v1312 = vunpack.c.l.b16 %v333
    %v1313 = vunpack.c.h.b16 %v333
    %v1314 = vunpack.c.l.b16 %v334
    %v1315 = vunpack.c.h.b16 %v334
    %v1316 = vunpack.c.l.b16 %v335
    %v1317 = vunpack.c.h.b16 %v335
    %v1318 = vunpack.c.l.b16 %v336
    %v1319 = vunpack.c.h.b16 %v336
    %v1320 = vunpack.c.l.b16 %v337
    %v1321 = vunpack.c.h.b16 %v337
    %v1322 = vunpack.c.l.b16 %v338
    %v1323 = vunpack.c.h.b16 %v338
    %v1324 = vunpack.c.l.b16 %v339
    %v1325 = vunpack.c.h.b16 %v339
    %v1326 = vunpack.c.l.b16 %v340
    %v1327 = vunpack.c.h.b16 %v340
    %v1328 = vunpack.c.l.b16 %v341
    %v1329 = vunpack.c.h.b16 %v341
    %v1330 = vunpack.c.l.b16 %v342
    %v1331 = vunpack.c.h.b16 %v342
    %v1332 = vunpack.c.l.b16 %v343
    %v1333 = vunpack.c.h.b16 %v343
    %v1334 = vunpack.c.l.b16 %v344
    %v1335 = vunpack.c.h.b16 %v344
    %v1336 = vunpack.c.l.b16 %v345
    %v1337 = vunpack.c.h.b16 %v345
    %v1338 = vunpack.c.l.b16 %v346
    %v1339 = vunpack.c.h.b16 %v346
    %v1340 = vunpack.c.l.b16 %v347
    %v1341 = vunpack.c.h.b16 %v347
    %v1342 = vunpack.c.l.b16 %v348
    %v1343 = vunpack.c.h.b16 %v348
    %v1344 = vunpack.c.l.b16 %v349
    %v1345 = vunpack.c.h.b16 %v349
    %v1346 = vunpack.c.l.b16 %v350
    %v1347 = vunpack.c.h.b16 %v350
    %v1348 = vunpack.c.l.b16 %v351
    %v1349 = vunpack.c.h.b16 %v351
    %v1350 = vunpack.c.l.b16 %v352
    %v1351 = vunpack.c.h.b16 %v352
    %v1352 = vunpack.c.l.b16 %v353
    %v1353 = vunpack.c.h.b16 %v353
    %v1354 = vunpack.c.l.b16 %v354
    %v1355 = vunpack.c.h.b16 %v354
    %v1356 = vunpack.c.l.b16 %v355
    %v1357 = vunpack.c.h.b16 %v355
    %v1358 = vunpack.c.l.b16 %v356
    %v1359 = vunpack.c.h.b16 %v356
    %v1360 = vunpack.c.l.b16 %v357
    %v1361 = vunpack.c.h.b16 %v357
    %v1362 = vunpack.c.l.b16 %v358
    %v1363 = vunpack.c.h.b16 %v358
    %v1364 = vunpack.c.l.b16 %v359
    %v1365 = vunpack.c.h.b16 %v359
    %v1366 = vunpack.c.l.b16 %v360
    %v1367 = vunpack.c.h.b16 %v360
    %v1368 = vunpack.c.l.b16 %v361
    %v1369 = vunpack.c.h.b16 %v361
    %v1370 = vunpack.c.l.b16 %v362
    %v1371 = vunpack.c.h.b16 %v362
    %v1372 = vunpack.c.l.b16 %v363
    %v1373 = vunpack.c.h.b16 %v363
    %v1374 = vunpack.c.l.b16 %v364
    %v1375 = vunpack.c.h.b16 %v364
    %v1376 = vunpack.c.l.b16 %v365
    %v1377 = vunpack.c.h.b16 %v365
    %v1378 = vunpack.c.l.b16 %v366
    %v1379 = vunpack.c.h.b16 %v366
    %v1380 = vunpack.c.l.b16 %v367
    %v1381 = vunpack.c.h.b16 %v367
    %v1382 = vunpack.c.l.b16 %v368
    %v1383 = vunpack.c.h.b16 %v368
    %v1384 = vunpack.c.l.b16 %v369
    %v1385 = vunpack.c.h.b16 %v369
    %v1386 = vunpack.c.l.b16 %v370
    %v1387 = vunpack.c.h.b16 %v370
    %v1388 = vunpack.c.l.b16 %v371
    %v1389 = vunpack.c.h.b16 %v371
    %v1390 = vunpack.c.l.b16 %v372
    %v1391 = vunpack.c.h.b16 %v372
    %v1392 = vunpack.c.l.b16 %v373
    %v1393 = vunpack.c.h.b16 %v373
    %v1394 = vunpack.c.l.b16 %v374
    %v1395 = vunpack.c.h.b16 %v374
    %v1396 = vunpack.c.l.b16 %v375
    %v1397 = vunpack.c.h.b16 %v375
    %v1398 = vunpack.c.l.b16 %v376
    %v1399 = vunpack.c.h.b16 %v376
    %v1400 = vunpack.c.l.b16 %v377
    %v1401 = vunpack.c.h.b16 %v377
    %v1402 = vunpack.c.l.b16 %v378
    %v1403 = vunpack.c.h.b16 %v378
    %v1404 = vunpack.c.l.b16 %v379
    %v1405 = vunpack.c.h.b16 %v379
    %v1406 = vunpack.c.l.b16 %v380
    %v1407 = vunpack.c.h.b16 %v380
    %v1408 = vunpack.c.l.b16 %v381
    %v1409 = vunpack.c.h.b16 %v381
    %v1410 = vunpack.c.l.b16 %v382
    %v1411 = vunpack.c.h.b16 %v382
    %v1412 = vunpack.c.l.b16 %v383
    %v1413 = vunpack.c.h.b16 %v383
    %v1414 = vunpack.c.l.b16 %v384
    %v1415 = vunpack.c.h.b16 %v384
    %v1416 = vunpack.c.l.b16 %v385
    %v1417 = vunpack.c.h.b16 %v385
    %v1418 = vunpack.c.l.b16 %v386
    %v1419 = vunpack.c.h.b16 %v386
    %v1420 = vunpack.c.l.b16 %v387
    %v1421 = vunpack.c.h.b16 %v387
    %v1422 = vunpack.c.l.b16 %v388
    %v1423 = vunpack.c.h.b16 %v388
    %v1424 = vunpack.c.l.b16 %v389
    %v1425 = vunpack.c.h.b16 %v389
    %v1426 = vunpack.c.l.b16 %v390
    %v1427 = vunpack.c.h.b16 %v390
    %v1428 = vunpack.c.l.b16 %v391
    %v1429 = vunpack.c.h.b16 %v391
    %v1430 = vunpack.c.l.b16 %v392
    %v1431 = vunpack.c.h.b16 %v392
    %v1432 = vunpack.c.l.b16 %v393
    %v1433 = vunpack.c.h.b16 %v393
    %v1434 = vunpack.c.l.b16 %v394
    %v1435 = vunpack.c.h.b16 %v394
    %v1436 = vunpack.c.l.b16 %v395
    %v1437 = vunpack.c.h.b16 %v395
    %v1438 = vunpack.c.l.b16 %v396
    %v1439 = vunpack.c.h.b16 %v396
    %v1440 = vunpack.c.l.b16 %v397
    %v1441 = vunpack.c.h.b16 %v397
    %v1442 = vunpack.c.l.b16 %v398
    %v1443 = vunpack.c.h.b16 %v398
    %v1444 = vunpack.c.l.b16 %v399
    %v1445 = vunpack.c.h.b16 %v399
    %v1446 = vunpack.c.l.b16 %v400
    %v1447 = vunpack.c.h.b16 %v400
    %v1448 = vunpack.c.l.b16 %v401
    %v1449 = vunpack.c.h.b16 %v401
    %v1450 = vunpack.c.l.b16 %v402
    %v1451 = vunpack.c.h.b16 %v402
    %v1452 = vunpack.c.l.b16 %v403
    %v1453 = vunpack.c.h.b16 %v403
    %v1454 = vunpack.c.l.b16 %v404
    %v1455 = vunpack.c.h.b16 %v404
    %v1456 = vunpack.c.l.b16 %v405
    %v1457 = vunpack.c.h.b16 %v405
    %v1458 = vunpack.c.l.b16 %v406
    %v1459 = vunpack.c.h.b16 %v406
    %v1460 = vunpack.c.l.b16 %v407
    %v1461 = vunpack.c.h.b16 %v407
    %v1462 = vunpack.c.l.b16 %v408
    %v1463 = vunpack.c.h.b16 %v408
    %v1464 = vunpack.c.l.b16 %v409
    %v1465 = vunpack.c.h.b16 %v409
    %v1466 = vunpack.c.l.b16 %v410
    %v1467 = vunpack.c.h.b16 %v410
    %v1468 = vunpack.c.l.b16 %v411
    %v1469 = vunpack.c.h.b16 %v411
    %v1470 = vunpack.c.l.b16 %v412
    %v1471 = vunpack.c.h.b16 %v412
    %v1472 = vunpack.c.l.b16 %v413
    %v1473 = vunpack.c.h.b16 %v413
    %v1474 = vunpack.c.l.b16 %v414
    %v1475 = vunpack.c.h.b16 %v414
    %v1476 = vunpack.c.l.b16 %v415
    %v1477 = vunpack.c.h.b16 %v415
    %v1478 = vunpack.c.l.b16 %v416
    %v1479 = vunpack.c.h.b16 %v416
    %v1480 = vunpack.c.l.b16 %v417
    %v1481 = vunpack.c.h.b16 %v417
    %v1482 = vunpack.c.l.b16 %v418
    %v1483 = vunpack.c.h.b16 %v418
    %v1484 = vunpack.c.l.b16 %v419
    %v1485 = vunpack.c.h.b16 %v419
    %v1486 = vunpack.c.l.b16 %v420
    %v1487 = vunpack.c.h.b16 %v420
    %v1488 = vunpack.c.l.b16 %v421
    %v1489 = vunpack.c.h.b16 %v421
    %v1490 = vunpack.c.l.b16 %v422
    %v1491 = vunpack.c.h.b16 %v422
    %v1492 = vunpack.c.l.b16 %v423
    %v1493 = vunpack.c.h.b16 %v423
    %v1494 = vunpack.c.l.b16 %v424
    %v1495 = vunpack.c.h.b16 %v424
    %v1496 = vunpack.c.l.b16 %v425
    %v1497 = vunpack.c.h.b16 %v425
    %v1498 = vunpack.c.l.b16 %v426
    %v1499 = vunpack.c.h.b16 %v426
    %v1500 = vunpack.c.l.b16 %v427
    %v1501 = vunpack.c.h.b16 %v427
    %v1502 = vunpack.c.l.b16 %v428
    %v1503 = vunpack.c.h.b16 %v428
    %v1504 = vunpack.c.l.b16 %v429
    %v1505 = vunpack.c.h.b16 %v429
    %v1506 = vunpack.c.l.b16 %v430
    %v1507 = vunpack.c.h.b16 %v430
    %v1508 = vunpack.c.l.b16 %v431
    %v1509 = vunpack.c.h.b16 %v431
    %v1510 = vunpack.c.l.b16 %v432
    %v1511 = vunpack.c.h.b16 %v432
    %v1512 = vunpack.c.l.b16 %v433
    %v1513 = vunpack.c.h.b16 %v433
    %v1514 = vunpack.c.l.b16 %v434
    %v1515 = vunpack.c.h.b16 %v434
    %v1516 = vunpack.c.l.b16 %v435
    %v1517 = vunpack.c.h.b16 %v435
    %v1518 = vunpack.c.l.b16 %v436
    %v1519 = vunpack.c.h.b16 %v436
    %v1520 = vunpack.c.l.b16 %v437
    %v1521 = vunpack.c.h.b16 %v437
    %v1522 = vunpack.c.l.b16 %v438
    %v1523 = vunpack.c.h.b16 %v438
    %v1524 = vunpack.c.l.b16 %v439
    %v1525 = vunpack.c.h.b16 %v439
    %v1526 = vunpack.c.l.b16 %v440
    %v1527 = vunpack.c.h.b16 %v440
    %v1528 = vunpack.c.l.b16 %v441
    %v1529 = vunpack.c.h.b16 %v441
    %v1530 = vunpack.c.l.b16 %v442
    %v1531 = vunpack.c.h.b16 %v442
    %v1532 = vunpack.c.l.b16 %v443
    %v1533 = vunpack.c.h.b16 %v443
    %v1534 = vunpack.c.l.b16 %v444
    %v1535 = vunpack.c.h.b16 %v444
    %v1536 = vunpack.c.l.b16 %v445
    %v1537 = vunpack.c.h.b16 %v445
    %v1538 = vunpack.c.l.b16 %v446
    %v1539 = vunpack.c.h.b16 %v446
    %v1540 = vunpack.c.l.b16 %v447
    %v1541 = vunpack.c.h.b16 %v447
    %v1542 = vunpack.c.l.b16 %v448
    %v1543 = vunpack.c.h.b16 %v448
    %v1544 = vunpack.c.l.b16 %v449
    %v1545 = vunpack.c.h.b16 %v449
    %v1546 = vunpack.c.l.b16 %v450
    %v1547 = vunpack.c.h.b16 %v450
    %v1548 = vunpack.c.l.b16 %v451
    %v1549 = vunpack.c.h.b16 %v451
    %v1550 = vunpack.c.l.b16 %v452
    %v1551 = vunpack.c.h.b16 %v452
    %v1552 = vunpack.c.l.b16 %v453
    %v1553 = vunpack.c.h.b16 %v453
    %v1554 = vunpack.c.l.b16 %v454
    %v1555 = vunpack.c.h.b16 %v454
    %v1556 = vunpack.c.l.b16 %v455
    %v1557 = vunpack.c.h.b16 %v455
    %v1558 = vunpack.c.l.b16 %v456
    %v1559 = vunpack.c.h.b16 %v456
    %v1560 = vunpack.c.l.b16 %v457
    %v1561 = vunpack.c.h.b16 %v457
    %v1562 = vunpack.c.l.b16 %v458
    %v1563 = vunpack.c.h.b16 %v458
    %v1564 = vunpack.c.l.b16 %v459
    %v1565 = vunpack.c.h.b16 %v459
    %v1566 = vunpack.c.l.b16 %v460
    %v1567 = vunpack.c.h.b16 %v460
    %v1568 = vunpack.c.l.b16 %v461
    %v1569 = vunpack.c.h.b16 %v461
    %v1570 = vunpack.c.l.b16 %v462
    %v1571 = vunpack.c.h.b16 %v462
    %v1572 = vunpack.c.l.b16 %v463
    %v1573 = vunpack.c.h.b16 %v463
    %v1574 = vunpack.c.l.b16 %v464
    %v1575 = vunpack.c.h.b16 %v464
    %v1576 = vunpack.c.l.b16 %v465
    %v1577 = vunpack.c.h.b16 %v465
    %v1578 = vunpack.c.l.b16 %v466
    %v1579 = vunpack.c.h.b16 %v466
    %v1580 = vunpack.c.l.b16 %v467
    %v1581 = vunpack.c.h.b16 %v467
    %v1582 = vunpack.c.l.b16 %v468
    %v1583 = vunpack.c.h.b16 %v468
    %v1584 = vunpack.c.l.b16 %v469
    %v1585 = vunpack.c.h.b16 %v469
    %v1586 = vunpack.c.l.b16 %v470
    %v1587 = vunpack.c.h.b16 %v470
    %v1588 = vunpack.c.l.b16 %v471
    %v1589 = vunpack.c.h.b16 %v471
    %v1590 = vunpack.c.l.b16 %v472
    %v1591 = vunpack.c.h.b16 %v472
    %v1592 = vunpack.c.l.b16 %v473
    %v1593 = vunpack.c.h.b16 %v473
    %v1594 = vunpack.c.l.b16 %v474
    %v1595 = vunpack.c.h.b16 %v474
    %v1596 = vunpack.c.l.b16 %v475
    %v1597 = vunpack.c.h.b16 %v475
    %v1598 = vunpack.c.l.b16 %v476
    %v1599 = vunpack.c.h.b16 %v476
    %v1600 = vunpack.c.l.b16 %v477
    %v1601 = vunpack.c.h.b16 %v477
    %v1602 = vunpack.c.l.b16 %v478
    %v1603 = vunpack.c.h.b16 %v478
    %v1604 = vunpack.c.l.b16 %v479
    %v1605 = vunpack.c.h.b16 %v479
    %v1606 = vunpack.c.l.b16 %v480
    %v1607 = vunpack.c.h.b16 %v480
    %v1608 = vunpack.c.l.b16 %v481
    %v1609 = vunpack.c.h.b16 %v481
    %v1610 = vunpack.c.l.b16 %v482
    %v1611 = vunpack.c.h.b16 %v482
    %v1612 = vunpack.c.l.b16 %v483
    %v1613 = vunpack.c.h.b16 %v483
    %v1614 = vunpack.c.l.b16 %v484
    %v1615 = vunpack.c.h.b16 %v484
    %v1616 = vunpack.c.l.b16 %v485
    %v1617 = vunpack.c.h.b16 %v485
    %v1618 = vunpack.c.l.b16 %v486
    %v1619 = vunpack.c.h.b16 %v486
    %v1620 = vunpack.c.l.b16 %v487
    %v1621 = vunpack.c.h.b16 %v487
    %v1622 = vunpack.c.l.b16 %v488
    %v1623 = vunpack.c.h.b16 %v488
    %v1624 = vunpack.c.l.b16 %v489
    %v1625 = vunpack.c.h.b16 %v489
    %v1626 = vunpack.c.l.b16 %v490
    %v1627 = vunpack.c.h.b16 %v490
    %v1628 = vunpack.c.l.b16 %v491
    %v1629 = vunpack.c.h.b16 %v491
    %v1630 = vunpack.c.l.b16 %v492
    %v1631 = vunpack.c.h.b16 %v492
    %v1632 = vunpack.c.l.b16 %v493
    %v1633 = vunpack.c.h.b16 %v493
    %v1634 = vunpack.c.l.b16 %v494
    %v1635 = vunpack.c.h.b16 %v494
    %v1636 = vunpack.c.l.b16 %v495
    %v1637 = vunpack.c.h.b16 %v495
    %v1638 = vunpack.c.l.b16 %v496
    %v1639 = vunpack.c.h.b16 %v496
    %v1640 = vunpack.c.l.b16 %v497
    %v1641 = vunpack.c.h.b16 %v497
    %v1642 = vunpack.c.l.b16 %v498
    %v1643 = vunpack.c.h.b16 %v498
    %v1644 = vunpack.c.l.b16 %v499
    %v1645 = vunpack.c.h.b16 %v499
    %v1646 = vunpack.c.l.b16 %v500
    %v1647 = vunpack.c.h.b16 %v500
    %v1648 = vunpack.c.l.b16 %v501
    %v1649 = vunpack.c.h.b16 %v501
    %v1650 = vunpack.c.l.b16 %v502
    %v1651 = vunpack.c.h.b16 %v502
    %v1652 = vunpack.c.l.b16 %v503
    %v1653 = vunpack.c.h.b16 %v503
    %v1654 = vunpack.c.l.b16 %v504
    %v1655 = vunpack.c.h.b16 %v504
    %v1656 = vunpack.c.l.b16 %v505
    %v1657 = vunpack.c.h.b16 %v505
    %v1658 = vunpack.c.l.b16 %v506
    %v1659 = vunpack.c.h.b16 %v506
    %v1660 = vunpack.c.l.b16 %v507
    %v1661 = vunpack.c.h.b16 %v507
    %v1662 = vunpack.c.l.b16 %v508
    %v1663 = vunpack.c.h.b16 %v508
    %v1664 = vunpack.c.l.b16 %v509
    %v1665 = vunpack.c.h.b16 %v509
    %v1666 = vunpack.c.l.b16 %v510
    %v1667 = vunpack.c.h.b16 %v510
    %v1668 = vunpack.c.l.b16 %v511
    %v1669 = vunpack.c.h.b16 %v511
    %v1670 = vunpack.c.l.b16 %v512
    %v1671 = vunpack.c.h.b16 %v512
    %v1672 = vunpack.c.l.b16 %v513
    %v1673 = vunpack.c.h.b16 %v513
    %v1674 = vunpack.c.l.b16 %v514
    %v1675 = vunpack.c.h.b16 %v514
    %v1676 = vunpack.c.l.b16 %v515
    %v1677 = vunpack.c.h.b16 %v515
    %v1678 = vunpack.c.l.b16 %v516
    %v1679 = vunpack.c.h.b16 %v516
    %v1680 = vunpack.c.l.b16 %v517
    %v1681 = vunpack.c.h.b16 %v517
    %v1682 = vunpack.c.l.b16 %v518
    %v1683 = vunpack.c.h.b16 %v518
    %v1684 = vunpack.c.l.b16 %v519
    %v1685 = vunpack.c.h.b16 %v519
    %v1686 = vunpack.c.l.b16 %v520
    %v1687 = vunpack.c.h.b16 %v520
    %v1688 = vunpack.c.l.b16 %v521
    %v1689 = vunpack.c.h.b16 %v521
    %v1690 = vunpack.c.l.b16 %v522
    %v1691 = vunpack.c.h.b16 %v522
    %v1692 = vunpack.c.l.b16 %v523
    %v1693 = vunpack.c.h.b16 %v523
    %v1694 = vunpack.c.l.b16 %v524
    %v1695 = vunpack.c.h.b16 %v524
    %v1696 = vunpack.c.l.b16 %v525
    %v1697 = vunpack.c.h.b16 %v525
    %v1698 = vunpack.c.l.b16 %v526
    %v1699 = vunpack.c.h.b16 %v526
    %v1700 = vunpack.c.l.b16 %v527
    %v1701 = vunpack.c.h.b16 %v527
    %v1702 = vunpack.c.l.b16 %v528
    %v1703 = vunpack.c.h.b16 %v528
    %v1704 = vunpack.c.l.b16 %v529
    %v1705 = vunpack.c.h.b16 %v529
    %v1706 = vunpack.c.l.b16 %v530
    %v1707 = vunpack.c.h.b16 %v530
    %v1708 = vunpack.c.l.b16 %v531
    %v1709 = vunpack.c.h.b16 %v531
    %v1710 = vunpack.c.l.b16 %v532
    %v1711 = vunpack.c.h.b16 %v532
    %v1712 = vunpack.c.l.b16 %v533
    %v1713 = vunpack.c.h.b16 %v533
    %v1714 = vunpack.c.l.b16 %v534
    %v1715 = vunpack.c.h.b16 %v534
    %v1716 = vunpack.c.l.b16 %v535
    %v1717 = vunpack.c.h.b16 %v535
    %v1718 = vpack.c.b16 %v958, %v950
    %v1719 = vpack.c.b16 %v959, %v951
    %v1720 = vpack.c.b16 %v960, %v952
    %v1721 = vpack.c.b16 %v961, %v953
    %v1722 = vpack.c.b16 %v962, %v954
    %v1723 = vpack.c.b16 %v963, %v955
    %v1724 = vpack.c.b16 %v964, %v956
    %v1725 = vpack.c.b16 %v965, %v957
    %v1726 = vpack.c.b16 %v974, %v966
    %v1727 = vpack.c.b16 %v975, %v967
    %v1728 = vpack.c.b16 %v976, %v968
    %v1729 = vpack.c.b16 %v977, %v969
    %v1730 = vpack.c.b16 %v978, %v970
    %v1731 = vpack.c.b16 %v979, %v971
    %v1732 = vpack.c.b16 %v980, %v972
    %v1733 = vpack.c.b16 %v981, %v973
    %v1734 = vpack.c.b16 %v990, %v982
    %v1735 = vpack.c.b16 %v991, %v983
    %v1736 = vpack.c.b16 %v992, %v984
    %v1737 = vpack.c.b16 %v993, %v985
    %v1738 = vpack.c.b16 %v994, %v986
    %v1739 = vpack.c.b16 %v995, %v987
    %v1740 = vpack.c.b16 %v996, %v988
    %v1741 = vpack.c.b16 %v997, %v989
    %v1742 = vpack.c.b16 %v1006, %v998
    %v1743 = vpack.c.b16 %v1007, %v999
    %v1744 = vpack.c.b16 %v1008, %v1000
    %v1745 = vpack.c.b16 %v1009, %v1001
    %v1746 = vpack.c.b16 %v1010, %v1002
    %v1747 = vpack.c.b16 %v1011, %v1003
    %v1748 = vpack.c.b16 %v1012, %v1004
    %v1749 = vpack.c.b16 %v1013, %v1005
    %v1750 = vpack.c.b16 %v1022, %v1014
    %v1751 = vpack.c.b16 %v1023, %v1015
    %v1752 = vpack.c.b16 %v1024, %v1016
    %v1753 = vpack.c.b16 %v1025, %v1017
    %v1754 = vpack.c.b16 %v1026, %v1018
    %v1755 = vpack.c.b16 %v1027, %v1019
    %v1756 = vpack.c.b16 %v1028, %v1020
    %v1757 = vpack.c.b16 %v1029, %v1021
    %v1758 = vpack.c.b16 %v1038, %v1030
    %v1759 = vpack.c.b16 %v1039, %v1031
    %v1760 = vpack.c.b16 %v1040, %v1032
    %v1761 = vpack.c.b16 %v1041, %v1033
    %v1762 = vpack.c.b16 %v1042, %v1034
    %v1763 = vpack.c.b16 %v1043, %v1035
    %v1764 = vpack.c.b16 %v1044, %v1036
    %v1765 = vpack.c.b16 %v1045, %v1037
    %v1766 = vpack.c.b16 %v1054, %v1046
    %v1767 = vpack.c.b16 %v1055, %v1047
    %v1768 = vpack.c.b16 %v1056, %v1048
    %v1769 = vpack.c.b16 %v1057, %v1049
    %v1770 = vpack.c.b16 %v1058, %v1050
    %v1771 = vpack.c.b16 %v1059, %v1051
    %v1772 = vpack.c.b16 %v1060, %v1052
    %v1773 = vpack.c.b16 %v1061, %v1053
    %v1774 = vpack.c.b16 %v1070, %v1062
    %v1775 = vpack.c.b16 %v1071, %v1063
    %v1776 = vpack.c.b16 %v1072, %v1064
    %v1777 = vpack.c.b16 %v1073, %v1065
    %v1778 = vpack.c.b16 %v1074, %v1066
    %v1779 = vpack.c.b16 %v1075, %v1067
    %v1780 = vpack.c.b16 %v1076, %v1068
    %v1781 = vpack.c.b16 %v1077, %v1069
    %v1782 = vpack.c.b16 %v1086, %v1078
    %v1783 = vpack.c.b16 %v1087, %v1079
    %v1784 = vpack.c.b16 %v1088, %v1080
    %v1785 = vpack.c.b16 %v1089, %v1081
    %v1786 = vpack.c.b16 %v1090, %v1082
    %v1787 = vpack.c.b16 %v1091, %v1083
    %v1788 = vpack.c.b16 %v1092, %v1084
    %v1789 = vpack.c.b16 %v1093, %v1085
    %v1790 = vpack.c.b16 %v1102, %v1094
    %v1791 = vpack.c.b16 %v1103, %v1095
    %v1792 = vpack.c.b16 %v1104, %v1096
    %v1793 = vpack.c.b16 %v1105, %v1097
    %v1794 = vpack.c.b16 %v1106, %v1098
    %v1795 = vpack.c.b16 %v1107, %v1099
    %v1796 = vpack.c.b16 %v1108, %v1100
    %v1797 = vpack.c.b16 %v1109, %v1101
    %v1798 = vpack.c.b16 %v1118, %v1110
    %v1799 = vpack.c.b16 %v1119, %v1111
    %v1800 = vpack.c.b16 %v1120, %v1112
    %v1801 = vpack.c.b16 %v1121, %v1113
    %v1802 = vpack.c.b16 %v1122, %v1114
    %v1803 = vpack.c.b16 %v1123, %v1115
    %v1804 = vpack.c.b16 %v1124, %v1116
    %v1805 = vpack.c.b16 %v1125, %v1117
    %v1806 = vpack.c.b16 %v1134, %v1126
    %v1807 = vpack.c.b16 %v1135, %v1127
    %v1808 = vpack.c.b16 %v1136, %v1128
    %v1809 = vpack.c.b16 %v1137, %v1129
    %v1810 = vpack.c.b16 %v1138, %v1130
    %v1811 = vpack.c.b16 %v1139, %v1131
    %v1812 = vpack.c.b16 %v1140, %v1132
    %v1813 = vpack.c.b16 %v1141, %v1133
    %v1814 = vpack.c.b16 %v1150, %v1142
    %v1815 = vpack.c.b16 %v1151, %v1143
    %v1816 = vpack.c.b16 %v1152, %v1144
    %v1817 = vpack.c.b16 %v1153, %v1145
    %v1818 = vpack.c.b16 %v1154, %v1146
    %v1819 = vpack.c.b16 %v1155, %v1147
    %v1820 = vpack.c.b16 %v1156, %v1148
    %v1821 = vpack.c.b16 %v1157, %v1149
    %v1822 = vpack.c.b16 %v1166, %v1158
    %v1823 = vpack.c.b16 %v1167, %v1159
    %v1824 = vpack.c.b16 %v1168, %v1160
    %v1825 = vpack.c.b16 %v1169, %v1161
    %v1826 = vpack.c.b16 %v1170, %v1162
    %v1827 = vpack.c.b16 %v1171, %v1163
    %v1828 = vpack.c.b16 %v1172, %v1164
    %v1829 = vpack.c.b16 %v1173, %v1165
    %v1830 = vpack.c.b16 %v1182, %v1174
    %v1831 = vpack.c.b16 %v1183, %v1175
    %v1832 = vpack.c.b16 %v1184, %v1176
    %v1833 = vpack.c.b16 %v1185, %v1177
    %v1834 = vpack.c.b16 %v1186, %v1178
    %v1835 = vpack.c.b16 %v1187, %v1179
    %v1836 = vpack.c.b16 %v1188, %v1180
    %v1837 = vpack.c.b16 %v1189, %v1181
    %v1838 = vpack.c.b16 %v1198, %v1190
    %v1839 = vpack.c.b16 %v1199, %v1191
    %v1840 = vpack.c.b16 %v1200, %v1192
    %v1841 = vpack.c.b16 %v1201, %v1193
    %v1842 = vpack.c.b16 %v1202, %v1194
    %v1843 = vpack.c.b16 %v1203, %v1195
    %v1844 = vpack.c.b16 %v1204, %v1196
    %v1845 = vpack.c.b16 %v1205, %v1197
    %v1846 = vpack.c.b16 %v1214, %v1206
    %v1847 = vpack.c.b16 %v1215, %v1207
    %v1848 = vpack.c.b16 %v1216, %v1208
    %v1849 = vpack.c.b16 %v1217, %v1209
    %v1850 = vpack.c.b16 %v1218, %v1210
    %v1851 = vpack.c.b16 %v1219, %v1211
    %v1852 = vpack.c.b16 %v1220, %v1212
    %v1853 = vpack.c.b16 %v1221, %v1213
    %v1854 = vpack.c.b16 %v1230, %v1222
    %v1855 = vpack.c.b16 %v1231, %v1223
    %v1856 = vpack.c.b16 %v1232, %v1224
    %v1857 = vpack.c.b16 %v1233, %v1225
    %v1858 = vpack.c.b16 %v1234, %v1226
    %v1859 = vpack.c.b16 %v1235, %v1227
    %v1860 = vpack.c.b16 %v1236, %v1228
    %v1861 = vpack.c.b16 %v1237, %v1229
    %v1862 = vpack.c.b16 %v1246, %v1238
    %v1863 = vpack.c.b16 %v1247, %v1239
    %v1864 = vpack.c.b16 %v1248, %v1240
    %v1865 = vpack.c.b16 %v1249, %v1241
    %v1866 = vpack.c.b16 %v1250, %v1242
    %v1867 = vpack.c.b16 %v1251, %v1243
    %v1868 = vpack.c.b16 %v1252, %v1244
    %v1869 = vpack.c.b16 %v1253, %v1245
    %v1870 = vpack.c.b16 %v1262, %v1254
    %v1871 = vpack.c.b16 %v1263, %v1255
    %v1872 = vpack.c.b16 %v1264, %v1256
    %v1873 = vpack.c.b16 %v1265, %v1257
    %v1874 = vpack.c.b16 %v1266, %v1258
    %v1875 = vpack.c.b16 %v1267, %v1259
    %v1876 = vpack.c.b16 %v1268, %v1260
    %v1877 = vpack.c.b16 %v1269, %v1261
    %v1878 = vpack.c.b16 %v1278, %v1270
    %v1879 = vpack.c.b16 %v1279, %v1271
    %v1880 = vpack.c.b16 %v1280, %v1272
    %v1881 = vpack.c.b16 %v1281, %v1273
    %v1882 = vpack.c.b16 %v1282, %v1274
    %v1883 = vpack.c.b16 %v1283, %v1275
    %v1884 = vpack.c.b16 %v1284, %v1276
    %v1885 = vpack.c.b16 %v1285, %v1277
    %v1886 = vpack.c.b16 %v1294, %v1286
    %v1887 = vpack.c.b16 %v1295, %v1287
    %v1888 = vpack.c.b16 %v1296, %v1288
    %v1889 = vpack.c.b16 %v1297, %v1289
    %v1890 = vpack.c.b16 %v1298, %v1290
    %v1891 = vpack.c.b16 %v1299, %v1291
    %v1892 = vpack.c.b16 %v1300, %v1292
    %v1893 = vpack.c.b16 %v1301, %v1293
    %v1894 = vpack.c.b16 %v1310, %v1302
    %v1895 = vpack.c.b16 %v1311, %v1303
    %v1896 = vpack.c.b16 %v1312, %v1304
    %v1897 = vpack.c.b16 %v1313, %v1305
    %v1898 = vpack.c.b16 %v1314, %v1306
    %v1899 = vpack.c.b16 %v1315, %v1307
    %v1900 = vpack.c.b16 %v1316, %v1308
    %v1901 = vpack.c.b16 %v1317, %v1309
    %v1902 = vpack.c.b16 %v1326, %v1318
    %v1903 = vpack.c.b16 %v1327, %v1319
    %v1904 = vpack.c.b16 %v1328, %v1320
    %v1905 = vpack.c.b16 %v1329, %v1321
    %v1906 = vpack.c.b16 %v1330, %v1322
    %v1907 = vpack.c.b16 %v1331, %v1323
    %v1908 = vpack.c.b16 %v1332, %v1324
    %v1909 = vpack.c.b16 %v1333, %v1325
    %v1910 = vpack.c.b16 %v1342, %v1334
    %v1911 = vpack.c.b16 %v1343, %v1335
    %v1912 = vpack.c.b16 %v1344, %v1336
    %v1913 = vpack.c.b16 %v1345, %v1337
    %v1914 = vpack.c.b16 %v1346, %v1338
    %v1915 = vpack.c.b16 %v1347, %v1339
    %v1916 = vpack.c.b16 %v1348, %v1340
    %v1917 = vpack.c.b16 %v1349, %v1341
    %v1918 = vpack.c.b16 %v1358, %v1350
    %v1919 = vpack.c.b16 %v1359, %v1351
    %v1920 = vpack.c.b16 %v1360, %v1352
    %v1921 = vpack.c.b16 %v1361, %v1353
    %v1922 = vpack.c.b16 %v1362, %v1354
    %v1923 = vpack.c.b16 %v1363, %v1355
    %v1924 = vpack.c.b16 %v1364, %v1356
    %v1925 = vpack.c.b16 %v1365, %v1357
    %v1926 = vpack.c.b16 %v1374, %v1366
    %v1927 = vpack.c.b16 %v1375, %v1367
    %v1928 = vpack.c.b16 %v1376, %v1368
    %v1929 = vpack.c.b16 %v1377, %v1369
    %v1930 = vpack.c.b16 %v1378, %v1370
    %v1931 = vpack.c.b16 %v1379, %v1371
    %v1932 = vpack.c.b16 %v1380, %v1372
    %v1933 = vpack.c.b16 %v1381, %v1373
    %v1934 = vpack.c.b16 %v1390, %v1382
    %v1935 = vpack.c.b16 %v1391, %v1383
    %v1936 = vpack.c.b16 %v1392, %v1384
    %v1937 = vpack.c.b16 %v1393, %v1385
    %v1938 = vpack.c.b16 %v1394, %v1386
    %v1939 = vpack.c.b16 %v1395, %v1387
    %v1940 = vpack.c.b16 %v1396, %v1388
    %v1941 = vpack.c.b16 %v1397, %v1389
    %v1942 = vpack.c.b16 %v1406, %v1398
    %v1943 = vpack.c.b16 %v1407, %v1399
    %v1944 = vpack.c.b16 %v1408, %v1400
    %v1945 = vpack.c.b16 %v1409, %v1401
    %v1946 = vpack.c.b16 %v1410, %v1402
    %v1947 = vpack.c.b16 %v1411, %v1403
    %v1948 = vpack.c.b16 %v1412, %v1404
    %v1949 = vpack.c.b16 %v1413, %v1405
    %v1950 = vpack.c.b16 %v1422, %v1414
    %v1951 = vpack.c.b16 %v1423, %v1415
    %v1952 = vpack.c.b16 %v1424, %v1416
    %v1953 = vpack.c.b16 %v1425, %v1417
    %v1954 = vpack.c.b16 %v1426, %v1418
    %v1955 = vpack.c.b16 %v1427, %v1419
    %v1956 = vpack.c.b16 %v1428, %v1420
    %v1957 = vpack.c.b16 %v1429, %v1421
    %v1958 = vpack.c.b16 %v1438, %v1430
    %v1959 = vpack.c.b16 %v1439, %v1431
    %v1960 = vpack.c.b16 %v1440, %v1432
    %v1961 = vpack.c.b16 %v1441, %v1433
    %v1962 = vpack.c.b16 %v1442, %v1434
    %v1963 = vpack.c.b16 %v1443, %v1435
    %v1964 = vpack.c.b16 %v1444, %v1436
    %v1965 = vpack.c.b16 %v1445, %v1437
    %v1966 = vpack.c.b16 %v1454, %v1446
    %v1967 = vpack.c.b16 %v1455, %v1447
    %v1968 = vpack.c.b16 %v1456, %v1448
    %v1969 = vpack.c.b16 %v1457, %v1449
    %v1970 = vpack.c.b16 %v1458, %v1450
    %v1971 = vpack.c.b16 %v1459, %v1451
    %v1972 = vpack.c.b16 %v1460, %v1452
    %v1973 = vpack.c.b16 %v1461, %v1453
    %v1974 = vpack.c.b16 %v1470, %v1462
    %v1975 = vpack.c.b16 %v1471, %v1463
    %v1976 = vpack.c.b16 %v1472, %v1464
    %v1977 = vpack.c.b16 %v1473, %v1465
    %v1978 = vpack.c.b16 %v1474, %v1466
    %v1979 = vpack.c.b16 %v1475, %v1467
    %v1980 = vpack.c.b16 %v1476, %v1468
    %v1981 = vpack.c.b16 %v1477, %v1469
    %v1982 = vpack.c.b16 %v1486, %v1478
    %v1983 = vpack.c.b16 %v1487, %v1479
    %v1984 = vpack.c.b16 %v1488, %v1480
    %v1985 = vpack.c.b16 %v1489, %v1481
    %v1986 = vpack.c.b16 %v1490, %v1482
    %v1987 = vpack.c.b16 %v1491, %v1483
    %v1988 = vpack.c.b16 %v1492, %v1484
    %v1989 = vpack.c.b16 %v1493, %v1485
    %v1990 = vpack.c.b16 %v1502, %v1494
    %v1991 = vpack.c.b16 %v1503, %v1495
    %v1992 = vpack.c.b16 %v1504, %v1496
    %v1993 = vpack.c.b16 %v1505, %v1497
    %v1994 = vpack.c.b16 %v1506, %v1498
    %v1995 = vpack.c.b16 %v1507, %v1499
    %v1996 = vpack.c.b16 %v1508, %v1500
    %v1997 = vpack.c.b16 %v1509, %v1501
    %v1998 = vpack.c.b16 %v1518, %v1510
    %v1999 = vpack.c.b16 %v1519, %v1511
    %v2000 = vpack.c.b16 %v1520, %v1512
    %v2001 = vpack.c.b16 %v1521, %v1513
    %v2002 = vpack.c.b16 %v1522, %v1514
    %v2003 = vpack.c.b16 %v1523, %v1515
    %v2004 = vpack.c.b16 %v1524, %v1516
    %v2005 = vpack.c.b16 %v1525, %v1517
    %v2006 = vpack.c.b16 %v1534, %v1526
    %v2007 = vpack.c.b16 %v1535, %v1527
    %v2008 = vpack.c.b16 %v1536, %v1528
    %v2009 = vpack.c.b16 %v1537, %v1529
    %v2010 = vpack.c.b16 %v1538, %v1530
    %v2011 = vpack.c.b16 %v1539, %v1531
    %v2012 = vpack.c.b16 %v1540, %v1532
    %v2013 = vpack.c.b16 %v1541, %v1533
    %v2014 = vpack.c.b16 %v1550, %v1542
    %v2015 = vpack.c.b16 %v1551, %v1543
    %v2016 = vpack.c.b16 %v1552, %v1544
    %v2017 = vpack.c.b16 %v1553, %v1545
    %v2018 = vpack.c.b16 %v1554, %v1546
    %v2019 = vpack.c.b16 %v1555, %v1547
    %v2020 = vpack.c.b16 %v1556, %v1548
    %v2021 = vpack.c.b16 %v1557, %v1549
    %v2022 = vpack.c.b16 %v1566, %v1558
    %v2023 = vpack.c.b16 %v1567, %v1559
    %v2024 = vpack.c.b16 %v1568, %v1560
    %v2025 = vpack.c.b16 %v1569, %v1561
    %v2026 = vpack.c.b16 %v1570, %v1562
    %v2027 = vpack.c.b16 %v1571, %v1563
    %v2028 = vpack.c.b16 %v1572, %v1564
    %v2029 = vpack.c.b16 %v1573, %v1565
    %v2030 = vpack.c.b16 %v1582, %v1574
    %v2031 = vpack.c.b16 %v1583, %v1575
    %v2032 = vpack.c.b16 %v1584, %v1576
    %v2033 = vpack.c.b16 %v1585, %v1577
    %v2034 = vpack.c.b16 %v1586, %v1578
    %v2035 = vpack.c.b16 %v1587, %v1579
    %v2036 = vpack.c.b16 %v1588, %v1580
    %v2037 = vpack.c.b16 %v1589, %v1581
    %v2038 = vpack.c.b16 %v1598, %v1590
    %v2039 = vpack.c.b16 %v1599, %v1591
    %v2040 = vpack.c.b16 %v1600, %v1592
    %v2041 = vpack.c.b16 %v1601, %v1593
    %v2042 = vpack.c.b16 %v1602, %v1594
    %v2043 = vpack.c.b16 %v1603, %v1595
    %v2044 = vpack.c.b16 %v1604, %v1596
    %v2045 = vpack.c.b16 %v1605, %v1597
    %v2046 = vpack.c.b16 %v1614, %v1606
    %v2047 = vpack.c.b16 %v1615, %v1607
    %v2048 = vpack.c.b16 %v1616, %v1608
    %v2049 = vpack.c.b16 %v1617, %v1609
    %v2050 = vpack.c.b16 %v1618, %v1610
    %v2051 = vpack.c.b16 %v1619, %v1611
    %v2052 = vpack.c.b16 %v1620, %v1612
    %v2053 = vpack.c.b16 %v1621, %v1613
    %v2054 = vpack.c.b16 %v1630, %v1622
    %v2055 = vpack.c.b16 %v1631, %v1623
    %v2056 = vpack.c.b16 %v1632, %v1624
    %v2057 = vpack.c.b16 %v1633, %v1625
    %v2058 = vpack.c.b16 %v1634, %v1626
    %v2059 = vpack.c.b16 %v1635, %v1627
    %v2060 = vpack.c.b16 %v1636, %v1628
    %v2061 = vpack.c.b16 %v1637, %v1629
    %v2062 = vpack.c.b16 %v1646, %v1638
    %v2063 = vpack.c.b16 %v1647, %v1639
    %v2064 = vpack.c.b16 %v1648, %v1640
    %v2065 = vpack.c.b16 %v1649, %v1641
    %v2066 = vpack.c.b16 %v1650, %v1642
    %v2067 = vpack.c.b16 %v1651, %v1643
    %v2068 = vpack.c.b16 %v1652, %v1644
    %v2069 = vpack.c.b16 %v1653, %v1645
    %v2070 = vpack.c.b16 %v1662, %v1654
    %v2071 = vpack.c.b16 %v1663, %v1655
    %v2072 = vpack.c.b16 %v1664, %v1656
    %v2073 = vpack.c.b16 %v1665, %v1657
    %v2074 = vpack.c.b16 %v1666, %v1658
    %v2075 = vpack.c.b16 %v1667, %v1659
    %v2076 = vpack.c.b16 %v1668, %v1660
    %v2077 = vpack.c.b16 %v1669, %v1661
    %v2078 = vpack.c.b16 %v1678, %v1670
    %v2079 = vpack.c.b16 %v1679, %v1671
    %v2080 = vpack.c.b16 %v1680, %v1672
    %v2081 = vpack.c.b16 %v1681, %v1673
    %v2082 = vpack.c.b16 %v1682, %v1674
    %v2083 = vpack.c.b16 %v1683, %v1675
    %v2084 = vpack.c.b16 %v1684, %v1676
    %v2085 = vpack.c.b16 %v1685, %v1677
    %v2086 = vpack.c.b16 %v1694, %v1686
    %v2087 = vpack.c.b16 %v1695, %v1687
    %v2088 = vpack.c.b16 %v1696, %v1688
    %v2089 = vpack.c.b16 %v1697, %v1689
    %v2090 = vpack.c.b16 %v1698, %v1690
    %v2091 = vpack.c.b16 %v1699, %v1691
    %v2092 = vpack.c.b16 %v1700, %v1692
    %v2093 = vpack.c.b16 %v1701, %v1693
    %v2094 = vpack.c.b16 %v1710, %v1702
    %v2095 = vpack.c.b16 %v1711, %v1703
    %v2096 = vpack.c.b16 %v1712, %v1704
    %v2097 = vpack.c.b16 %v1713, %v1705
    %v2098 = vpack.c.b16 %v1714, %v1706
    %v2099 = vpack.c.b16 %v1715, %v1707
    %v2100 = vpack.c.b16 %v1716, %v1708
    %v2101 = vpack.c.b16 %v1717, %v1709
    %2486 = vmatprep.subr.bf16.mxu0 %v1719
    %2487 = vmatpush1.bf16.msra.mxu0 %v1718
    %2488 = vmatprep.subr.bf16.mxu0 %v1727
    %2489 = vmatpush1.bf16.msra.mxu0 %v1726
    %2490 = vmatprep.subr.bf16.mxu0 %v1735
    %2491 = vmatpush1.bf16.msra.mxu0 %v1734
    %2492 = vmatprep.subr.bf16.mxu0 %v1743
    %2493 = vmatpush1.bf16.msra.mxu0 %v1742
    %2494 = vmatprep.subr.bf16.mxu0 %v1751
    %2495 = vmatpush1.bf16.msra.mxu0 %v1750
    %2496 = vmatprep.subr.bf16.mxu0 %v1759
    %2497 = vmatpush1.bf16.msra.mxu0 %v1758
    %2498 = vmatprep.subr.bf16.mxu0 %v1767
    %2499 = vmatpush1.bf16.msra.mxu0 %v1766
    %2500 = vmatprep.subr.bf16.mxu0 %v1775
    %2501 = vmatpush1.bf16.msra.mxu0 %v1774
    %2502 = vmatprep.subr.bf16.mxu0 %v1783
    %2503 = vmatpush1.bf16.msra.mxu0 %v1782
    %2504 = vmatprep.subr.bf16.mxu0 %v1791
    %2505 = vmatpush1.bf16.msra.mxu0 %v1790
    %2506 = vmatprep.subr.bf16.mxu0 %v1799
    %2507 = vmatpush1.bf16.msra.mxu0 %v1798
    %2508 = vmatprep.subr.bf16.mxu0 %v1807
    %2509 = vmatpush1.bf16.msra.mxu0 %v1806
    %2510 = vmatprep.subr.bf16.mxu0 %v1815
    %2511 = vmatpush1.bf16.msra.mxu0 %v1814
    %2512 = vmatprep.subr.bf16.mxu0 %v1823
    %2513 = vmatpush1.bf16.msra.mxu0 %v1822
    %2514 = vmatprep.subr.bf16.mxu0 %v1831
    %2515 = vmatpush1.bf16.msra.mxu0 %v1830
    %2516 = vmatprep.subr.bf16.mxu0 %v1839
    %2517 = vmatpush1.bf16.msra.mxu0 %v1838
    %2518 = vmatprep.mubr.bf16.mxu0 %v555
    %2519 = vmatmul.mubr.bf16.gmra.mrb[0].mxu0 %v554
    %v2520 = vpop.f32.mrb[0].mxu0
    %v2521 = vadd.f32 0.0, %v2520
    %v2522 = vpop.f32.mrb[0].mxu0
    %v2523 = vadd.f32 0.0, %v2522
    %v2524 = vpop.f32.mrb[0].mxu0
    %v2525 = vadd.f32 0.0, %v2524
    %v2526 = vpop.f32.mrb[0].mxu0
    %v2527 = vadd.f32 0.0, %v2526
    %2528 = vdwg.mxu0
    %2529 = vmatprep.subr.bf16.mxu0 %v1847
    %2530 = vmatpush1.bf16.msra.mxu0 %v1846
    %2531 = vmatprep.subr.bf16.mxu0 %v1855
    %2532 = vmatpush1.bf16.msra.mxu0 %v1854
    %2533 = vmatprep.subr.bf16.mxu0 %v1863
    %2534 = vmatpush1.bf16.msra.mxu0 %v1862
    %2535 = vmatprep.subr.bf16.mxu0 %v1871
    %2536 = vmatpush1.bf16.msra.mxu0 %v1870
    %2537 = vmatprep.subr.bf16.mxu0 %v1879
    %2538 = vmatpush1.bf16.msra.mxu0 %v1878
    %2539 = vmatprep.subr.bf16.mxu0 %v1887
    %2540 = vmatpush1.bf16.msra.mxu0 %v1886
    %2541 = vmatprep.subr.bf16.mxu0 %v1895
    %2542 = vmatpush1.bf16.msra.mxu0 %v1894
    %2543 = vmatprep.subr.bf16.mxu0 %v1903
    %2544 = vmatpush1.bf16.msra.mxu0 %v1902
    %2545 = vmatprep.subr.bf16.mxu0 %v1911
    %2546 = vmatpush1.bf16.msra.mxu0 %v1910
    %2547 = vmatprep.subr.bf16.mxu0 %v1919
    %2548 = vmatpush1.bf16.msra.mxu0 %v1918
    %2549 = vmatprep.subr.bf16.mxu0 %v1927
    %2550 = vmatpush1.bf16.msra.mxu0 %v1926
    %2551 = vmatprep.subr.bf16.mxu0 %v1935
    %2552 = vmatpush1.bf16.msra.mxu0 %v1934
    %2553 = vmatprep.subr.bf16.mxu0 %v1943
    %2554 = vmatpush1.bf16.msra.mxu0 %v1942
    %2555 = vmatprep.subr.bf16.mxu0 %v1951
    %2556 = vmatpush1.bf16.msra.mxu0 %v1950
    %2557 = vmatprep.subr.bf16.mxu0 %v1959
    %2558 = vmatpush1.bf16.msra.mxu0 %v1958
    %2559 = vmatprep.subr.bf16.mxu0 %v1967
    %2560 = vmatpush1.bf16.msra.mxu0 %v1966
    %2561 = vmatprep.mubr.bf16.mxu0 %v557
    %2562 = vmatmul.mubr.bf16.gmra.mrb[0].mxu0 %v556
    %v2563 = vpop.f32.mrb[0].mxu0
    %v2564 = vadd.f32 %v2521, %v2563
    %v2565 = vpop.f32.mrb[0].mxu0
    %v2566 = vadd.f32 %v2523, %v2565
    %v2567 = vpop.f32.mrb[0].mxu0
    %v2568 = vadd.f32 %v2525, %v2567
    %v2569 = vpop.f32.mrb[0].mxu0
    %v2570 = vadd.f32 %v2527, %v2569
    %2571 = vdwg.mxu0
    %2572 = vmatprep.subr.bf16.mxu0 %v1975
    %2573 = vmatpush1.bf16.msra.mxu0 %v1974
    %2574 = vmatprep.subr.bf16.mxu0 %v1983
    %2575 = vmatpush1.bf16.msra.mxu0 %v1982
    %2576 = vmatprep.subr.bf16.mxu0 %v1991
    %2577 = vmatpush1.bf16.msra.mxu0 %v1990
    %2578 = vmatprep.subr.bf16.mxu0 %v1999
    %2579 = vmatpush1.bf16.msra.mxu0 %v1998
    %2580 = vmatprep.subr.bf16.mxu0 %v2007
    %2581 = vmatpush1.bf16.msra.mxu0 %v2006
    %2582 = vmatprep.subr.bf16.mxu0 %v2015
    %2583 = vmatpush1.bf16.msra.mxu0 %v2014
    %2584 = vmatprep.subr.bf16.mxu0 %v2023
    %2585 = vmatpush1.bf16.msra.mxu0 %v2022
    %2586 = vmatprep.subr.bf16.mxu0 %v2031
    %2587 = vmatpush1.bf16.msra.mxu0 %v2030
    %2588 = vmatprep.subr.bf16.mxu0 %v2039
    %2589 = vmatpush1.bf16.msra.mxu0 %v2038
    %2590 = vmatprep.subr.bf16.mxu0 %v2047
    %2591 = vmatpush1.bf16.msra.mxu0 %v2046
    %2592 = vmatprep.subr.bf16.mxu0 %v2055
    %2593 = vmatpush1.bf16.msra.mxu0 %v2054
    %2594 = vmatprep.subr.bf16.mxu0 %v2063
    %2595 = vmatpush1.bf16.msra.mxu0 %v2062
    %2596 = vmatprep.subr.bf16.mxu0 %v2071
    %2597 = vmatpush1.bf16.msra.mxu0 %v2070
    %2598 = vmatprep.subr.bf16.mxu0 %v2079
    %2599 = vmatpush1.bf16.msra.mxu0 %v2078
    %2600 = vmatprep.subr.bf16.mxu0 %v2087
    %2601 = vmatpush1.bf16.msra.mxu0 %v2086
    %2602 = vmatprep.subr.bf16.mxu0 %v2095
    %2603 = vmatpush1.bf16.msra.mxu0 %v2094
    %2604 = vmatprep.mubr.bf16.mxu0 %v559
    %2605 = vmatmul.mubr.bf16.gmra.mrb[0].mxu0 %v558
    %v2606 = vpop.f32.mrb[0].mxu0
    %v2607 = vadd.f32 %v2564, %v2606
    %v2608 = vpop.f32.mrb[0].mxu0
    %v2609 = vadd.f32 %v2566, %v2608
    %v2610 = vpop.f32.mrb[0].mxu0
    %v2611 = vadd.f32 %v2568, %v2610
    %v2612 = vpop.f32.mrb[0].mxu0
    %v2613 = vadd.f32 %v2570, %v2612
    %2614 = vdwg.mxu0
    %2615 = vmatprep.subr.bf16.mxu0 %v1721
    %2616 = vmatpush1.bf16.msra.mxu0 %v1720
    %2617 = vmatprep.subr.bf16.mxu0 %v1729
    %2618 = vmatpush1.bf16.msra.mxu0 %v1728
    %2619 = vmatprep.subr.bf16.mxu0 %v1737
    %2620 = vmatpush1.bf16.msra.mxu0 %v1736
    %2621 = vmatprep.subr.bf16.mxu0 %v1745
    %2622 = vmatpush1.bf16.msra.mxu0 %v1744
    %2623 = vmatprep.subr.bf16.mxu0 %v1753
    %2624 = vmatpush1.bf16.msra.mxu0 %v1752
    %2625 = vmatprep.subr.bf16.mxu0 %v1761
    %2626 = vmatpush1.bf16.msra.mxu0 %v1760
    %2627 = vmatprep.subr.bf16.mxu0 %v1769
    %2628 = vmatpush1.bf16.msra.mxu0 %v1768
    %2629 = vmatprep.subr.bf16.mxu0 %v1777
    %2630 = vmatpush1.bf16.msra.mxu0 %v1776
    %2631 = vmatprep.subr.bf16.mxu0 %v1785
    %2632 = vmatpush1.bf16.msra.mxu0 %v1784
    %2633 = vmatprep.subr.bf16.mxu0 %v1793
    %2634 = vmatpush1.bf16.msra.mxu0 %v1792
    %2635 = vmatprep.subr.bf16.mxu0 %v1801
    %2636 = vmatpush1.bf16.msra.mxu0 %v1800
    %2637 = vmatprep.subr.bf16.mxu0 %v1809
    %2638 = vmatpush1.bf16.msra.mxu0 %v1808
    %2639 = vmatprep.subr.bf16.mxu0 %v1817
    %2640 = vmatpush1.bf16.msra.mxu0 %v1816
    %2641 = vmatprep.subr.bf16.mxu0 %v1825
    %2642 = vmatpush1.bf16.msra.mxu0 %v1824
    %2643 = vmatprep.subr.bf16.mxu0 %v1833
    %2644 = vmatpush1.bf16.msra.mxu0 %v1832
    %2645 = vmatprep.subr.bf16.mxu0 %v1841
    %2646 = vmatpush1.bf16.msra.mxu0 %v1840
    %2647 = vmatprep.mubr.bf16.mxu0 %v555
    %2648 = vmatmul.mubr.bf16.gmra.mrb[0].mxu0 %v554
    %v2649 = vpop.f32.mrb[0].mxu0
    %v2650 = vadd.f32 0.0, %v2649
    %v2651 = vpop.f32.mrb[0].mxu0
    %v2652 = vadd.f32 0.0, %v2651
    %v2653 = vpop.f32.mrb[0].mxu0
    %v2654 = vadd.f32 0.0, %v2653
    %v2655 = vpop.f32.mrb[0].mxu0
    %v2656 = vadd.f32 0.0, %v2655
    %2657 = vdwg.mxu0
    %2658 = vmatprep.subr.bf16.mxu0 %v1849
    %2659 = vmatpush1.bf16.msra.mxu0 %v1848
    %2660 = vmatprep.subr.bf16.mxu0 %v1857
    %2661 = vmatpush1.bf16.msra.mxu0 %v1856
    %2662 = vmatprep.subr.bf16.mxu0 %v1865
    %2663 = vmatpush1.bf16.msra.mxu0 %v1864
    %2664 = vmatprep.subr.bf16.mxu0 %v1873
    %2665 = vmatpush1.bf16.msra.mxu0 %v1872
    %2666 = vmatprep.subr.bf16.mxu0 %v1881
    %2667 = vmatpush1.bf16.msra.mxu0 %v1880
    %2668 = vmatprep.subr.bf16.mxu0 %v1889
    %2669 = vmatpush1.bf16.msra.mxu0 %v1888
    %2670 = vmatprep.subr.bf16.mxu0 %v1897
    %2671 = vmatpush1.bf16.msra.mxu0 %v1896
    %2672 = vmatprep.subr.bf16.mxu0 %v1905
    %2673 = vmatpush1.bf16.msra.mxu0 %v1904
    %2674 = vmatprep.subr.bf16.mxu0 %v1913
    %2675 = vmatpush1.bf16.msra.mxu0 %v1912
    %2676 = vmatprep.subr.bf16.mxu0 %v1921
    %2677 = vmatpush1.bf16.msra.mxu0 %v1920
    %2678 = vmatprep.subr.bf16.mxu0 %v1929
    %2679 = vmatpush1.bf16.msra.mxu0 %v1928
    %2680 = vmatprep.subr.bf16.mxu0 %v1937
    %2681 = vmatpush1.bf16.msra.mxu0 %v1936
    %2682 = vmatprep.subr.bf16.mxu0 %v1945
    %2683 = vmatpush1.bf16.msra.mxu0 %v1944
    %2684 = vmatprep.subr.bf16.mxu0 %v1953
    %2685 = vmatpush1.bf16.msra.mxu0 %v1952
    %2686 = vmatprep.subr.bf16.mxu0 %v1961
    %2687 = vmatpush1.bf16.msra.mxu0 %v1960
    %2688 = vmatprep.subr.bf16.mxu0 %v1969
    %2689 = vmatpush1.bf16.msra.mxu0 %v1968
    %2690 = vmatprep.mubr.bf16.mxu0 %v557
    %2691 = vmatmul.mubr.bf16.gmra.mrb[0].mxu0 %v556
    %v2692 = vpop.f32.mrb[0].mxu0
    %v2693 = vadd.f32 %v2650, %v2692
    %v2694 = vpop.f32.mrb[0].mxu0
    %v2695 = vadd.f32 %v2652, %v2694
    %v2696 = vpop.f32.mrb[0].mxu0
    %v2697 = vadd.f32 %v2654, %v2696
    %v2698 = vpop.f32.mrb[0].mxu0
    %v2699 = vadd.f32 %v2656, %v2698
    %2700 = vdwg.mxu0
    %2701 = vmatprep.subr.bf16.mxu0 %v1977
    %2702 = vmatpush1.bf16.msra.mxu0 %v1976
    %2703 = vmatprep.subr.bf16.mxu0 %v1985
    %2704 = vmatpush1.bf16.msra.mxu0 %v1984
    %2705 = vmatprep.subr.bf16.mxu0 %v1993
    %2706 = vmatpush1.bf16.msra.mxu0 %v1992
    %2707 = vmatprep.subr.bf16.mxu0 %v2001
    %2708 = vmatpush1.bf16.msra.mxu0 %v2000
    %2709 = vmatprep.subr.bf16.mxu0 %v2009
    %2710 = vmatpush1.bf16.msra.mxu0 %v2008
    %2711 = vmatprep.subr.bf16.mxu0 %v2017
    %2712 = vmatpush1.bf16.msra.mxu0 %v2016
    %2713 = vmatprep.subr.bf16.mxu0 %v2025
    %2714 = vmatpush1.bf16.msra.mxu0 %v2024
    %2715 = vmatprep.subr.bf16.mxu0 %v2033
    %2716 = vmatpush1.bf16.msra.mxu0 %v2032
    %2717 = vmatprep.subr.bf16.mxu0 %v2041
    %2718 = vmatpush1.bf16.msra.mxu0 %v2040
    %2719 = vmatprep.subr.bf16.mxu0 %v2049
    %2720 = vmatpush1.bf16.msra.mxu0 %v2048
    %2721 = vmatprep.subr.bf16.mxu0 %v2057
    %2722 = vmatpush1.bf16.msra.mxu0 %v2056
    %2723 = vmatprep.subr.bf16.mxu0 %v2065
    %2724 = vmatpush1.bf16.msra.mxu0 %v2064
    %2725 = vmatprep.subr.bf16.mxu0 %v2073
    %2726 = vmatpush1.bf16.msra.mxu0 %v2072
    %2727 = vmatprep.subr.bf16.mxu0 %v2081
    %2728 = vmatpush1.bf16.msra.mxu0 %v2080
    %2729 = vmatprep.subr.bf16.mxu0 %v2089
    %2730 = vmatpush1.bf16.msra.mxu0 %v2088
    %2731 = vmatprep.subr.bf16.mxu0 %v2097
    %2732 = vmatpush1.bf16.msra.mxu0 %v2096
    %2733 = vmatprep.mubr.bf16.mxu0 %v559
    %2734 = vmatmul.mubr.bf16.gmra.mrb[0].mxu0 %v558
    %v2735 = vpop.f32.mrb[0].mxu0
    %v2736 = vadd.f32 %v2693, %v2735
    %v2737 = vpop.f32.mrb[0].mxu0
    %v2738 = vadd.f32 %v2695, %v2737
    %v2739 = vpop.f32.mrb[0].mxu0
    %v2740 = vadd.f32 %v2697, %v2739
    %v2741 = vpop.f32.mrb[0].mxu0
    %v2742 = vadd.f32 %v2699, %v2741
    %2743 = vdwg.mxu0
    %2744 = vmatprep.subr.bf16.mxu0 %v1723
    %2745 = vmatpush1.bf16.msra.mxu0 %v1722
    %2746 = vmatprep.subr.bf16.mxu0 %v1731
    %2747 = vmatpush1.bf16.msra.mxu0 %v1730
    %2748 = vmatprep.subr.bf16.mxu0 %v1739
    %2749 = vmatpush1.bf16.msra.mxu0 %v1738
    %2750 = vmatprep.subr.bf16.mxu0 %v1747
    %2751 = vmatpush1.bf16.msra.mxu0 %v1746
    %2752 = vmatprep.subr.bf16.mxu0 %v1755
    %2753 = vmatpush1.bf16.msra.mxu0 %v1754
    %2754 = vmatprep.subr.bf16.mxu0 %v1763
    %2755 = vmatpush1.bf16.msra.mxu0 %v1762
    %2756 = vmatprep.subr.bf16.mxu0 %v1771
    %2757 = vmatpush1.bf16.msra.mxu0 %v1770
    %2758 = vmatprep.subr.bf16.mxu0 %v1779
    %2759 = vmatpush1.bf16.msra.mxu0 %v1778
    %2760 = vmatprep.subr.bf16.mxu0 %v1787
    %2761 = vmatpush1.bf16.msra.mxu0 %v1786
    %2762 = vmatprep.subr.bf16.mxu0 %v1795
    %2763 = vmatpush1.bf16.msra.mxu0 %v1794
    %2764 = vmatprep.subr.bf16.mxu0 %v1803
    %2765 = vmatpush1.bf16.msra.mxu0 %v1802
    %2766 = vmatprep.subr.bf16.mxu0 %v1811
    %2767 = vmatpush1.bf16.msra.mxu0 %v1810
    %2768 = vmatprep.subr.bf16.mxu0 %v1819
    %2769 = vmatpush1.bf16.msra.mxu0 %v1818
    %2770 = vmatprep.subr.bf16.mxu0 %v1827
    %2771 = vmatpush1.bf16.msra.mxu0 %v1826
    %2772 = vmatprep.subr.bf16.mxu0 %v1835
    %2773 = vmatpush1.bf16.msra.mxu0 %v1834
    %2774 = vmatprep.subr.bf16.mxu0 %v1843
    %2775 = vmatpush1.bf16.msra.mxu0 %v1842
    %2776 = vmatprep.mubr.bf16.mxu0 %v555
    %2777 = vmatmul.mubr.bf16.gmra.mrb[0].mxu0 %v554
    %v2778 = vpop.f32.mrb[0].mxu0
    %v2779 = vadd.f32 0.0, %v2778
    %v2780 = vpop.f32.mrb[0].mxu0
    %v2781 = vadd.f32 0.0, %v2780
    %v2782 = vpop.f32.mrb[0].mxu0
    %v2783 = vadd.f32 0.0, %v2782
    %v2784 = vpop.f32.mrb[0].mxu0
    %v2785 = vadd.f32 0.0, %v2784
    %2786 = vdwg.mxu0
    %2787 = vmatprep.subr.bf16.mxu0 %v1851
    %2788 = vmatpush1.bf16.msra.mxu0 %v1850
    %2789 = vmatprep.subr.bf16.mxu0 %v1859
    %2790 = vmatpush1.bf16.msra.mxu0 %v1858
    %2791 = vmatprep.subr.bf16.mxu0 %v1867
    %2792 = vmatpush1.bf16.msra.mxu0 %v1866
    %2793 = vmatprep.subr.bf16.mxu0 %v1875
    %2794 = vmatpush1.bf16.msra.mxu0 %v1874
    %2795 = vmatprep.subr.bf16.mxu0 %v1883
    %2796 = vmatpush1.bf16.msra.mxu0 %v1882
    %2797 = vmatprep.subr.bf16.mxu0 %v1891
    %2798 = vmatpush1.bf16.msra.mxu0 %v1890
    %2799 = vmatprep.subr.bf16.mxu0 %v1899
    %2800 = vmatpush1.bf16.msra.mxu0 %v1898
    %2801 = vmatprep.subr.bf16.mxu0 %v1907
    %2802 = vmatpush1.bf16.msra.mxu0 %v1906
    %2803 = vmatprep.subr.bf16.mxu0 %v1915
    %2804 = vmatpush1.bf16.msra.mxu0 %v1914
    %2805 = vmatprep.subr.bf16.mxu0 %v1923
    %2806 = vmatpush1.bf16.msra.mxu0 %v1922
    %2807 = vmatprep.subr.bf16.mxu0 %v1931
    %2808 = vmatpush1.bf16.msra.mxu0 %v1930
    %2809 = vmatprep.subr.bf16.mxu0 %v1939
    %2810 = vmatpush1.bf16.msra.mxu0 %v1938
    %2811 = vmatprep.subr.bf16.mxu0 %v1947
    %2812 = vmatpush1.bf16.msra.mxu0 %v1946
    %2813 = vmatprep.subr.bf16.mxu0 %v1955
    %2814 = vmatpush1.bf16.msra.mxu0 %v1954
    %2815 = vmatprep.subr.bf16.mxu0 %v1963
    %2816 = vmatpush1.bf16.msra.mxu0 %v1962
    %2817 = vmatprep.subr.bf16.mxu0 %v1971
    %2818 = vmatpush1.bf16.msra.mxu0 %v1970
    %2819 = vmatprep.mubr.bf16.mxu0 %v557
    %2820 = vmatmul.mubr.bf16.gmra.mrb[0].mxu0 %v556
    %v2821 = vpop.f32.mrb[0].mxu0
    %v2822 = vadd.f32 %v2779, %v2821
    %v2823 = vpop.f32.mrb[0].mxu0
    %v2824 = vadd.f32 %v2781, %v2823
    %v2825 = vpop.f32.mrb[0].mxu0
    %v2826 = vadd.f32 %v2783, %v2825
    %v2827 = vpop.f32.mrb[0].mxu0
    %v2828 = vadd.f32 %v2785, %v2827
    %2829 = vdwg.mxu0
    %2830 = vmatprep.subr.bf16.mxu0 %v1979
    %2831 = vmatpush1.bf16.msra.mxu0 %v1978
    %2832 = vmatprep.subr.bf16.mxu0 %v1987
    %2833 = vmatpush1.bf16.msra.mxu0 %v1986
    %2834 = vmatprep.subr.bf16.mxu0 %v1995
    %2835 = vmatpush1.bf16.msra.mxu0 %v1994
    %2836 = vmatprep.subr.bf16.mxu0 %v2003
    %2837 = vmatpush1.bf16.msra.mxu0 %v2002
    %2838 = vmatprep.subr.bf16.mxu0 %v2011
    %2839 = vmatpush1.bf16.msra.mxu0 %v2010
    %2840 = vmatprep.subr.bf16.mxu0 %v2019
    %2841 = vmatpush1.bf16.msra.mxu0 %v2018
    %2842 = vmatprep.subr.bf16.mxu0 %v2027
    %2843 = vmatpush1.bf16.msra.mxu0 %v2026
    %2844 = vmatprep.subr.bf16.mxu0 %v2035
    %2845 = vmatpush1.bf16.msra.mxu0 %v2034
    %2846 = vmatprep.subr.bf16.mxu0 %v2043
    %2847 = vmatpush1.bf16.msra.mxu0 %v2042
    %2848 = vmatprep.subr.bf16.mxu0 %v2051
    %2849 = vmatpush1.bf16.msra.mxu0 %v2050
    %2850 = vmatprep.subr.bf16.mxu0 %v2059
    %2851 = vmatpush1.bf16.msra.mxu0 %v2058
    %2852 = vmatprep.subr.bf16.mxu0 %v2067
    %2853 = vmatpush1.bf16.msra.mxu0 %v2066
    %2854 = vmatprep.subr.bf16.mxu0 %v2075
    %2855 = vmatpush1.bf16.msra.mxu0 %v2074
    %2856 = vmatprep.subr.bf16.mxu0 %v2083
    %2857 = vmatpush1.bf16.msra.mxu0 %v2082
    %2858 = vmatprep.subr.bf16.mxu0 %v2091
    %2859 = vmatpush1.bf16.msra.mxu0 %v2090
    %2860 = vmatprep.subr.bf16.mxu0 %v2099
    %2861 = vmatpush1.bf16.msra.mxu0 %v2098
    %2862 = vmatprep.mubr.bf16.mxu0 %v559
    %2863 = vmatmul.mubr.bf16.gmra.mrb[0].mxu0 %v558
    %v2864 = vpop.f32.mrb[0].mxu0
    %v2865 = vadd.f32 %v2822, %v2864
    %v2866 = vpop.f32.mrb[0].mxu0
    %v2867 = vadd.f32 %v2824, %v2866
    %v2868 = vpop.f32.mrb[0].mxu0
    %v2869 = vadd.f32 %v2826, %v2868
    %v2870 = vpop.f32.mrb[0].mxu0
    %v2871 = vadd.f32 %v2828, %v2870
    %2872 = vdwg.mxu0
    %2873 = vmatprep.subr.bf16.mxu0 %v1725
    %2874 = vmatpush1.bf16.msra.mxu0 %v1724
    %2875 = vmatprep.subr.bf16.mxu0 %v1733
    %2876 = vmatpush1.bf16.msra.mxu0 %v1732
    %2877 = vmatprep.subr.bf16.mxu0 %v1741
    %2878 = vmatpush1.bf16.msra.mxu0 %v1740
    %2879 = vmatprep.subr.bf16.mxu0 %v1749
    %2880 = vmatpush1.bf16.msra.mxu0 %v1748
    %2881 = vmatprep.subr.bf16.mxu0 %v1757
    %2882 = vmatpush1.bf16.msra.mxu0 %v1756
    %2883 = vmatprep.subr.bf16.mxu0 %v1765
    %2884 = vmatpush1.bf16.msra.mxu0 %v1764
    %2885 = vmatprep.subr.bf16.mxu0 %v1773
    %2886 = vmatpush1.bf16.msra.mxu0 %v1772
    %2887 = vmatprep.subr.bf16.mxu0 %v1781
    %2888 = vmatpush1.bf16.msra.mxu0 %v1780
    %2889 = vmatprep.subr.bf16.mxu0 %v1789
    %2890 = vmatpush1.bf16.msra.mxu0 %v1788
    %2891 = vmatprep.subr.bf16.mxu0 %v1797
    %2892 = vmatpush1.bf16.msra.mxu0 %v1796
    %2893 = vmatprep.subr.bf16.mxu0 %v1805
    %2894 = vmatpush1.bf16.msra.mxu0 %v1804
    %2895 = vmatprep.subr.bf16.mxu0 %v1813
    %2896 = vmatpush1.bf16.msra.mxu0 %v1812
    %2897 = vmatprep.subr.bf16.mxu0 %v1821
    %2898 = vmatpush1.bf16.msra.mxu0 %v1820
    %2899 = vmatprep.subr.bf16.mxu0 %v1829
    %2900 = vmatpush1.bf16.msra.mxu0 %v1828
    %2901 = vmatprep.subr.bf16.mxu0 %v1837
    %2902 = vmatpush1.bf16.msra.mxu0 %v1836
    %2903 = vmatprep.subr.bf16.mxu0 %v1845
    %2904 = vmatpush1.bf16.msra.mxu0 %v1844
    %2905 = vmatprep.mubr.bf16.mxu0 %v555
    %2906 = vmatmul.mubr.bf16.gmra.mrb[0].mxu0 %v554
    %v2907 = vpop.f32.mrb[0].mxu0
    %v2908 = vadd.f32 0.0, %v2907
    %v2909 = vpop.f32.mrb[0].mxu0
    %v2910 = vadd.f32 0.0, %v2909
    %v2911 = vpop.f32.mrb[0].mxu0
    %v2912 = vadd.f32 0.0, %v2911
    %v2913 = vpop.f32.mrb[0].mxu0
    %v2914 = vadd.f32 0.0, %v2913
    %2915 = vdwg.mxu0
    %2916 = vmatprep.subr.bf16.mxu0 %v1853
    %2917 = vmatpush1.bf16.msra.mxu0 %v1852
    %2918 = vmatprep.subr.bf16.mxu0 %v1861
    %2919 = vmatpush1.bf16.msra.mxu0 %v1860
    %2920 = vmatprep.subr.bf16.mxu0 %v1869
    %2921 = vmatpush1.bf16.msra.mxu0 %v1868
    %2922 = vmatprep.subr.bf16.mxu0 %v1877
    %2923 = vmatpush1.bf16.msra.mxu0 %v1876
    %2924 = vmatprep.subr.bf16.mxu0 %v1885
    %2925 = vmatpush1.bf16.msra.mxu0 %v1884
    %2926 = vmatprep.subr.bf16.mxu0 %v1893
    %2927 = vmatpush1.bf16.msra.mxu0 %v1892
    %2928 = vmatprep.subr.bf16.mxu0 %v1901
    %2929 = vmatpush1.bf16.msra.mxu0 %v1900
    %2930 = vmatprep.subr.bf16.mxu0 %v1909
    %2931 = vmatpush1.bf16.msra.mxu0 %v1908
    %2932 = vmatprep.subr.bf16.mxu0 %v1917
    %2933 = vmatpush1.bf16.msra.mxu0 %v1916
    %2934 = vmatprep.subr.bf16.mxu0 %v1925
    %2935 = vmatpush1.bf16.msra.mxu0 %v1924
    %2936 = vmatprep.subr.bf16.mxu0 %v1933
    %2937 = vmatpush1.bf16.msra.mxu0 %v1932
    %2938 = vmatprep.subr.bf16.mxu0 %v1941
    %2939 = vmatpush1.bf16.msra.mxu0 %v1940
    %2940 = vmatprep.subr.bf16.mxu0 %v1949
    %2941 = vmatpush1.bf16.msra.mxu0 %v1948
    %2942 = vmatprep.subr.bf16.mxu0 %v1957
    %2943 = vmatpush1.bf16.msra.mxu0 %v1956
    %2944 = vmatprep.subr.bf16.mxu0 %v1965
    %2945 = vmatpush1.bf16.msra.mxu0 %v1964
    %2946 = vmatprep.subr.bf16.mxu0 %v1973
    %2947 = vmatpush1.bf16.msra.mxu0 %v1972
    %2948 = vmatprep.mubr.bf16.mxu0 %v557
    %2949 = vmatmul.mubr.bf16.gmra.mrb[0].mxu0 %v556
    %v2950 = vpop.f32.mrb[0].mxu0
    %v2951 = vadd.f32 %v2908, %v2950
    %v2952 = vpop.f32.mrb[0].mxu0
    %v2953 = vadd.f32 %v2910, %v2952
    %v2954 = vpop.f32.mrb[0].mxu0
    %v2955 = vadd.f32 %v2912, %v2954
    %v2956 = vpop.f32.mrb[0].mxu0
    %v2957 = vadd.f32 %v2914, %v2956
    %2958 = vdwg.mxu0
    %2959 = vmatprep.subr.bf16.mxu0 %v1981
    %2960 = vmatpush1.bf16.msra.mxu0 %v1980
    %2961 = vmatprep.subr.bf16.mxu0 %v1989
    %2962 = vmatpush1.bf16.msra.mxu0 %v1988
    %2963 = vmatprep.subr.bf16.mxu0 %v1997
    %2964 = vmatpush1.bf16.msra.mxu0 %v1996
    %2965 = vmatprep.subr.bf16.mxu0 %v2005
    %2966 = vmatpush1.bf16.msra.mxu0 %v2004
    %2967 = vmatprep.subr.bf16.mxu0 %v2013
    %2968 = vmatpush1.bf16.msra.mxu0 %v2012
    %2969 = vmatprep.subr.bf16.mxu0 %v2021
    %2970 = vmatpush1.bf16.msra.mxu0 %v2020
    %2971 = vmatprep.subr.bf16.mxu0 %v2029
    %2972 = vmatpush1.bf16.msra.mxu0 %v2028
    %2973 = vmatprep.subr.bf16.mxu0 %v2037
    %2974 = vmatpush1.bf16.msra.mxu0 %v2036
    %2975 = vmatprep.subr.bf16.mxu0 %v2045
    %2976 = vmatpush1.bf16.msra.mxu0 %v2044
    %2977 = vmatprep.subr.bf16.mxu0 %v2053
    %2978 = vmatpush1.bf16.msra.mxu0 %v2052
    %2979 = vmatprep.subr.bf16.mxu0 %v2061
    %2980 = vmatpush1.bf16.msra.mxu0 %v2060
    %2981 = vmatprep.subr.bf16.mxu0 %v2069
    %2982 = vmatpush1.bf16.msra.mxu0 %v2068
    %2983 = vmatprep.subr.bf16.mxu0 %v2077
    %2984 = vmatpush1.bf16.msra.mxu0 %v2076
    %2985 = vmatprep.subr.bf16.mxu0 %v2085
    %2986 = vmatpush1.bf16.msra.mxu0 %v2084
    %2987 = vmatprep.subr.bf16.mxu0 %v2093
    %2988 = vmatpush1.bf16.msra.mxu0 %v2092
    %2989 = vmatprep.subr.bf16.mxu0 %v2101
    %2990 = vmatpush1.bf16.msra.mxu0 %v2100
    %2991 = vmatprep.mubr.bf16.mxu0 %v559
    %2992 = vmatmul.mubr.bf16.gmra.mrb[0].mxu0 %v558
    %v2993 = vpop.f32.mrb[0].mxu0
    %v2994 = vadd.f32 %v2951, %v2993
    %v2995 = vpop.f32.mrb[0].mxu0
    %v2996 = vadd.f32 %v2953, %v2995
    %v2997 = vpop.f32.mrb[0].mxu0
    %v2998 = vadd.f32 %v2955, %v2997
    %v2999 = vpop.f32.mrb[0].mxu0
    %v3000 = vadd.f32 %v2957, %v2999
    %3001 = vdwg.mxu0
    %v3002 = vld [vmem:[#allocation7] sm:$0xff]
    %v3004 = vlaneseq
    %v3005 = vshrl.u32 %v3004, 7
    %v3006 = vsub.s32 0, %v3005
    %v3007 = vrot.slane %v3002, %v3006
    %v3008 = vlaneseq
    %v3009 = vshrl.u32 %v3008, 7
    %v3010 = vsub.s32 1, %v3009
    %v3011 = vrot.slane %v3002, %v3010
    %v3012 = vlaneseq
    %v3013 = vshrl.u32 %v3012, 7
    %v3014 = vsub.s32 2, %v3013
    %v3015 = vrot.slane %v3002, %v3014
    %v3016 = vlaneseq
    %v3017 = vshrl.u32 %v3016, 7
    %v3018 = vsub.s32 3, %v3017
    %v3019 = vrot.slane %v3002, %v3018
    %v3020 = vlaneseq
    %v3021 = vshrl.u32 %v3020, 7
    %v3022 = vsub.s32 4, %v3021
    %v3023 = vrot.slane %v3002, %v3022
    %v3024 = vlaneseq
    %v3025 = vshrl.u32 %v3024, 7
    %v3026 = vsub.s32 5, %v3025
    %v3027 = vrot.slane %v3002, %v3026
    %v3028 = vlaneseq
    %v3029 = vshrl.u32 %v3028, 7
    %v3030 = vsub.s32 6, %v3029
    %v3031 = vrot.slane %v3002, %v3030
    %v3032 = vlaneseq
    %v3033 = vshrl.u32 %v3032, 7
    %v3034 = vsub.s32 7, %v3033
    %v3035 = vrot.slane %v3002, %v3034
    %v3044 = vmul.f32 %v2607, %v3007
    %v3045 = vmul.f32 %v2609, %v3011
    %v3046 = vmul.f32 %v2736, %v3015
    %v3047 = vmul.f32 %v2738, %v3019
    %v3048 = vmul.f32 %v2865, %v3023
    %v3049 = vmul.f32 %v2867, %v3027
    %v3050 = vmul.f32 %v2994, %v3031
    %v3051 = vmul.f32 %v2996, %v3035
    %v3052 = vmul.f32 %v2611, %v3007
    %v3053 = vmul.f32 %v2613, %v3011
    %v3054 = vmul.f32 %v2740, %v3015
    %v3055 = vmul.f32 %v2742, %v3019
    %v3056 = vmul.f32 %v2869, %v3023
    %v3057 = vmul.f32 %v2871, %v3027
    %v3058 = vmul.f32 %v2998, %v3031
    %v3059 = vmul.f32 %v3000, %v3035
    %v3060 = vld [vmem:[#allocation8] sm:$0xff]
    %v3062 = vlaneseq
    %v3063 = vshrl.u32 %v3062, 7
    %v3064 = vsub.s32 0, %v3063
    %v3065 = vrot.slane %v3060, %v3064
    %v3066 = vlaneseq
    %v3067 = vshrl.u32 %v3066, 7
    %v3068 = vsub.s32 1, %v3067
    %v3069 = vrot.slane %v3060, %v3068
    %v3070 = vlaneseq
    %v3071 = vshrl.u32 %v3070, 7
    %v3072 = vsub.s32 2, %v3071
    %v3073 = vrot.slane %v3060, %v3072
    %v3074 = vlaneseq
    %v3075 = vshrl.u32 %v3074, 7
    %v3076 = vsub.s32 3, %v3075
    %v3077 = vrot.slane %v3060, %v3076
    %v3078 = vlaneseq
    %v3079 = vshrl.u32 %v3078, 7
    %v3080 = vsub.s32 4, %v3079
    %v3081 = vrot.slane %v3060, %v3080
    %v3082 = vlaneseq
    %v3083 = vshrl.u32 %v3082, 7
    %v3084 = vsub.s32 5, %v3083
    %v3085 = vrot.slane %v3060, %v3084
    %v3086 = vlaneseq
    %v3087 = vshrl.u32 %v3086, 7
    %v3088 = vsub.s32 6, %v3087
    %v3089 = vrot.slane %v3060, %v3088
    %v3090 = vlaneseq
    %v3091 = vshrl.u32 %v3090, 7
    %v3092 = vsub.s32 7, %v3091
    %v3093 = vrot.slane %v3060, %v3092
    %v3102 = vadd.f32 %v3044, %v3065
    %v3103 = vadd.f32 %v3045, %v3069
    %v3104 = vadd.f32 %v3046, %v3073
    %v3105 = vadd.f32 %v3047, %v3077
    %v3106 = vadd.f32 %v3048, %v3081
    %v3107 = vadd.f32 %v3049, %v3085
    %v3108 = vadd.f32 %v3050, %v3089
    %v3109 = vadd.f32 %v3051, %v3093
    %v3110 = vadd.f32 %v3052, %v3065
    %v3111 = vadd.f32 %v3053, %v3069
    %v3112 = vadd.f32 %v3054, %v3073
    %v3113 = vadd.f32 %v3055, %v3077
    %v3114 = vadd.f32 %v3056, %v3081
    %v3115 = vadd.f32 %v3057, %v3085
    %v3116 = vadd.f32 %v3058, %v3089
    %v3117 = vadd.f32 %v3059, %v3093
    %v3118 = vmax.f32 %v3102, 0.0
    %v3119 = vmax.f32 %v3103, 0.0
    %v3120 = vmax.f32 %v3104, 0.0
    %v3121 = vmax.f32 %v3105, 0.0
    %v3122 = vmax.f32 %v3106, 0.0
    %v3123 = vmax.f32 %v3107, 0.0
    %v3124 = vmax.f32 %v3108, 0.0
    %v3125 = vmax.f32 %v3109, 0.0
    %v3126 = vmax.f32 %v3110, 0.0
    %v3127 = vmax.f32 %v3111, 0.0
    %v3128 = vmax.f32 %v3112, 0.0
    %v3129 = vmax.f32 %v3113, 0.0
    %v3130 = vmax.f32 %v3114, 0.0
    %v3131 = vmax.f32 %v3115, 0.0
    %v3132 = vmax.f32 %v3116, 0.0
    %v3133 = vmax.f32 %v3117, 0.0
    %v3134 = vpack.c.bf16 %v3126, %v3118
    %v3135 = vpack.c.bf16 %v3127, %v3119
    %v3136 = vpack.c.bf16 %v3128, %v3120
    %v3137 = vpack.c.bf16 %v3129, %v3121
    %v3138 = vpack.c.bf16 %v3130, %v3122
    %v3139 = vpack.c.bf16 %v3131, %v3123
    %v3140 = vpack.c.bf16 %v3132, %v3124
    %v3141 = vpack.c.bf16 %v3133, %v3125
    %v3142 = vld [vmem:[#allocation10] sm:$0xff]
    %v3143 = vld [vmem:[#allocation10 + $0x8] sm:$0xff]
    %v3144 = vld [vmem:[#allocation10 + $0x10] sm:$0xff]
    %v3145 = vld [vmem:[#allocation10 + $0x18] sm:$0xff]
    %v3146 = vld [vmem:[#allocation10 + $0x20] sm:$0xff]
    %v3147 = vld [vmem:[#allocation10 + $0x28] sm:$0xff]
    %v3148 = vld [vmem:[#allocation10 + $0x30] sm:$0xff]
    %v3149 = vld [vmem:[#allocation10 + $0x38] sm:$0xff]
    %v3150 = vld [vmem:[#allocation10 + $0x40] sm:$0xff]
    %v3151 = vld [vmem:[#allocation10 + $0x48] sm:$0xff]
    %v3152 = vld [vmem:[#allocation10 + $0x50] sm:$0xff]
    %v3153 = vld [vmem:[#allocation10 + $0x58] sm:$0xff]
    %v3154 = vld [vmem:[#allocation10 + $0x60] sm:$0xff]
    %v3155 = vld [vmem:[#allocation10 + $0x68] sm:$0xff]
    %v3156 = vld [vmem:[#allocation10 + $0x70] sm:$0xff]
    %v3157 = vld [vmem:[#allocation10 + $0x78] sm:$0xff]
    %v3158 = vld [vmem:[#allocation10 + $0x80] sm:$0xff]
    %v3159 = vld [vmem:[#allocation10 + $0x88] sm:$0xff]
    %v3160 = vld [vmem:[#allocation10 + $0x90] sm:$0xff]
    %v3161 = vld [vmem:[#allocation10 + $0x98] sm:$0xff]
    %v3162 = vld [vmem:[#allocation10 + $0xa0] sm:$0xff]
    %v3163 = vld [vmem:[#allocation10 + $0xa8] sm:$0xff]
    %v3164 = vld [vmem:[#allocation10 + $0xb0] sm:$0xff]
    %v3165 = vld [vmem:[#allocation10 + $0xb8] sm:$0xff]
    %v3166 = vld [vmem:[#allocation10 + $0xc0] sm:$0xff]
    %v3167 = vld [vmem:[#allocation10 + $0xc8] sm:$0xff]
    %v3168 = vld [vmem:[#allocation10 + $0xd0] sm:$0xff]
    %v3169 = vld [vmem:[#allocation10 + $0xd8] sm:$0xff]
    %v3170 = vld [vmem:[#allocation10 + $0xe0] sm:$0xff]
    %v3171 = vld [vmem:[#allocation10 + $0xe8] sm:$0xff]
    %v3172 = vld [vmem:[#allocation10 + $0xf0] sm:$0xff]
    %v3173 = vld [vmem:[#allocation10 + $0xf8] sm:$0xff]
    %v3174 = vld [vmem:[#allocation10 + $0x100] sm:$0xff]
    %v3175 = vld [vmem:[#allocation10 + $0x108] sm:$0xff]
    %v3176 = vld [vmem:[#allocation10 + $0x110] sm:$0xff]
    %v3177 = vld [vmem:[#allocation10 + $0x118] sm:$0xff]
    %v3178 = vld [vmem:[#allocation10 + $0x120] sm:$0xff]
    %v3179 = vld [vmem:[#allocation10 + $0x128] sm:$0xff]
    %v3180 = vld [vmem:[#allocation10 + $0x130] sm:$0xff]
    %v3181 = vld [vmem:[#allocation10 + $0x138] sm:$0xff]
    %v3182 = vld [vmem:[#allocation10 + $0x140] sm:$0xff]
    %v3183 = vld [vmem:[#allocation10 + $0x148] sm:$0xff]
    %v3184 = vld [vmem:[#allocation10 + $0x150] sm:$0xff]
    %v3185 = vld [vmem:[#allocation10 + $0x158] sm:$0xff]
    %v3186 = vld [vmem:[#allocation10 + $0x160] sm:$0xff]
    %v3187 = vld [vmem:[#allocation10 + $0x168] sm:$0xff]
    %v3188 = vld [vmem:[#allocation10 + $0x170] sm:$0xff]
    %v3189 = vld [vmem:[#allocation10 + $0x178] sm:$0xff]
    %v3190 = vld [vmem:[#allocation10 + $0x180] sm:$0xff]
    %v3191 = vld [vmem:[#allocation10 + $0x188] sm:$0xff]
    %v3192 = vld [vmem:[#allocation10 + $0x190] sm:$0xff]
    %v3193 = vld [vmem:[#allocation10 + $0x198] sm:$0xff]
    %v3194 = vld [vmem:[#allocation10 + $0x1a0] sm:$0xff]
    %v3195 = vld [vmem:[#allocation10 + $0x1a8] sm:$0xff]
    %v3196 = vld [vmem:[#allocation10 + $0x1b0] sm:$0xff]
    %v3197 = vld [vmem:[#allocation10 + $0x1b8] sm:$0xff]
    %v3198 = vld [vmem:[#allocation10 + $0x1c0] sm:$0xff]
    %v3199 = vld [vmem:[#allocation10 + $0x1c8] sm:$0xff]
    %v3200 = vld [vmem:[#allocation10 + $0x1d0] sm:$0xff]
    %v3201 = vld [vmem:[#allocation10 + $0x1d8] sm:$0xff]
    %v3202 = vld [vmem:[#allocation10 + $0x1e0] sm:$0xff]
    %v3203 = vld [vmem:[#allocation10 + $0x1e8] sm:$0xff]
    %v3204 = vld [vmem:[#allocation10 + $0x1f0] sm:$0xff]
    %v3205 = vld [vmem:[#allocation10 + $0x1f8] sm:$0xff]
    %v3206 = vld [vmem:[#allocation10 + $0x200] sm:$0xff]
    %v3207 = vld [vmem:[#allocation10 + $0x208] sm:$0xff]
    %v3208 = vld [vmem:[#allocation10 + $0x210] sm:$0xff]
    %v3209 = vld [vmem:[#allocation10 + $0x218] sm:$0xff]
    %v3210 = vld [vmem:[#allocation10 + $0x220] sm:$0xff]
    %v3211 = vld [vmem:[#allocation10 + $0x228] sm:$0xff]
    %v3212 = vld [vmem:[#allocation10 + $0x230] sm:$0xff]
    %v3213 = vld [vmem:[#allocation10 + $0x238] sm:$0xff]
    %v3214 = vld [vmem:[#allocation10 + $0x240] sm:$0xff]
    %v3215 = vld [vmem:[#allocation10 + $0x248] sm:$0xff]
    %v3216 = vld [vmem:[#allocation10 + $0x250] sm:$0xff]
    %v3217 = vld [vmem:[#allocation10 + $0x258] sm:$0xff]
    %v3218 = vld [vmem:[#allocation10 + $0x260] sm:$0xff]
    %v3219 = vld [vmem:[#allocation10 + $0x268] sm:$0xff]
    %v3220 = vld [vmem:[#allocation10 + $0x270] sm:$0xff]
    %v3221 = vld [vmem:[#allocation10 + $0x278] sm:$0xff]
    %v3222 = vld [vmem:[#allocation10 + $0x280] sm:$0xff]
    %v3223 = vld [vmem:[#allocation10 + $0x288] sm:$0xff]
    %v3224 = vld [vmem:[#allocation10 + $0x290] sm:$0xff]
    %v3225 = vld [vmem:[#allocation10 + $0x298] sm:$0xff]
    %v3226 = vld [vmem:[#allocation10 + $0x2a0] sm:$0xff]
    %v3227 = vld [vmem:[#allocation10 + $0x2a8] sm:$0xff]
    %v3228 = vld [vmem:[#allocation10 + $0x2b0] sm:$0xff]
    %v3229 = vld [vmem:[#allocation10 + $0x2b8] sm:$0xff]
    %v3230 = vld [vmem:[#allocation10 + $0x2c0] sm:$0xff]
    %v3231 = vld [vmem:[#allocation10 + $0x2c8] sm:$0xff]
    %v3232 = vld [vmem:[#allocation10 + $0x2d0] sm:$0xff]
    %v3233 = vld [vmem:[#allocation10 + $0x2d8] sm:$0xff]
    %v3234 = vld [vmem:[#allocation10 + $0x2e0] sm:$0xff]
    %v3235 = vld [vmem:[#allocation10 + $0x2e8] sm:$0xff]
    %v3236 = vld [vmem:[#allocation10 + $0x2f0] sm:$0xff]
    %v3237 = vld [vmem:[#allocation10 + $0x2f8] sm:$0xff]
    %v3238 = vld [vmem:[#allocation10 + $0x300] sm:$0xff]
    %v3239 = vld [vmem:[#allocation10 + $0x308] sm:$0xff]
    %v3240 = vld [vmem:[#allocation10 + $0x310] sm:$0xff]
    %v3241 = vld [vmem:[#allocation10 + $0x318] sm:$0xff]
    %v3242 = vld [vmem:[#allocation10 + $0x320] sm:$0xff]
    %v3243 = vld [vmem:[#allocation10 + $0x328] sm:$0xff]
    %v3244 = vld [vmem:[#allocation10 + $0x330] sm:$0xff]
    %v3245 = vld [vmem:[#allocation10 + $0x338] sm:$0xff]
    %v3246 = vld [vmem:[#allocation10 + $0x340] sm:$0xff]
    %v3247 = vld [vmem:[#allocation10 + $0x348] sm:$0xff]
    %v3248 = vld [vmem:[#allocation10 + $0x350] sm:$0xff]
    %v3249 = vld [vmem:[#allocation10 + $0x358] sm:$0xff]
    %v3250 = vld [vmem:[#allocation10 + $0x360] sm:$0xff]
    %v3251 = vld [vmem:[#allocation10 + $0x368] sm:$0xff]
    %v3252 = vld [vmem:[#allocation10 + $0x370] sm:$0xff]
    %v3253 = vld [vmem:[#allocation10 + $0x378] sm:$0xff]
    %v3254 = vld [vmem:[#allocation10 + $0x380] sm:$0xff]
    %v3255 = vld [vmem:[#allocation10 + $0x388] sm:$0xff]
    %v3256 = vld [vmem:[#allocation10 + $0x390] sm:$0xff]
    %v3257 = vld [vmem:[#allocation10 + $0x398] sm:$0xff]
    %v3258 = vld [vmem:[#allocation10 + $0x3a0] sm:$0xff]
    %v3259 = vld [vmem:[#allocation10 + $0x3a8] sm:$0xff]
    %v3260 = vld [vmem:[#allocation10 + $0x3b0] sm:$0xff]
    %v3261 = vld [vmem:[#allocation10 + $0x3b8] sm:$0xff]
    %v3262 = vld [vmem:[#allocation10 + $0x3c0] sm:$0xff]
    %v3263 = vld [vmem:[#allocation10 + $0x3c8] sm:$0xff]
    %v3264 = vld [vmem:[#allocation10 + $0x3d0] sm:$0xff]
    %v3265 = vld [vmem:[#allocation10 + $0x3d8] sm:$0xff]
    %v3266 = vld [vmem:[#allocation10 + $0x3e0] sm:$0xff]
    %v3267 = vld [vmem:[#allocation10 + $0x3e8] sm:$0xff]
    %v3268 = vld [vmem:[#allocation10 + $0x3f0] sm:$0xff]
    %v3269 = vld [vmem:[#allocation10 + $0x3f8] sm:$0xff]
    %v3270 = vld [vmem:[#allocation10 + $0x400] sm:$0xff]
    %v3271 = vld [vmem:[#allocation10 + $0x408] sm:$0xff]
    %v3272 = vld [vmem:[#allocation10 + $0x410] sm:$0xff]
    %v3273 = vld [vmem:[#allocation10 + $0x418] sm:$0xff]
    %v3274 = vld [vmem:[#allocation10 + $0x420] sm:$0xff]
    %v3275 = vld [vmem:[#allocation10 + $0x428] sm:$0xff]
    %v3276 = vld [vmem:[#allocation10 + $0x430] sm:$0xff]
    %v3277 = vld [vmem:[#allocation10 + $0x438] sm:$0xff]
    %v3278 = vld [vmem:[#allocation10 + $0x440] sm:$0xff]
    %v3279 = vld [vmem:[#allocation10 + $0x448] sm:$0xff]
    %v3280 = vld [vmem:[#allocation10 + $0x450] sm:$0xff]
    %v3281 = vld [vmem:[#allocation10 + $0x458] sm:$0xff]
    %v3282 = vld [vmem:[#allocation10 + $0x460] sm:$0xff]
    %v3283 = vld [vmem:[#allocation10 + $0x468] sm:$0xff]
    %v3284 = vld [vmem:[#allocation10 + $0x470] sm:$0xff]
    %v3285 = vld [vmem:[#allocation10 + $0x478] sm:$0xff]
    %v3286 = vld [vmem:[#allocation10 + $0x480] sm:$0xff]
    %v3287 = vld [vmem:[#allocation10 + $0x488] sm:$0xff]
    %v3288 = vld [vmem:[#allocation10 + $0x490] sm:$0xff]
    %v3289 = vld [vmem:[#allocation10 + $0x498] sm:$0xff]
    %v3290 = vld [vmem:[#allocation10 + $0x4a0] sm:$0xff]
    %v3291 = vld [vmem:[#allocation10 + $0x4a8] sm:$0xff]
    %v3292 = vld [vmem:[#allocation10 + $0x4b0] sm:$0xff]
    %v3293 = vld [vmem:[#allocation10 + $0x4b8] sm:$0xff]
    %v3294 = vld [vmem:[#allocation10 + $0x4c0] sm:$0xff]
    %v3295 = vld [vmem:[#allocation10 + $0x4c8] sm:$0xff]
    %v3296 = vld [vmem:[#allocation10 + $0x4d0] sm:$0xff]
    %v3297 = vld [vmem:[#allocation10 + $0x4d8] sm:$0xff]
    %v3298 = vld [vmem:[#allocation10 + $0x4e0] sm:$0xff]
    %v3299 = vld [vmem:[#allocation10 + $0x4e8] sm:$0xff]
    %v3300 = vld [vmem:[#allocation10 + $0x4f0] sm:$0xff]
    %v3301 = vld [vmem:[#allocation10 + $0x4f8] sm:$0xff]
    %v3302 = vld [vmem:[#allocation10 + $0x500] sm:$0xff]
    %v3303 = vld [vmem:[#allocation10 + $0x508] sm:$0xff]
    %v3304 = vld [vmem:[#allocation10 + $0x510] sm:$0xff]
    %v3305 = vld [vmem:[#allocation10 + $0x518] sm:$0xff]
    %v3306 = vld [vmem:[#allocation10 + $0x520] sm:$0xff]
    %v3307 = vld [vmem:[#allocation10 + $0x528] sm:$0xff]
    %v3308 = vld [vmem:[#allocation10 + $0x530] sm:$0xff]
    %v3309 = vld [vmem:[#allocation10 + $0x538] sm:$0xff]
    %v3310 = vld [vmem:[#allocation10 + $0x540] sm:$0xff]
    %v3311 = vld [vmem:[#allocation10 + $0x548] sm:$0xff]
    %v3312 = vld [vmem:[#allocation10 + $0x550] sm:$0xff]
    %v3313 = vld [vmem:[#allocation10 + $0x558] sm:$0xff]
    %v3314 = vld [vmem:[#allocation10 + $0x560] sm:$0xff]
    %v3315 = vld [vmem:[#allocation10 + $0x568] sm:$0xff]
    %v3316 = vld [vmem:[#allocation10 + $0x570] sm:$0xff]
    %v3317 = vld [vmem:[#allocation10 + $0x578] sm:$0xff]
    %v3318 = vld [vmem:[#allocation10 + $0x580] sm:$0xff]
    %v3319 = vld [vmem:[#allocation10 + $0x588] sm:$0xff]
    %v3320 = vld [vmem:[#allocation10 + $0x590] sm:$0xff]
    %v3321 = vld [vmem:[#allocation10 + $0x598] sm:$0xff]
    %v3322 = vld [vmem:[#allocation10 + $0x5a0] sm:$0xff]
    %v3323 = vld [vmem:[#allocation10 + $0x5a8] sm:$0xff]
    %v3324 = vld [vmem:[#allocation10 + $0x5b0] sm:$0xff]
    %v3325 = vld [vmem:[#allocation10 + $0x5b8] sm:$0xff]
    %v3326 = vld [vmem:[#allocation10 + $0x5c0] sm:$0xff]
    %v3327 = vld [vmem:[#allocation10 + $0x5c8] sm:$0xff]
    %v3328 = vld [vmem:[#allocation10 + $0x5d0] sm:$0xff]
    %v3329 = vld [vmem:[#allocation10 + $0x5d8] sm:$0xff]
    %v3330 = vld [vmem:[#allocation10 + $0x5e0] sm:$0xff]
    %v3331 = vld [vmem:[#allocation10 + $0x5e8] sm:$0xff]
    %v3332 = vld [vmem:[#allocation10 + $0x5f0] sm:$0xff]
    %v3333 = vld [vmem:[#allocation10 + $0x5f8] sm:$0xff]
    %v3334 = vld [vmem:[#allocation10 + $0x600] sm:$0xff]
    %v3335 = vld [vmem:[#allocation10 + $0x608] sm:$0xff]
    %v3336 = vld [vmem:[#allocation10 + $0x610] sm:$0xff]
    %v3337 = vld [vmem:[#allocation10 + $0x618] sm:$0xff]
    %v3338 = vld [vmem:[#allocation10 + $0x620] sm:$0xff]
    %v3339 = vld [vmem:[#allocation10 + $0x628] sm:$0xff]
    %v3340 = vld [vmem:[#allocation10 + $0x630] sm:$0xff]
    %v3341 = vld [vmem:[#allocation10 + $0x638] sm:$0xff]
    %v3342 = vld [vmem:[#allocation10 + $0x640] sm:$0xff]
    %v3343 = vld [vmem:[#allocation10 + $0x648] sm:$0xff]
    %v3344 = vld [vmem:[#allocation10 + $0x650] sm:$0xff]
    %v3345 = vld [vmem:[#allocation10 + $0x658] sm:$0xff]
    %v3346 = vld [vmem:[#allocation10 + $0x660] sm:$0xff]
    %v3347 = vld [vmem:[#allocation10 + $0x668] sm:$0xff]
    %v3348 = vld [vmem:[#allocation10 + $0x670] sm:$0xff]
    %v3349 = vld [vmem:[#allocation10 + $0x678] sm:$0xff]
    %v3350 = vld [vmem:[#allocation10 + $0x680] sm:$0xff]
    %v3351 = vld [vmem:[#allocation10 + $0x688] sm:$0xff]
    %v3352 = vld [vmem:[#allocation10 + $0x690] sm:$0xff]
    %v3353 = vld [vmem:[#allocation10 + $0x698] sm:$0xff]
    %v3354 = vld [vmem:[#allocation10 + $0x6a0] sm:$0xff]
    %v3355 = vld [vmem:[#allocation10 + $0x6a8] sm:$0xff]
    %v3356 = vld [vmem:[#allocation10 + $0x6b0] sm:$0xff]
    %v3357 = vld [vmem:[#allocation10 + $0x6b8] sm:$0xff]
    %v3358 = vld [vmem:[#allocation10 + $0x6c0] sm:$0xff]
    %v3359 = vld [vmem:[#allocation10 + $0x6c8] sm:$0xff]
    %v3360 = vld [vmem:[#allocation10 + $0x6d0] sm:$0xff]
    %v3361 = vld [vmem:[#allocation10 + $0x6d8] sm:$0xff]
    %v3362 = vld [vmem:[#allocation10 + $0x6e0] sm:$0xff]
    %v3363 = vld [vmem:[#allocation10 + $0x6e8] sm:$0xff]
    %v3364 = vld [vmem:[#allocation10 + $0x6f0] sm:$0xff]
    %v3365 = vld [vmem:[#allocation10 + $0x6f8] sm:$0xff]
    %v3366 = vld [vmem:[#allocation10 + $0x700] sm:$0xff]
    %v3367 = vld [vmem:[#allocation10 + $0x708] sm:$0xff]
    %v3368 = vld [vmem:[#allocation10 + $0x710] sm:$0xff]
    %v3369 = vld [vmem:[#allocation10 + $0x718] sm:$0xff]
    %v3370 = vld [vmem:[#allocation10 + $0x720] sm:$0xff]
    %v3371 = vld [vmem:[#allocation10 + $0x728] sm:$0xff]
    %v3372 = vld [vmem:[#allocation10 + $0x730] sm:$0xff]
    %v3373 = vld [vmem:[#allocation10 + $0x738] sm:$0xff]
    %v3374 = vld [vmem:[#allocation10 + $0x740] sm:$0xff]
    %v3375 = vld [vmem:[#allocation10 + $0x748] sm:$0xff]
    %v3376 = vld [vmem:[#allocation10 + $0x750] sm:$0xff]
    %v3377 = vld [vmem:[#allocation10 + $0x758] sm:$0xff]
    %v3378 = vld [vmem:[#allocation10 + $0x760] sm:$0xff]
    %v3379 = vld [vmem:[#allocation10 + $0x768] sm:$0xff]
    %v3380 = vld [vmem:[#allocation10 + $0x770] sm:$0xff]
    %v3381 = vld [vmem:[#allocation10 + $0x778] sm:$0xff]
    %v3382 = vld [vmem:[#allocation10 + $0x780] sm:$0xff]
    %v3383 = vld [vmem:[#allocation10 + $0x788] sm:$0xff]
    %v3384 = vld [vmem:[#allocation10 + $0x790] sm:$0xff]
    %v3385 = vld [vmem:[#allocation10 + $0x798] sm:$0xff]
    %v3386 = vld [vmem:[#allocation10 + $0x7a0] sm:$0xff]
    %v3387 = vld [vmem:[#allocation10 + $0x7a8] sm:$0xff]
    %v3388 = vld [vmem:[#allocation10 + $0x7b0] sm:$0xff]
    %v3389 = vld [vmem:[#allocation10 + $0x7b8] sm:$0xff]
    %v3390 = vld [vmem:[#allocation10 + $0x7c0] sm:$0xff]
    %v3391 = vld [vmem:[#allocation10 + $0x7c8] sm:$0xff]
    %v3392 = vld [vmem:[#allocation10 + $0x7d0] sm:$0xff]
    %v3393 = vld [vmem:[#allocation10 + $0x7d8] sm:$0xff]
    %v3394 = vld [vmem:[#allocation10 + $0x7e0] sm:$0xff]
    %v3395 = vld [vmem:[#allocation10 + $0x7e8] sm:$0xff]
    %v3396 = vld [vmem:[#allocation10 + $0x7f0] sm:$0xff]
    %v3397 = vld [vmem:[#allocation10 + $0x7f8] sm:$0xff]
    %v3398 = vld [vmem:[#allocation10 + $0x800] sm:$0xff]
    %v3399 = vld [vmem:[#allocation10 + $0x808] sm:$0xff]
    %v3400 = vld [vmem:[#allocation10 + $0x810] sm:$0xff]
    %v3401 = vld [vmem:[#allocation10 + $0x818] sm:$0xff]
    %v3402 = vld [vmem:[#allocation10 + $0x820] sm:$0xff]
    %v3403 = vld [vmem:[#allocation10 + $0x828] sm:$0xff]
    %v3404 = vld [vmem:[#allocation10 + $0x830] sm:$0xff]
    %v3405 = vld [vmem:[#allocation10 + $0x838] sm:$0xff]
    %v3406 = vld [vmem:[#allocation10 + $0x840] sm:$0xff]
    %v3407 = vld [vmem:[#allocation10 + $0x848] sm:$0xff]
    %v3408 = vld [vmem:[#allocation10 + $0x850] sm:$0xff]
    %v3409 = vld [vmem:[#allocation10 + $0x858] sm:$0xff]
    %v3410 = vld [vmem:[#allocation10 + $0x860] sm:$0xff]
    %v3411 = vld [vmem:[#allocation10 + $0x868] sm:$0xff]
    %v3412 = vld [vmem:[#allocation10 + $0x870] sm:$0xff]
    %v3413 = vld [vmem:[#allocation10 + $0x878] sm:$0xff]
    %v3414 = vld [vmem:[#allocation10 + $0x880] sm:$0xff]
    %v3415 = vld [vmem:[#allocation10 + $0x888] sm:$0xff]
    %v3416 = vld [vmem:[#allocation10 + $0x890] sm:$0xff]
    %v3417 = vld [vmem:[#allocation10 + $0x898] sm:$0xff]
    %v3418 = vld [vmem:[#allocation10 + $0x8a0] sm:$0xff]
    %v3419 = vld [vmem:[#allocation10 + $0x8a8] sm:$0xff]
    %v3420 = vld [vmem:[#allocation10 + $0x8b0] sm:$0xff]
    %v3421 = vld [vmem:[#allocation10 + $0x8b8] sm:$0xff]
    %v3422 = vld [vmem:[#allocation10 + $0x8c0] sm:$0xff]
    %v3423 = vld [vmem:[#allocation10 + $0x8c8] sm:$0xff]
    %v3424 = vld [vmem:[#allocation10 + $0x8d0] sm:$0xff]
    %v3425 = vld [vmem:[#allocation10 + $0x8d8] sm:$0xff]
    %v3426 = vld [vmem:[#allocation10 + $0x8e0] sm:$0xff]
    %v3427 = vld [vmem:[#allocation10 + $0x8e8] sm:$0xff]
    %v3428 = vld [vmem:[#allocation10 + $0x8f0] sm:$0xff]
    %v3429 = vld [vmem:[#allocation10 + $0x8f8] sm:$0xff]
    %v3430 = vld [vmem:[#allocation10 + $0x900] sm:$0xff]
    %v3431 = vld [vmem:[#allocation10 + $0x908] sm:$0xff]
    %v3432 = vld [vmem:[#allocation10 + $0x910] sm:$0xff]
    %v3433 = vld [vmem:[#allocation10 + $0x918] sm:$0xff]
    %v3434 = vld [vmem:[#allocation10 + $0x920] sm:$0xff]
    %v3435 = vld [vmem:[#allocation10 + $0x928] sm:$0xff]
    %v3436 = vld [vmem:[#allocation10 + $0x930] sm:$0xff]
    %v3437 = vld [vmem:[#allocation10 + $0x938] sm:$0xff]
    %v3438 = vld [vmem:[#allocation10 + $0x940] sm:$0xff]
    %v3439 = vld [vmem:[#allocation10 + $0x948] sm:$0xff]
    %v3440 = vld [vmem:[#allocation10 + $0x950] sm:$0xff]
    %v3441 = vld [vmem:[#allocation10 + $0x958] sm:$0xff]
    %v3442 = vld [vmem:[#allocation10 + $0x960] sm:$0xff]
    %v3443 = vld [vmem:[#allocation10 + $0x968] sm:$0xff]
    %v3444 = vld [vmem:[#allocation10 + $0x970] sm:$0xff]
    %v3445 = vld [vmem:[#allocation10 + $0x978] sm:$0xff]
    %v3446 = vld [vmem:[#allocation10 + $0x980] sm:$0xff]
    %v3447 = vld [vmem:[#allocation10 + $0x988] sm:$0xff]
    %v3448 = vld [vmem:[#allocation10 + $0x990] sm:$0xff]
    %v3449 = vld [vmem:[#allocation10 + $0x998] sm:$0xff]
    %v3450 = vld [vmem:[#allocation10 + $0x9a0] sm:$0xff]
    %v3451 = vld [vmem:[#allocation10 + $0x9a8] sm:$0xff]
    %v3452 = vld [vmem:[#allocation10 + $0x9b0] sm:$0xff]
    %v3453 = vld [vmem:[#allocation10 + $0x9b8] sm:$0xff]
    %v3454 = vld [vmem:[#allocation10 + $0x9c0] sm:$0xff]
    %v3455 = vld [vmem:[#allocation10 + $0x9c8] sm:$0xff]
    %v3456 = vld [vmem:[#allocation10 + $0x9d0] sm:$0xff]
    %v3457 = vld [vmem:[#allocation10 + $0x9d8] sm:$0xff]
    %v3458 = vld [vmem:[#allocation10 + $0x9e0] sm:$0xff]
    %v3459 = vld [vmem:[#allocation10 + $0x9e8] sm:$0xff]
    %v3460 = vld [vmem:[#allocation10 + $0x9f0] sm:$0xff]
    %v3461 = vld [vmem:[#allocation10 + $0x9f8] sm:$0xff]
    %v3462 = vld [vmem:[#allocation10 + $0xa00] sm:$0xff]
    %v3463 = vld [vmem:[#allocation10 + $0xa08] sm:$0xff]
    %v3464 = vld [vmem:[#allocation10 + $0xa10] sm:$0xff]
    %v3465 = vld [vmem:[#allocation10 + $0xa18] sm:$0xff]
    %v3466 = vld [vmem:[#allocation10 + $0xa20] sm:$0xff]
    %v3467 = vld [vmem:[#allocation10 + $0xa28] sm:$0xff]
    %v3468 = vld [vmem:[#allocation10 + $0xa30] sm:$0xff]
    %v3469 = vld [vmem:[#allocation10 + $0xa38] sm:$0xff]
    %v3470 = vld [vmem:[#allocation10 + $0xa40] sm:$0xff]
    %v3471 = vld [vmem:[#allocation10 + $0xa48] sm:$0xff]
    %v3472 = vld [vmem:[#allocation10 + $0xa50] sm:$0xff]
    %v3473 = vld [vmem:[#allocation10 + $0xa58] sm:$0xff]
    %v3474 = vld [vmem:[#allocation10 + $0xa60] sm:$0xff]
    %v3475 = vld [vmem:[#allocation10 + $0xa68] sm:$0xff]
    %v3476 = vld [vmem:[#allocation10 + $0xa70] sm:$0xff]
    %v3477 = vld [vmem:[#allocation10 + $0xa78] sm:$0xff]
    %v3478 = vld [vmem:[#allocation10 + $0xa80] sm:$0xff]
    %v3479 = vld [vmem:[#allocation10 + $0xa88] sm:$0xff]
    %v3480 = vld [vmem:[#allocation10 + $0xa90] sm:$0xff]
    %v3481 = vld [vmem:[#allocation10 + $0xa98] sm:$0xff]
    %v3482 = vld [vmem:[#allocation10 + $0xaa0] sm:$0xff]
    %v3483 = vld [vmem:[#allocation10 + $0xaa8] sm:$0xff]
    %v3484 = vld [vmem:[#allocation10 + $0xab0] sm:$0xff]
    %v3485 = vld [vmem:[#allocation10 + $0xab8] sm:$0xff]
    %v3486 = vld [vmem:[#allocation10 + $0xac0] sm:$0xff]
    %v3487 = vld [vmem:[#allocation10 + $0xac8] sm:$0xff]
    %v3488 = vld [vmem:[#allocation10 + $0xad0] sm:$0xff]
    %v3489 = vld [vmem:[#allocation10 + $0xad8] sm:$0xff]
    %v3490 = vld [vmem:[#allocation10 + $0xae0] sm:$0xff]
    %v3491 = vld [vmem:[#allocation10 + $0xae8] sm:$0xff]
    %v3492 = vld [vmem:[#allocation10 + $0xaf0] sm:$0xff]
    %v3493 = vld [vmem:[#allocation10 + $0xaf8] sm:$0xff]
    %v3494 = vld [vmem:[#allocation10 + $0xb00] sm:$0xff]
    %v3495 = vld [vmem:[#allocation10 + $0xb08] sm:$0xff]
    %v3496 = vld [vmem:[#allocation10 + $0xb10] sm:$0xff]
    %v3497 = vld [vmem:[#allocation10 + $0xb18] sm:$0xff]
    %v3498 = vld [vmem:[#allocation10 + $0xb20] sm:$0xff]
    %v3499 = vld [vmem:[#allocation10 + $0xb28] sm:$0xff]
    %v3500 = vld [vmem:[#allocation10 + $0xb30] sm:$0xff]
    %v3501 = vld [vmem:[#allocation10 + $0xb38] sm:$0xff]
    %v3502 = vld [vmem:[#allocation10 + $0xb40] sm:$0xff]
    %v3503 = vld [vmem:[#allocation10 + $0xb48] sm:$0xff]
    %v3504 = vld [vmem:[#allocation10 + $0xb50] sm:$0xff]
    %v3505 = vld [vmem:[#allocation10 + $0xb58] sm:$0xff]
    %v3506 = vld [vmem:[#allocation10 + $0xb60] sm:$0xff]
    %v3507 = vld [vmem:[#allocation10 + $0xb68] sm:$0xff]
    %v3508 = vld [vmem:[#allocation10 + $0xb70] sm:$0xff]
    %v3509 = vld [vmem:[#allocation10 + $0xb78] sm:$0xff]
    %v3510 = vld [vmem:[#allocation10 + $0xb80] sm:$0xff]
    %v3511 = vld [vmem:[#allocation10 + $0xb88] sm:$0xff]
    %v3512 = vld [vmem:[#allocation10 + $0xb90] sm:$0xff]
    %v3513 = vld [vmem:[#allocation10 + $0xb98] sm:$0xff]
    %v3514 = vld [vmem:[#allocation10 + $0xba0] sm:$0xff]
    %v3515 = vld [vmem:[#allocation10 + $0xba8] sm:$0xff]
    %v3516 = vld [vmem:[#allocation10 + $0xbb0] sm:$0xff]
    %v3517 = vld [vmem:[#allocation10 + $0xbb8] sm:$0xff]
    %v3518 = vld [vmem:[#allocation10 + $0xbc0] sm:$0xff]
    %v3519 = vld [vmem:[#allocation10 + $0xbc8] sm:$0xff]
    %v3520 = vld [vmem:[#allocation10 + $0xbd0] sm:$0xff]
    %v3521 = vld [vmem:[#allocation10 + $0xbd8] sm:$0xff]
    %v3522 = vld [vmem:[#allocation10 + $0xbe0] sm:$0xff]
    %v3523 = vld [vmem:[#allocation10 + $0xbe8] sm:$0xff]
    %v3524 = vld [vmem:[#allocation10 + $0xbf0] sm:$0xff]
    %v3525 = vld [vmem:[#allocation10 + $0xbf8] sm:$0xff]
    %v3526 = vld [vmem:[#allocation10 + $0xc00] sm:$0xff]
    %v3527 = vld [vmem:[#allocation10 + $0xc08] sm:$0xff]
    %v3528 = vld [vmem:[#allocation10 + $0xc10] sm:$0xff]
    %v3529 = vld [vmem:[#allocation10 + $0xc18] sm:$0xff]
    %v3530 = vld [vmem:[#allocation10 + $0xc20] sm:$0xff]
    %v3531 = vld [vmem:[#allocation10 + $0xc28] sm:$0xff]
    %v3532 = vld [vmem:[#allocation10 + $0xc30] sm:$0xff]
    %v3533 = vld [vmem:[#allocation10 + $0xc38] sm:$0xff]
    %v3534 = vld [vmem:[#allocation10 + $0xc40] sm:$0xff]
    %v3535 = vld [vmem:[#allocation10 + $0xc48] sm:$0xff]
    %v3536 = vld [vmem:[#allocation10 + $0xc50] sm:$0xff]
    %v3537 = vld [vmem:[#allocation10 + $0xc58] sm:$0xff]
    %v3538 = vld [vmem:[#allocation10 + $0xc60] sm:$0xff]
    %v3539 = vld [vmem:[#allocation10 + $0xc68] sm:$0xff]
    %v3540 = vld [vmem:[#allocation10 + $0xc70] sm:$0xff]
    %v3541 = vld [vmem:[#allocation10 + $0xc78] sm:$0xff]
    %v3542 = vld [vmem:[#allocation10 + $0xc80] sm:$0xff]
    %v3543 = vld [vmem:[#allocation10 + $0xc88] sm:$0xff]
    %v3544 = vld [vmem:[#allocation10 + $0xc90] sm:$0xff]
    %v3545 = vld [vmem:[#allocation10 + $0xc98] sm:$0xff]
    %v3546 = vld [vmem:[#allocation10 + $0xca0] sm:$0xff]
    %v3547 = vld [vmem:[#allocation10 + $0xca8] sm:$0xff]
    %v3548 = vld [vmem:[#allocation10 + $0xcb0] sm:$0xff]
    %v3549 = vld [vmem:[#allocation10 + $0xcb8] sm:$0xff]
    %v3550 = vld [vmem:[#allocation10 + $0xcc0] sm:$0xff]
    %v3551 = vld [vmem:[#allocation10 + $0xcc8] sm:$0xff]
    %v3552 = vld [vmem:[#allocation10 + $0xcd0] sm:$0xff]
    %v3553 = vld [vmem:[#allocation10 + $0xcd8] sm:$0xff]
    %v3554 = vld [vmem:[#allocation10 + $0xce0] sm:$0xff]
    %v3555 = vld [vmem:[#allocation10 + $0xce8] sm:$0xff]
    %v3556 = vld [vmem:[#allocation10 + $0xcf0] sm:$0xff]
    %v3557 = vld [vmem:[#allocation10 + $0xcf8] sm:$0xff]
    %v3558 = vld [vmem:[#allocation10 + $0xd00] sm:$0xff]
    %v3559 = vld [vmem:[#allocation10 + $0xd08] sm:$0xff]
    %v3560 = vld [vmem:[#allocation10 + $0xd10] sm:$0xff]
    %v3561 = vld [vmem:[#allocation10 + $0xd18] sm:$0xff]
    %v3562 = vld [vmem:[#allocation10 + $0xd20] sm:$0xff]
    %v3563 = vld [vmem:[#allocation10 + $0xd28] sm:$0xff]
    %v3564 = vld [vmem:[#allocation10 + $0xd30] sm:$0xff]
    %v3565 = vld [vmem:[#allocation10 + $0xd38] sm:$0xff]
    %v3566 = vld [vmem:[#allocation10 + $0xd40] sm:$0xff]
    %v3567 = vld [vmem:[#allocation10 + $0xd48] sm:$0xff]
    %v3568 = vld [vmem:[#allocation10 + $0xd50] sm:$0xff]
    %v3569 = vld [vmem:[#allocation10 + $0xd58] sm:$0xff]
    %v3570 = vld [vmem:[#allocation10 + $0xd60] sm:$0xff]
    %v3571 = vld [vmem:[#allocation10 + $0xd68] sm:$0xff]
    %v3572 = vld [vmem:[#allocation10 + $0xd70] sm:$0xff]
    %v3573 = vld [vmem:[#allocation10 + $0xd78] sm:$0xff]
    %v3574 = vld [vmem:[#allocation10 + $0xd80] sm:$0xff]
    %v3575 = vld [vmem:[#allocation10 + $0xd88] sm:$0xff]
    %v3576 = vld [vmem:[#allocation10 + $0xd90] sm:$0xff]
    %v3577 = vld [vmem:[#allocation10 + $0xd98] sm:$0xff]
    %v3578 = vld [vmem:[#allocation10 + $0xda0] sm:$0xff]
    %v3579 = vld [vmem:[#allocation10 + $0xda8] sm:$0xff]
    %v3580 = vld [vmem:[#allocation10 + $0xdb0] sm:$0xff]
    %v3581 = vld [vmem:[#allocation10 + $0xdb8] sm:$0xff]
    %v3582 = vld [vmem:[#allocation10 + $0xdc0] sm:$0xff]
    %v3583 = vld [vmem:[#allocation10 + $0xdc8] sm:$0xff]
    %v3584 = vld [vmem:[#allocation10 + $0xdd0] sm:$0xff]
    %v3585 = vld [vmem:[#allocation10 + $0xdd8] sm:$0xff]
    %v3586 = vld [vmem:[#allocation10 + $0xde0] sm:$0xff]
    %v3587 = vld [vmem:[#allocation10 + $0xde8] sm:$0xff]
    %v3588 = vld [vmem:[#allocation10 + $0xdf0] sm:$0xff]
    %v3589 = vld [vmem:[#allocation10 + $0xdf8] sm:$0xff]
    %v3590 = vld [vmem:[#allocation10 + $0xe00] sm:$0xff]
    %v3591 = vld [vmem:[#allocation10 + $0xe08] sm:$0xff]
    %v3592 = vld [vmem:[#allocation10 + $0xe10] sm:$0xff]
    %v3593 = vld [vmem:[#allocation10 + $0xe18] sm:$0xff]
    %v3594 = vld [vmem:[#allocation10 + $0xe20] sm:$0xff]
    %v3595 = vld [vmem:[#allocation10 + $0xe28] sm:$0xff]
    %v3596 = vld [vmem:[#allocation10 + $0xe30] sm:$0xff]
    %v3597 = vld [vmem:[#allocation10 + $0xe38] sm:$0xff]
    %v3598 = vld [vmem:[#allocation10 + $0xe40] sm:$0xff]
    %v3599 = vld [vmem:[#allocation10 + $0xe48] sm:$0xff]
    %v3600 = vld [vmem:[#allocation10 + $0xe50] sm:$0xff]
    %v3601 = vld [vmem:[#allocation10 + $0xe58] sm:$0xff]
    %v3602 = vld [vmem:[#allocation10 + $0xe60] sm:$0xff]
    %v3603 = vld [vmem:[#allocation10 + $0xe68] sm:$0xff]
    %v3604 = vld [vmem:[#allocation10 + $0xe70] sm:$0xff]
    %v3605 = vld [vmem:[#allocation10 + $0xe78] sm:$0xff]
    %v3606 = vld [vmem:[#allocation10 + $0xe80] sm:$0xff]
    %v3607 = vld [vmem:[#allocation10 + $0xe88] sm:$0xff]
    %v3608 = vld [vmem:[#allocation10 + $0xe90] sm:$0xff]
    %v3609 = vld [vmem:[#allocation10 + $0xe98] sm:$0xff]
    %v3610 = vld [vmem:[#allocation10 + $0xea0] sm:$0xff]
    %v3611 = vld [vmem:[#allocation10 + $0xea8] sm:$0xff]
    %v3612 = vld [vmem:[#allocation10 + $0xeb0] sm:$0xff]
    %v3613 = vld [vmem:[#allocation10 + $0xeb8] sm:$0xff]
    %v3614 = vld [vmem:[#allocation10 + $0xec0] sm:$0xff]
    %v3615 = vld [vmem:[#allocation10 + $0xec8] sm:$0xff]
    %v3616 = vld [vmem:[#allocation10 + $0xed0] sm:$0xff]
    %v3617 = vld [vmem:[#allocation10 + $0xed8] sm:$0xff]
    %v3618 = vld [vmem:[#allocation10 + $0xee0] sm:$0xff]
    %v3619 = vld [vmem:[#allocation10 + $0xee8] sm:$0xff]
    %v3620 = vld [vmem:[#allocation10 + $0xef0] sm:$0xff]
    %v3621 = vld [vmem:[#allocation10 + $0xef8] sm:$0xff]
    %v3622 = vld [vmem:[#allocation10 + $0xf00] sm:$0xff]
    %v3623 = vld [vmem:[#allocation10 + $0xf08] sm:$0xff]
    %v3624 = vld [vmem:[#allocation10 + $0xf10] sm:$0xff]
    %v3625 = vld [vmem:[#allocation10 + $0xf18] sm:$0xff]
    %v3626 = vld [vmem:[#allocation10 + $0xf20] sm:$0xff]
    %v3627 = vld [vmem:[#allocation10 + $0xf28] sm:$0xff]
    %v3628 = vld [vmem:[#allocation10 + $0xf30] sm:$0xff]
    %v3629 = vld [vmem:[#allocation10 + $0xf38] sm:$0xff]
    %v3630 = vld [vmem:[#allocation10 + $0xf40] sm:$0xff]
    %v3631 = vld [vmem:[#allocation10 + $0xf48] sm:$0xff]
    %v3632 = vld [vmem:[#allocation10 + $0xf50] sm:$0xff]
    %v3633 = vld [vmem:[#allocation10 + $0xf58] sm:$0xff]
    %v3634 = vld [vmem:[#allocation10 + $0xf60] sm:$0xff]
    %v3635 = vld [vmem:[#allocation10 + $0xf68] sm:$0xff]
    %v3636 = vld [vmem:[#allocation10 + $0xf70] sm:$0xff]
    %v3637 = vld [vmem:[#allocation10 + $0xf78] sm:$0xff]
    %v3638 = vld [vmem:[#allocation10 + $0xf80] sm:$0xff]
    %v3639 = vld [vmem:[#allocation10 + $0xf88] sm:$0xff]
    %v3640 = vld [vmem:[#allocation10 + $0xf90] sm:$0xff]
    %v3641 = vld [vmem:[#allocation10 + $0xf98] sm:$0xff]
    %v3642 = vld [vmem:[#allocation10 + $0xfa0] sm:$0xff]
    %v3643 = vld [vmem:[#allocation10 + $0xfa8] sm:$0xff]
    %v3644 = vld [vmem:[#allocation10 + $0xfb0] sm:$0xff]
    %v3645 = vld [vmem:[#allocation10 + $0xfb8] sm:$0xff]
    %v3646 = vld [vmem:[#allocation10 + $0xfc0] sm:$0xff]
    %v3647 = vld [vmem:[#allocation10 + $0xfc8] sm:$0xff]
    %v3648 = vld [vmem:[#allocation10 + $0xfd0] sm:$0xff]
    %v3649 = vld [vmem:[#allocation10 + $0xfd8] sm:$0xff]
    %v3650 = vld [vmem:[#allocation10 + $0xfe0] sm:$0xff]
    %v3651 = vld [vmem:[#allocation10 + $0xfe8] sm:$0xff]
    %v3652 = vld [vmem:[#allocation10 + $0xff0] sm:$0xff]
    %v3653 = vld [vmem:[#allocation10 + $0xff8] sm:$0xff]
    %v4166 = vunpack.c.l.b16 %v3142
    %v4167 = vunpack.c.h.b16 %v3142
    %v4168 = vunpack.c.l.b16 %v3143
    %v4169 = vunpack.c.h.b16 %v3143
    %v4170 = vunpack.c.l.b16 %v3144
    %v4171 = vunpack.c.h.b16 %v3144
    %v4172 = vunpack.c.l.b16 %v3145
    %v4173 = vunpack.c.h.b16 %v3145
    %v4174 = vunpack.c.l.b16 %v3146
    %v4175 = vunpack.c.h.b16 %v3146
    %v4176 = vunpack.c.l.b16 %v3147
    %v4177 = vunpack.c.h.b16 %v3147
    %v4178 = vunpack.c.l.b16 %v3148
    %v4179 = vunpack.c.h.b16 %v3148
    %v4180 = vunpack.c.l.b16 %v3149
    %v4181 = vunpack.c.h.b16 %v3149
    %v4182 = vunpack.c.l.b16 %v3150
    %v4183 = vunpack.c.h.b16 %v3150
    %v4184 = vunpack.c.l.b16 %v3151
    %v4185 = vunpack.c.h.b16 %v3151
    %v4186 = vunpack.c.l.b16 %v3152
    %v4187 = vunpack.c.h.b16 %v3152
    %v4188 = vunpack.c.l.b16 %v3153
    %v4189 = vunpack.c.h.b16 %v3153
    %v4190 = vunpack.c.l.b16 %v3154
    %v4191 = vunpack.c.h.b16 %v3154
    %v4192 = vunpack.c.l.b16 %v3155
    %v4193 = vunpack.c.h.b16 %v3155
    %v4194 = vunpack.c.l.b16 %v3156
    %v4195 = vunpack.c.h.b16 %v3156
    %v4196 = vunpack.c.l.b16 %v3157
    %v4197 = vunpack.c.h.b16 %v3157
    %v4198 = vunpack.c.l.b16 %v3158
    %v4199 = vunpack.c.h.b16 %v3158
    %v4200 = vunpack.c.l.b16 %v3159
    %v4201 = vunpack.c.h.b16 %v3159
    %v4202 = vunpack.c.l.b16 %v3160
    %v4203 = vunpack.c.h.b16 %v3160
    %v4204 = vunpack.c.l.b16 %v3161
    %v4205 = vunpack.c.h.b16 %v3161
    %v4206 = vunpack.c.l.b16 %v3162
    %v4207 = vunpack.c.h.b16 %v3162
    %v4208 = vunpack.c.l.b16 %v3163
    %v4209 = vunpack.c.h.b16 %v3163
    %v4210 = vunpack.c.l.b16 %v3164
    %v4211 = vunpack.c.h.b16 %v3164
    %v4212 = vunpack.c.l.b16 %v3165
    %v4213 = vunpack.c.h.b16 %v3165
    %v4214 = vunpack.c.l.b16 %v3166
    %v4215 = vunpack.c.h.b16 %v3166
    %v4216 = vunpack.c.l.b16 %v3167
    %v4217 = vunpack.c.h.b16 %v3167
    %v4218 = vunpack.c.l.b16 %v3168
    %v4219 = vunpack.c.h.b16 %v3168
    %v4220 = vunpack.c.l.b16 %v3169
    %v4221 = vunpack.c.h.b16 %v3169
    %v4222 = vunpack.c.l.b16 %v3170
    %v4223 = vunpack.c.h.b16 %v3170
    %v4224 = vunpack.c.l.b16 %v3171
    %v4225 = vunpack.c.h.b16 %v3171
    %v4226 = vunpack.c.l.b16 %v3172
    %v4227 = vunpack.c.h.b16 %v3172
    %v4228 = vunpack.c.l.b16 %v3173
    %v4229 = vunpack.c.h.b16 %v3173
    %v4230 = vunpack.c.l.b16 %v3174
    %v4231 = vunpack.c.h.b16 %v3174
    %v4232 = vunpack.c.l.b16 %v3175
    %v4233 = vunpack.c.h.b16 %v3175
    %v4234 = vunpack.c.l.b16 %v3176
    %v4235 = vunpack.c.h.b16 %v3176
    %v4236 = vunpack.c.l.b16 %v3177
    %v4237 = vunpack.c.h.b16 %v3177
    %v4238 = vunpack.c.l.b16 %v3178
    %v4239 = vunpack.c.h.b16 %v3178
    %v4240 = vunpack.c.l.b16 %v3179
    %v4241 = vunpack.c.h.b16 %v3179
    %v4242 = vunpack.c.l.b16 %v3180
    %v4243 = vunpack.c.h.b16 %v3180
    %v4244 = vunpack.c.l.b16 %v3181
    %v4245 = vunpack.c.h.b16 %v3181
    %v4246 = vunpack.c.l.b16 %v3182
    %v4247 = vunpack.c.h.b16 %v3182
    %v4248 = vunpack.c.l.b16 %v3183
    %v4249 = vunpack.c.h.b16 %v3183
    %v4250 = vunpack.c.l.b16 %v3184
    %v4251 = vunpack.c.h.b16 %v3184
    %v4252 = vunpack.c.l.b16 %v3185
    %v4253 = vunpack.c.h.b16 %v3185
    %v4254 = vunpack.c.l.b16 %v3186
    %v4255 = vunpack.c.h.b16 %v3186
    %v4256 = vunpack.c.l.b16 %v3187
    %v4257 = vunpack.c.h.b16 %v3187
    %v4258 = vunpack.c.l.b16 %v3188
    %v4259 = vunpack.c.h.b16 %v3188
    %v4260 = vunpack.c.l.b16 %v3189
    %v4261 = vunpack.c.h.b16 %v3189
    %v4262 = vunpack.c.l.b16 %v3190
    %v4263 = vunpack.c.h.b16 %v3190
    %v4264 = vunpack.c.l.b16 %v3191
    %v4265 = vunpack.c.h.b16 %v3191
    %v4266 = vunpack.c.l.b16 %v3192
    %v4267 = vunpack.c.h.b16 %v3192
    %v4268 = vunpack.c.l.b16 %v3193
    %v4269 = vunpack.c.h.b16 %v3193
    %v4270 = vunpack.c.l.b16 %v3194
    %v4271 = vunpack.c.h.b16 %v3194
    %v4272 = vunpack.c.l.b16 %v3195
    %v4273 = vunpack.c.h.b16 %v3195
    %v4274 = vunpack.c.l.b16 %v3196
    %v4275 = vunpack.c.h.b16 %v3196
    %v4276 = vunpack.c.l.b16 %v3197
    %v4277 = vunpack.c.h.b16 %v3197
    %v4278 = vunpack.c.l.b16 %v3198
    %v4279 = vunpack.c.h.b16 %v3198
    %v4280 = vunpack.c.l.b16 %v3199
    %v4281 = vunpack.c.h.b16 %v3199
    %v4282 = vunpack.c.l.b16 %v3200
    %v4283 = vunpack.c.h.b16 %v3200
    %v4284 = vunpack.c.l.b16 %v3201
    %v4285 = vunpack.c.h.b16 %v3201
    %v4286 = vunpack.c.l.b16 %v3202
    %v4287 = vunpack.c.h.b16 %v3202
    %v4288 = vunpack.c.l.b16 %v3203
    %v4289 = vunpack.c.h.b16 %v3203
    %v4290 = vunpack.c.l.b16 %v3204
    %v4291 = vunpack.c.h.b16 %v3204
    %v4292 = vunpack.c.l.b16 %v3205
    %v4293 = vunpack.c.h.b16 %v3205
    %v4294 = vunpack.c.l.b16 %v3206
    %v4295 = vunpack.c.h.b16 %v3206
    %v4296 = vunpack.c.l.b16 %v3207
    %v4297 = vunpack.c.h.b16 %v3207
    %v4298 = vunpack.c.l.b16 %v3208
    %v4299 = vunpack.c.h.b16 %v3208
    %v4300 = vunpack.c.l.b16 %v3209
    %v4301 = vunpack.c.h.b16 %v3209
    %v4302 = vunpack.c.l.b16 %v3210
    %v4303 = vunpack.c.h.b16 %v3210
    %v4304 = vunpack.c.l.b16 %v3211
    %v4305 = vunpack.c.h.b16 %v3211
    %v4306 = vunpack.c.l.b16 %v3212
    %v4307 = vunpack.c.h.b16 %v3212
    %v4308 = vunpack.c.l.b16 %v3213
    %v4309 = vunpack.c.h.b16 %v3213
    %v4310 = vunpack.c.l.b16 %v3214
    %v4311 = vunpack.c.h.b16 %v3214
    %v4312 = vunpack.c.l.b16 %v3215
    %v4313 = vunpack.c.h.b16 %v3215
    %v4314 = vunpack.c.l.b16 %v3216
    %v4315 = vunpack.c.h.b16 %v3216
    %v4316 = vunpack.c.l.b16 %v3217
    %v4317 = vunpack.c.h.b16 %v3217
    %v4318 = vunpack.c.l.b16 %v3218
    %v4319 = vunpack.c.h.b16 %v3218
    %v4320 = vunpack.c.l.b16 %v3219
    %v4321 = vunpack.c.h.b16 %v3219
    %v4322 = vunpack.c.l.b16 %v3220
    %v4323 = vunpack.c.h.b16 %v3220
    %v4324 = vunpack.c.l.b16 %v3221
    %v4325 = vunpack.c.h.b16 %v3221
    %v4326 = vunpack.c.l.b16 %v3222
    %v4327 = vunpack.c.h.b16 %v3222
    %v4328 = vunpack.c.l.b16 %v3223
    %v4329 = vunpack.c.h.b16 %v3223
    %v4330 = vunpack.c.l.b16 %v3224
    %v4331 = vunpack.c.h.b16 %v3224
    %v4332 = vunpack.c.l.b16 %v3225
    %v4333 = vunpack.c.h.b16 %v3225
    %v4334 = vunpack.c.l.b16 %v3226
    %v4335 = vunpack.c.h.b16 %v3226
    %v4336 = vunpack.c.l.b16 %v3227
    %v4337 = vunpack.c.h.b16 %v3227
    %v4338 = vunpack.c.l.b16 %v3228
    %v4339 = vunpack.c.h.b16 %v3228
    %v4340 = vunpack.c.l.b16 %v3229
    %v4341 = vunpack.c.h.b16 %v3229
    %v4342 = vunpack.c.l.b16 %v3230
    %v4343 = vunpack.c.h.b16 %v3230
    %v4344 = vunpack.c.l.b16 %v3231
    %v4345 = vunpack.c.h.b16 %v3231
    %v4346 = vunpack.c.l.b16 %v3232
    %v4347 = vunpack.c.h.b16 %v3232
    %v4348 = vunpack.c.l.b16 %v3233
    %v4349 = vunpack.c.h.b16 %v3233
    %v4350 = vunpack.c.l.b16 %v3234
    %v4351 = vunpack.c.h.b16 %v3234
    %v4352 = vunpack.c.l.b16 %v3235
    %v4353 = vunpack.c.h.b16 %v3235
    %v4354 = vunpack.c.l.b16 %v3236
    %v4355 = vunpack.c.h.b16 %v3236
    %v4356 = vunpack.c.l.b16 %v3237
    %v4357 = vunpack.c.h.b16 %v3237
    %v4358 = vunpack.c.l.b16 %v3238
    %v4359 = vunpack.c.h.b16 %v3238
    %v4360 = vunpack.c.l.b16 %v3239
    %v4361 = vunpack.c.h.b16 %v3239
    %v4362 = vunpack.c.l.b16 %v3240
    %v4363 = vunpack.c.h.b16 %v3240
    %v4364 = vunpack.c.l.b16 %v3241
    %v4365 = vunpack.c.h.b16 %v3241
    %v4366 = vunpack.c.l.b16 %v3242
    %v4367 = vunpack.c.h.b16 %v3242
    %v4368 = vunpack.c.l.b16 %v3243
    %v4369 = vunpack.c.h.b16 %v3243
    %v4370 = vunpack.c.l.b16 %v3244
    %v4371 = vunpack.c.h.b16 %v3244
    %v4372 = vunpack.c.l.b16 %v3245
    %v4373 = vunpack.c.h.b16 %v3245
    %v4374 = vunpack.c.l.b16 %v3246
    %v4375 = vunpack.c.h.b16 %v3246
    %v4376 = vunpack.c.l.b16 %v3247
    %v4377 = vunpack.c.h.b16 %v3247
    %v4378 = vunpack.c.l.b16 %v3248
    %v4379 = vunpack.c.h.b16 %v3248
    %v4380 = vunpack.c.l.b16 %v3249
    %v4381 = vunpack.c.h.b16 %v3249
    %v4382 = vunpack.c.l.b16 %v3250
    %v4383 = vunpack.c.h.b16 %v3250
    %v4384 = vunpack.c.l.b16 %v3251
    %v4385 = vunpack.c.h.b16 %v3251
    %v4386 = vunpack.c.l.b16 %v3252
    %v4387 = vunpack.c.h.b16 %v3252
    %v4388 = vunpack.c.l.b16 %v3253
    %v4389 = vunpack.c.h.b16 %v3253
    %v4390 = vunpack.c.l.b16 %v3254
    %v4391 = vunpack.c.h.b16 %v3254
    %v4392 = vunpack.c.l.b16 %v3255
    %v4393 = vunpack.c.h.b16 %v3255
    %v4394 = vunpack.c.l.b16 %v3256
    %v4395 = vunpack.c.h.b16 %v3256
    %v4396 = vunpack.c.l.b16 %v3257
    %v4397 = vunpack.c.h.b16 %v3257
    %v4398 = vunpack.c.l.b16 %v3258
    %v4399 = vunpack.c.h.b16 %v3258
    %v4400 = vunpack.c.l.b16 %v3259
    %v4401 = vunpack.c.h.b16 %v3259
    %v4402 = vunpack.c.l.b16 %v3260
    %v4403 = vunpack.c.h.b16 %v3260
    %v4404 = vunpack.c.l.b16 %v3261
    %v4405 = vunpack.c.h.b16 %v3261
    %v4406 = vunpack.c.l.b16 %v3262
    %v4407 = vunpack.c.h.b16 %v3262
    %v4408 = vunpack.c.l.b16 %v3263
    %v4409 = vunpack.c.h.b16 %v3263
    %v4410 = vunpack.c.l.b16 %v3264
    %v4411 = vunpack.c.h.b16 %v3264
    %v4412 = vunpack.c.l.b16 %v3265
    %v4413 = vunpack.c.h.b16 %v3265
    %v4414 = vunpack.c.l.b16 %v3266
    %v4415 = vunpack.c.h.b16 %v3266
    %v4416 = vunpack.c.l.b16 %v3267
    %v4417 = vunpack.c.h.b16 %v3267
    %v4418 = vunpack.c.l.b16 %v3268
    %v4419 = vunpack.c.h.b16 %v3268
    %v4420 = vunpack.c.l.b16 %v3269
    %v4421 = vunpack.c.h.b16 %v3269
    %v4422 = vunpack.c.l.b16 %v3270
    %v4423 = vunpack.c.h.b16 %v3270
    %v4424 = vunpack.c.l.b16 %v3271
    %v4425 = vunpack.c.h.b16 %v3271
    %v4426 = vunpack.c.l.b16 %v3272
    %v4427 = vunpack.c.h.b16 %v3272
    %v4428 = vunpack.c.l.b16 %v3273
    %v4429 = vunpack.c.h.b16 %v3273
    %v4430 = vunpack.c.l.b16 %v3274
    %v4431 = vunpack.c.h.b16 %v3274
    %v4432 = vunpack.c.l.b16 %v3275
    %v4433 = vunpack.c.h.b16 %v3275
    %v4434 = vunpack.c.l.b16 %v3276
    %v4435 = vunpack.c.h.b16 %v3276
    %v4436 = vunpack.c.l.b16 %v3277
    %v4437 = vunpack.c.h.b16 %v3277
    %v4438 = vunpack.c.l.b16 %v3278
    %v4439 = vunpack.c.h.b16 %v3278
    %v4440 = vunpack.c.l.b16 %v3279
    %v4441 = vunpack.c.h.b16 %v3279
    %v4442 = vunpack.c.l.b16 %v3280
    %v4443 = vunpack.c.h.b16 %v3280
    %v4444 = vunpack.c.l.b16 %v3281
    %v4445 = vunpack.c.h.b16 %v3281
    %v4446 = vunpack.c.l.b16 %v3282
    %v4447 = vunpack.c.h.b16 %v3282
    %v4448 = vunpack.c.l.b16 %v3283
    %v4449 = vunpack.c.h.b16 %v3283
    %v4450 = vunpack.c.l.b16 %v3284
    %v4451 = vunpack.c.h.b16 %v3284
    %v4452 = vunpack.c.l.b16 %v3285
    %v4453 = vunpack.c.h.b16 %v3285
    %v4454 = vunpack.c.l.b16 %v3286
    %v4455 = vunpack.c.h.b16 %v3286
    %v4456 = vunpack.c.l.b16 %v3287
    %v4457 = vunpack.c.h.b16 %v3287
    %v4458 = vunpack.c.l.b16 %v3288
    %v4459 = vunpack.c.h.b16 %v3288
    %v4460 = vunpack.c.l.b16 %v3289
    %v4461 = vunpack.c.h.b16 %v3289
    %v4462 = vunpack.c.l.b16 %v3290
    %v4463 = vunpack.c.h.b16 %v3290
    %v4464 = vunpack.c.l.b16 %v3291
    %v4465 = vunpack.c.h.b16 %v3291
    %v4466 = vunpack.c.l.b16 %v3292
    %v4467 = vunpack.c.h.b16 %v3292
    %v4468 = vunpack.c.l.b16 %v3293
    %v4469 = vunpack.c.h.b16 %v3293
    %v4470 = vunpack.c.l.b16 %v3294
    %v4471 = vunpack.c.h.b16 %v3294
    %v4472 = vunpack.c.l.b16 %v3295
    %v4473 = vunpack.c.h.b16 %v3295
    %v4474 = vunpack.c.l.b16 %v3296
    %v4475 = vunpack.c.h.b16 %v3296
    %v4476 = vunpack.c.l.b16 %v3297
    %v4477 = vunpack.c.h.b16 %v3297
    %v4478 = vunpack.c.l.b16 %v3298
    %v4479 = vunpack.c.h.b16 %v3298
    %v4480 = vunpack.c.l.b16 %v3299
    %v4481 = vunpack.c.h.b16 %v3299
    %v4482 = vunpack.c.l.b16 %v3300
    %v4483 = vunpack.c.h.b16 %v3300
    %v4484 = vunpack.c.l.b16 %v3301
    %v4485 = vunpack.c.h.b16 %v3301
    %v4486 = vunpack.c.l.b16 %v3302
    %v4487 = vunpack.c.h.b16 %v3302
    %v4488 = vunpack.c.l.b16 %v3303
    %v4489 = vunpack.c.h.b16 %v3303
    %v4490 = vunpack.c.l.b16 %v3304
    %v4491 = vunpack.c.h.b16 %v3304
    %v4492 = vunpack.c.l.b16 %v3305
    %v4493 = vunpack.c.h.b16 %v3305
    %v4494 = vunpack.c.l.b16 %v3306
    %v4495 = vunpack.c.h.b16 %v3306
    %v4496 = vunpack.c.l.b16 %v3307
    %v4497 = vunpack.c.h.b16 %v3307
    %v4498 = vunpack.c.l.b16 %v3308
    %v4499 = vunpack.c.h.b16 %v3308
    %v4500 = vunpack.c.l.b16 %v3309
    %v4501 = vunpack.c.h.b16 %v3309
    %v4502 = vunpack.c.l.b16 %v3310
    %v4503 = vunpack.c.h.b16 %v3310
    %v4504 = vunpack.c.l.b16 %v3311
    %v4505 = vunpack.c.h.b16 %v3311
    %v4506 = vunpack.c.l.b16 %v3312
    %v4507 = vunpack.c.h.b16 %v3312
    %v4508 = vunpack.c.l.b16 %v3313
    %v4509 = vunpack.c.h.b16 %v3313
    %v4510 = vunpack.c.l.b16 %v3314
    %v4511 = vunpack.c.h.b16 %v3314
    %v4512 = vunpack.c.l.b16 %v3315
    %v4513 = vunpack.c.h.b16 %v3315
    %v4514 = vunpack.c.l.b16 %v3316
    %v4515 = vunpack.c.h.b16 %v3316
    %v4516 = vunpack.c.l.b16 %v3317
    %v4517 = vunpack.c.h.b16 %v3317
    %v4518 = vunpack.c.l.b16 %v3318
    %v4519 = vunpack.c.h.b16 %v3318
    %v4520 = vunpack.c.l.b16 %v3319
    %v4521 = vunpack.c.h.b16 %v3319
    %v4522 = vunpack.c.l.b16 %v3320
    %v4523 = vunpack.c.h.b16 %v3320
    %v4524 = vunpack.c.l.b16 %v3321
    %v4525 = vunpack.c.h.b16 %v3321
    %v4526 = vunpack.c.l.b16 %v3322
    %v4527 = vunpack.c.h.b16 %v3322
    %v4528 = vunpack.c.l.b16 %v3323
    %v4529 = vunpack.c.h.b16 %v3323
    %v4530 = vunpack.c.l.b16 %v3324
    %v4531 = vunpack.c.h.b16 %v3324
    %v4532 = vunpack.c.l.b16 %v3325
    %v4533 = vunpack.c.h.b16 %v3325
    %v4534 = vunpack.c.l.b16 %v3326
    %v4535 = vunpack.c.h.b16 %v3326
    %v4536 = vunpack.c.l.b16 %v3327
    %v4537 = vunpack.c.h.b16 %v3327
    %v4538 = vunpack.c.l.b16 %v3328
    %v4539 = vunpack.c.h.b16 %v3328
    %v4540 = vunpack.c.l.b16 %v3329
    %v4541 = vunpack.c.h.b16 %v3329
    %v4542 = vunpack.c.l.b16 %v3330
    %v4543 = vunpack.c.h.b16 %v3330
    %v4544 = vunpack.c.l.b16 %v3331
    %v4545 = vunpack.c.h.b16 %v3331
    %v4546 = vunpack.c.l.b16 %v3332
    %v4547 = vunpack.c.h.b16 %v3332
    %v4548 = vunpack.c.l.b16 %v3333
    %v4549 = vunpack.c.h.b16 %v3333
    %v4550 = vunpack.c.l.b16 %v3334
    %v4551 = vunpack.c.h.b16 %v3334
    %v4552 = vunpack.c.l.b16 %v3335
    %v4553 = vunpack.c.h.b16 %v3335
    %v4554 = vunpack.c.l.b16 %v3336
    %v4555 = vunpack.c.h.b16 %v3336
    %v4556 = vunpack.c.l.b16 %v3337
    %v4557 = vunpack.c.h.b16 %v3337
    %v4558 = vunpack.c.l.b16 %v3338
    %v4559 = vunpack.c.h.b16 %v3338
    %v4560 = vunpack.c.l.b16 %v3339
    %v4561 = vunpack.c.h.b16 %v3339
    %v4562 = vunpack.c.l.b16 %v3340
    %v4563 = vunpack.c.h.b16 %v3340
    %v4564 = vunpack.c.l.b16 %v3341
    %v4565 = vunpack.c.h.b16 %v3341
    %v4566 = vunpack.c.l.b16 %v3342
    %v4567 = vunpack.c.h.b16 %v3342
    %v4568 = vunpack.c.l.b16 %v3343
    %v4569 = vunpack.c.h.b16 %v3343
    %v4570 = vunpack.c.l.b16 %v3344
    %v4571 = vunpack.c.h.b16 %v3344
    %v4572 = vunpack.c.l.b16 %v3345
    %v4573 = vunpack.c.h.b16 %v3345
    %v4574 = vunpack.c.l.b16 %v3346
    %v4575 = vunpack.c.h.b16 %v3346
    %v4576 = vunpack.c.l.b16 %v3347
    %v4577 = vunpack.c.h.b16 %v3347
    %v4578 = vunpack.c.l.b16 %v3348
    %v4579 = vunpack.c.h.b16 %v3348
    %v4580 = vunpack.c.l.b16 %v3349
    %v4581 = vunpack.c.h.b16 %v3349
    %v4582 = vunpack.c.l.b16 %v3350
    %v4583 = vunpack.c.h.b16 %v3350
    %v4584 = vunpack.c.l.b16 %v3351
    %v4585 = vunpack.c.h.b16 %v3351
    %v4586 = vunpack.c.l.b16 %v3352
    %v4587 = vunpack.c.h.b16 %v3352
    %v4588 = vunpack.c.l.b16 %v3353
    %v4589 = vunpack.c.h.b16 %v3353
    %v4590 = vunpack.c.l.b16 %v3354
    %v4591 = vunpack.c.h.b16 %v3354
    %v4592 = vunpack.c.l.b16 %v3355
    %v4593 = vunpack.c.h.b16 %v3355
    %v4594 = vunpack.c.l.b16 %v3356
    %v4595 = vunpack.c.h.b16 %v3356
    %v4596 = vunpack.c.l.b16 %v3357
    %v4597 = vunpack.c.h.b16 %v3357
    %v4598 = vunpack.c.l.b16 %v3358
    %v4599 = vunpack.c.h.b16 %v3358
    %v4600 = vunpack.c.l.b16 %v3359
    %v4601 = vunpack.c.h.b16 %v3359
    %v4602 = vunpack.c.l.b16 %v3360
    %v4603 = vunpack.c.h.b16 %v3360
    %v4604 = vunpack.c.l.b16 %v3361
    %v4605 = vunpack.c.h.b16 %v3361
    %v4606 = vunpack.c.l.b16 %v3362
    %v4607 = vunpack.c.h.b16 %v3362
    %v4608 = vunpack.c.l.b16 %v3363
    %v4609 = vunpack.c.h.b16 %v3363
    %v4610 = vunpack.c.l.b16 %v3364
    %v4611 = vunpack.c.h.b16 %v3364
    %v4612 = vunpack.c.l.b16 %v3365
    %v4613 = vunpack.c.h.b16 %v3365
    %v4614 = vunpack.c.l.b16 %v3366
    %v4615 = vunpack.c.h.b16 %v3366
    %v4616 = vunpack.c.l.b16 %v3367
    %v4617 = vunpack.c.h.b16 %v3367
    %v4618 = vunpack.c.l.b16 %v3368
    %v4619 = vunpack.c.h.b16 %v3368
    %v4620 = vunpack.c.l.b16 %v3369
    %v4621 = vunpack.c.h.b16 %v3369
    %v4622 = vunpack.c.l.b16 %v3370
    %v4623 = vunpack.c.h.b16 %v3370
    %v4624 = vunpack.c.l.b16 %v3371
    %v4625 = vunpack.c.h.b16 %v3371
    %v4626 = vunpack.c.l.b16 %v3372
    %v4627 = vunpack.c.h.b16 %v3372
    %v4628 = vunpack.c.l.b16 %v3373
    %v4629 = vunpack.c.h.b16 %v3373
    %v4630 = vunpack.c.l.b16 %v3374
    %v4631 = vunpack.c.h.b16 %v3374
    %v4632 = vunpack.c.l.b16 %v3375
    %v4633 = vunpack.c.h.b16 %v3375
    %v4634 = vunpack.c.l.b16 %v3376
    %v4635 = vunpack.c.h.b16 %v3376
    %v4636 = vunpack.c.l.b16 %v3377
    %v4637 = vunpack.c.h.b16 %v3377
    %v4638 = vunpack.c.l.b16 %v3378
    %v4639 = vunpack.c.h.b16 %v3378
    %v4640 = vunpack.c.l.b16 %v3379
    %v4641 = vunpack.c.h.b16 %v3379
    %v4642 = vunpack.c.l.b16 %v3380
    %v4643 = vunpack.c.h.b16 %v3380
    %v4644 = vunpack.c.l.b16 %v3381
    %v4645 = vunpack.c.h.b16 %v3381
    %v4646 = vunpack.c.l.b16 %v3382
    %v4647 = vunpack.c.h.b16 %v3382
    %v4648 = vunpack.c.l.b16 %v3383
    %v4649 = vunpack.c.h.b16 %v3383
    %v4650 = vunpack.c.l.b16 %v3384
    %v4651 = vunpack.c.h.b16 %v3384
    %v4652 = vunpack.c.l.b16 %v3385
    %v4653 = vunpack.c.h.b16 %v3385
    %v4654 = vunpack.c.l.b16 %v3386
    %v4655 = vunpack.c.h.b16 %v3386
    %v4656 = vunpack.c.l.b16 %v3387
    %v4657 = vunpack.c.h.b16 %v3387
    %v4658 = vunpack.c.l.b16 %v3388
    %v4659 = vunpack.c.h.b16 %v3388
    %v4660 = vunpack.c.l.b16 %v3389
    %v4661 = vunpack.c.h.b16 %v3389
    %v4662 = vunpack.c.l.b16 %v3390
    %v4663 = vunpack.c.h.b16 %v3390
    %v4664 = vunpack.c.l.b16 %v3391
    %v4665 = vunpack.c.h.b16 %v3391
    %v4666 = vunpack.c.l.b16 %v3392
    %v4667 = vunpack.c.h.b16 %v3392
    %v4668 = vunpack.c.l.b16 %v3393
    %v4669 = vunpack.c.h.b16 %v3393
    %v4670 = vunpack.c.l.b16 %v3394
    %v4671 = vunpack.c.h.b16 %v3394
    %v4672 = vunpack.c.l.b16 %v3395
    %v4673 = vunpack.c.h.b16 %v3395
    %v4674 = vunpack.c.l.b16 %v3396
    %v4675 = vunpack.c.h.b16 %v3396
    %v4676 = vunpack.c.l.b16 %v3397
    %v4677 = vunpack.c.h.b16 %v3397
    %v4678 = vunpack.c.l.b16 %v3398
    %v4679 = vunpack.c.h.b16 %v3398
    %v4680 = vunpack.c.l.b16 %v3399
    %v4681 = vunpack.c.h.b16 %v3399
    %v4682 = vunpack.c.l.b16 %v3400
    %v4683 = vunpack.c.h.b16 %v3400
    %v4684 = vunpack.c.l.b16 %v3401
    %v4685 = vunpack.c.h.b16 %v3401
    %v4686 = vunpack.c.l.b16 %v3402
    %v4687 = vunpack.c.h.b16 %v3402
    %v4688 = vunpack.c.l.b16 %v3403
    %v4689 = vunpack.c.h.b16 %v3403
    %v4690 = vunpack.c.l.b16 %v3404
    %v4691 = vunpack.c.h.b16 %v3404
    %v4692 = vunpack.c.l.b16 %v3405
    %v4693 = vunpack.c.h.b16 %v3405
    %v4694 = vunpack.c.l.b16 %v3406
    %v4695 = vunpack.c.h.b16 %v3406
    %v4696 = vunpack.c.l.b16 %v3407
    %v4697 = vunpack.c.h.b16 %v3407
    %v4698 = vunpack.c.l.b16 %v3408
    %v4699 = vunpack.c.h.b16 %v3408
    %v4700 = vunpack.c.l.b16 %v3409
    %v4701 = vunpack.c.h.b16 %v3409
    %v4702 = vunpack.c.l.b16 %v3410
    %v4703 = vunpack.c.h.b16 %v3410
    %v4704 = vunpack.c.l.b16 %v3411
    %v4705 = vunpack.c.h.b16 %v3411
    %v4706 = vunpack.c.l.b16 %v3412
    %v4707 = vunpack.c.h.b16 %v3412
    %v4708 = vunpack.c.l.b16 %v3413
    %v4709 = vunpack.c.h.b16 %v3413
    %v4710 = vunpack.c.l.b16 %v3414
    %v4711 = vunpack.c.h.b16 %v3414
    %v4712 = vunpack.c.l.b16 %v3415
    %v4713 = vunpack.c.h.b16 %v3415
    %v4714 = vunpack.c.l.b16 %v3416
    %v4715 = vunpack.c.h.b16 %v3416
    %v4716 = vunpack.c.l.b16 %v3417
    %v4717 = vunpack.c.h.b16 %v3417
    %v4718 = vunpack.c.l.b16 %v3418
    %v4719 = vunpack.c.h.b16 %v3418
    %v4720 = vunpack.c.l.b16 %v3419
    %v4721 = vunpack.c.h.b16 %v3419
    %v4722 = vunpack.c.l.b16 %v3420
    %v4723 = vunpack.c.h.b16 %v3420
    %v4724 = vunpack.c.l.b16 %v3421
    %v4725 = vunpack.c.h.b16 %v3421
    %v4726 = vunpack.c.l.b16 %v3422
    %v4727 = vunpack.c.h.b16 %v3422
    %v4728 = vunpack.c.l.b16 %v3423
    %v4729 = vunpack.c.h.b16 %v3423
    %v4730 = vunpack.c.l.b16 %v3424
    %v4731 = vunpack.c.h.b16 %v3424
    %v4732 = vunpack.c.l.b16 %v3425
    %v4733 = vunpack.c.h.b16 %v3425
    %v4734 = vunpack.c.l.b16 %v3426
    %v4735 = vunpack.c.h.b16 %v3426
    %v4736 = vunpack.c.l.b16 %v3427
    %v4737 = vunpack.c.h.b16 %v3427
    %v4738 = vunpack.c.l.b16 %v3428
    %v4739 = vunpack.c.h.b16 %v3428
    %v4740 = vunpack.c.l.b16 %v3429
    %v4741 = vunpack.c.h.b16 %v3429
    %v4742 = vunpack.c.l.b16 %v3430
    %v4743 = vunpack.c.h.b16 %v3430
    %v4744 = vunpack.c.l.b16 %v3431
    %v4745 = vunpack.c.h.b16 %v3431
    %v4746 = vunpack.c.l.b16 %v3432
    %v4747 = vunpack.c.h.b16 %v3432
    %v4748 = vunpack.c.l.b16 %v3433
    %v4749 = vunpack.c.h.b16 %v3433
    %v4750 = vunpack.c.l.b16 %v3434
    %v4751 = vunpack.c.h.b16 %v3434
    %v4752 = vunpack.c.l.b16 %v3435
    %v4753 = vunpack.c.h.b16 %v3435
    %v4754 = vunpack.c.l.b16 %v3436
    %v4755 = vunpack.c.h.b16 %v3436
    %v4756 = vunpack.c.l.b16 %v3437
    %v4757 = vunpack.c.h.b16 %v3437
    %v4758 = vunpack.c.l.b16 %v3438
    %v4759 = vunpack.c.h.b16 %v3438
    %v4760 = vunpack.c.l.b16 %v3439
    %v4761 = vunpack.c.h.b16 %v3439
    %v4762 = vunpack.c.l.b16 %v3440
    %v4763 = vunpack.c.h.b16 %v3440
    %v4764 = vunpack.c.l.b16 %v3441
    %v4765 = vunpack.c.h.b16 %v3441
    %v4766 = vunpack.c.l.b16 %v3442
    %v4767 = vunpack.c.h.b16 %v3442
    %v4768 = vunpack.c.l.b16 %v3443
    %v4769 = vunpack.c.h.b16 %v3443
    %v4770 = vunpack.c.l.b16 %v3444
    %v4771 = vunpack.c.h.b16 %v3444
    %v4772 = vunpack.c.l.b16 %v3445
    %v4773 = vunpack.c.h.b16 %v3445
    %v4774 = vunpack.c.l.b16 %v3446
    %v4775 = vunpack.c.h.b16 %v3446
    %v4776 = vunpack.c.l.b16 %v3447
    %v4777 = vunpack.c.h.b16 %v3447
    %v4778 = vunpack.c.l.b16 %v3448
    %v4779 = vunpack.c.h.b16 %v3448
    %v4780 = vunpack.c.l.b16 %v3449
    %v4781 = vunpack.c.h.b16 %v3449
    %v4782 = vunpack.c.l.b16 %v3450
    %v4783 = vunpack.c.h.b16 %v3450
    %v4784 = vunpack.c.l.b16 %v3451
    %v4785 = vunpack.c.h.b16 %v3451
    %v4786 = vunpack.c.l.b16 %v3452
    %v4787 = vunpack.c.h.b16 %v3452
    %v4788 = vunpack.c.l.b16 %v3453
    %v4789 = vunpack.c.h.b16 %v3453
    %v4790 = vunpack.c.l.b16 %v3454
    %v4791 = vunpack.c.h.b16 %v3454
    %v4792 = vunpack.c.l.b16 %v3455
    %v4793 = vunpack.c.h.b16 %v3455
    %v4794 = vunpack.c.l.b16 %v3456
    %v4795 = vunpack.c.h.b16 %v3456
    %v4796 = vunpack.c.l.b16 %v3457
    %v4797 = vunpack.c.h.b16 %v3457
    %v4798 = vunpack.c.l.b16 %v3458
    %v4799 = vunpack.c.h.b16 %v3458
    %v4800 = vunpack.c.l.b16 %v3459
    %v4801 = vunpack.c.h.b16 %v3459
    %v4802 = vunpack.c.l.b16 %v3460
    %v4803 = vunpack.c.h.b16 %v3460
    %v4804 = vunpack.c.l.b16 %v3461
    %v4805 = vunpack.c.h.b16 %v3461
    %v4806 = vunpack.c.l.b16 %v3462
    %v4807 = vunpack.c.h.b16 %v3462
    %v4808 = vunpack.c.l.b16 %v3463
    %v4809 = vunpack.c.h.b16 %v3463
    %v4810 = vunpack.c.l.b16 %v3464
    %v4811 = vunpack.c.h.b16 %v3464
    %v4812 = vunpack.c.l.b16 %v3465
    %v4813 = vunpack.c.h.b16 %v3465
    %v4814 = vunpack.c.l.b16 %v3466
    %v4815 = vunpack.c.h.b16 %v3466
    %v4816 = vunpack.c.l.b16 %v3467
    %v4817 = vunpack.c.h.b16 %v3467
    %v4818 = vunpack.c.l.b16 %v3468
    %v4819 = vunpack.c.h.b16 %v3468
    %v4820 = vunpack.c.l.b16 %v3469
    %v4821 = vunpack.c.h.b16 %v3469
    %v4822 = vunpack.c.l.b16 %v3470
    %v4823 = vunpack.c.h.b16 %v3470
    %v4824 = vunpack.c.l.b16 %v3471
    %v4825 = vunpack.c.h.b16 %v3471
    %v4826 = vunpack.c.l.b16 %v3472
    %v4827 = vunpack.c.h.b16 %v3472
    %v4828 = vunpack.c.l.b16 %v3473
    %v4829 = vunpack.c.h.b16 %v3473
    %v4830 = vunpack.c.l.b16 %v3474
    %v4831 = vunpack.c.h.b16 %v3474
    %v4832 = vunpack.c.l.b16 %v3475
    %v4833 = vunpack.c.h.b16 %v3475
    %v4834 = vunpack.c.l.b16 %v3476
    %v4835 = vunpack.c.h.b16 %v3476
    %v4836 = vunpack.c.l.b16 %v3477
    %v4837 = vunpack.c.h.b16 %v3477
    %v4838 = vunpack.c.l.b16 %v3478
    %v4839 = vunpack.c.h.b16 %v3478
    %v4840 = vunpack.c.l.b16 %v3479
    %v4841 = vunpack.c.h.b16 %v3479
    %v4842 = vunpack.c.l.b16 %v3480
    %v4843 = vunpack.c.h.b16 %v3480
    %v4844 = vunpack.c.l.b16 %v3481
    %v4845 = vunpack.c.h.b16 %v3481
    %v4846 = vunpack.c.l.b16 %v3482
    %v4847 = vunpack.c.h.b16 %v3482
    %v4848 = vunpack.c.l.b16 %v3483
    %v4849 = vunpack.c.h.b16 %v3483
    %v4850 = vunpack.c.l.b16 %v3484
    %v4851 = vunpack.c.h.b16 %v3484
    %v4852 = vunpack.c.l.b16 %v3485
    %v4853 = vunpack.c.h.b16 %v3485
    %v4854 = vunpack.c.l.b16 %v3486
    %v4855 = vunpack.c.h.b16 %v3486
    %v4856 = vunpack.c.l.b16 %v3487
    %v4857 = vunpack.c.h.b16 %v3487
    %v4858 = vunpack.c.l.b16 %v3488
    %v4859 = vunpack.c.h.b16 %v3488
    %v4860 = vunpack.c.l.b16 %v3489
    %v4861 = vunpack.c.h.b16 %v3489
    %v4862 = vunpack.c.l.b16 %v3490
    %v4863 = vunpack.c.h.b16 %v3490
    %v4864 = vunpack.c.l.b16 %v3491
    %v4865 = vunpack.c.h.b16 %v3491
    %v4866 = vunpack.c.l.b16 %v3492
    %v4867 = vunpack.c.h.b16 %v3492
    %v4868 = vunpack.c.l.b16 %v3493
    %v4869 = vunpack.c.h.b16 %v3493
    %v4870 = vunpack.c.l.b16 %v3494
    %v4871 = vunpack.c.h.b16 %v3494
    %v4872 = vunpack.c.l.b16 %v3495
    %v4873 = vunpack.c.h.b16 %v3495
    %v4874 = vunpack.c.l.b16 %v3496
    %v4875 = vunpack.c.h.b16 %v3496
    %v4876 = vunpack.c.l.b16 %v3497
    %v4877 = vunpack.c.h.b16 %v3497
    %v4878 = vunpack.c.l.b16 %v3498
    %v4879 = vunpack.c.h.b16 %v3498
    %v4880 = vunpack.c.l.b16 %v3499
    %v4881 = vunpack.c.h.b16 %v3499
    %v4882 = vunpack.c.l.b16 %v3500
    %v4883 = vunpack.c.h.b16 %v3500
    %v4884 = vunpack.c.l.b16 %v3501
    %v4885 = vunpack.c.h.b16 %v3501
    %v4886 = vunpack.c.l.b16 %v3502
    %v4887 = vunpack.c.h.b16 %v3502
    %v4888 = vunpack.c.l.b16 %v3503
    %v4889 = vunpack.c.h.b16 %v3503
    %v4890 = vunpack.c.l.b16 %v3504
    %v4891 = vunpack.c.h.b16 %v3504
    %v4892 = vunpack.c.l.b16 %v3505
    %v4893 = vunpack.c.h.b16 %v3505
    %v4894 = vunpack.c.l.b16 %v3506
    %v4895 = vunpack.c.h.b16 %v3506
    %v4896 = vunpack.c.l.b16 %v3507
    %v4897 = vunpack.c.h.b16 %v3507
    %v4898 = vunpack.c.l.b16 %v3508
    %v4899 = vunpack.c.h.b16 %v3508
    %v4900 = vunpack.c.l.b16 %v3509
    %v4901 = vunpack.c.h.b16 %v3509
    %v4902 = vunpack.c.l.b16 %v3510
    %v4903 = vunpack.c.h.b16 %v3510
    %v4904 = vunpack.c.l.b16 %v3511
    %v4905 = vunpack.c.h.b16 %v3511
    %v4906 = vunpack.c.l.b16 %v3512
    %v4907 = vunpack.c.h.b16 %v3512
    %v4908 = vunpack.c.l.b16 %v3513
    %v4909 = vunpack.c.h.b16 %v3513
    %v4910 = vunpack.c.l.b16 %v3514
    %v4911 = vunpack.c.h.b16 %v3514
    %v4912 = vunpack.c.l.b16 %v3515
    %v4913 = vunpack.c.h.b16 %v3515
    %v4914 = vunpack.c.l.b16 %v3516
    %v4915 = vunpack.c.h.b16 %v3516
    %v4916 = vunpack.c.l.b16 %v3517
    %v4917 = vunpack.c.h.b16 %v3517
    %v4918 = vunpack.c.l.b16 %v3518
    %v4919 = vunpack.c.h.b16 %v3518
    %v4920 = vunpack.c.l.b16 %v3519
    %v4921 = vunpack.c.h.b16 %v3519
    %v4922 = vunpack.c.l.b16 %v3520
    %v4923 = vunpack.c.h.b16 %v3520
    %v4924 = vunpack.c.l.b16 %v3521
    %v4925 = vunpack.c.h.b16 %v3521
    %v4926 = vunpack.c.l.b16 %v3522
    %v4927 = vunpack.c.h.b16 %v3522
    %v4928 = vunpack.c.l.b16 %v3523
    %v4929 = vunpack.c.h.b16 %v3523
    %v4930 = vunpack.c.l.b16 %v3524
    %v4931 = vunpack.c.h.b16 %v3524
    %v4932 = vunpack.c.l.b16 %v3525
    %v4933 = vunpack.c.h.b16 %v3525
    %v4934 = vunpack.c.l.b16 %v3526
    %v4935 = vunpack.c.h.b16 %v3526
    %v4936 = vunpack.c.l.b16 %v3527
    %v4937 = vunpack.c.h.b16 %v3527
    %v4938 = vunpack.c.l.b16 %v3528
    %v4939 = vunpack.c.h.b16 %v3528
    %v4940 = vunpack.c.l.b16 %v3529
    %v4941 = vunpack.c.h.b16 %v3529
    %v4942 = vunpack.c.l.b16 %v3530
    %v4943 = vunpack.c.h.b16 %v3530
    %v4944 = vunpack.c.l.b16 %v3531
    %v4945 = vunpack.c.h.b16 %v3531
    %v4946 = vunpack.c.l.b16 %v3532
    %v4947 = vunpack.c.h.b16 %v3532
    %v4948 = vunpack.c.l.b16 %v3533
    %v4949 = vunpack.c.h.b16 %v3533
    %v4950 = vunpack.c.l.b16 %v3534
    %v4951 = vunpack.c.h.b16 %v3534
    %v4952 = vunpack.c.l.b16 %v3535
    %v4953 = vunpack.c.h.b16 %v3535
    %v4954 = vunpack.c.l.b16 %v3536
    %v4955 = vunpack.c.h.b16 %v3536
    %v4956 = vunpack.c.l.b16 %v3537
    %v4957 = vunpack.c.h.b16 %v3537
    %v4958 = vunpack.c.l.b16 %v3538
    %v4959 = vunpack.c.h.b16 %v3538
    %v4960 = vunpack.c.l.b16 %v3539
    %v4961 = vunpack.c.h.b16 %v3539
    %v4962 = vunpack.c.l.b16 %v3540
    %v4963 = vunpack.c.h.b16 %v3540
    %v4964 = vunpack.c.l.b16 %v3541
    %v4965 = vunpack.c.h.b16 %v3541
    %v4966 = vunpack.c.l.b16 %v3542
    %v4967 = vunpack.c.h.b16 %v3542
    %v4968 = vunpack.c.l.b16 %v3543
    %v4969 = vunpack.c.h.b16 %v3543
    %v4970 = vunpack.c.l.b16 %v3544
    %v4971 = vunpack.c.h.b16 %v3544
    %v4972 = vunpack.c.l.b16 %v3545
    %v4973 = vunpack.c.h.b16 %v3545
    %v4974 = vunpack.c.l.b16 %v3546
    %v4975 = vunpack.c.h.b16 %v3546
    %v4976 = vunpack.c.l.b16 %v3547
    %v4977 = vunpack.c.h.b16 %v3547
    %v4978 = vunpack.c.l.b16 %v3548
    %v4979 = vunpack.c.h.b16 %v3548
    %v4980 = vunpack.c.l.b16 %v3549
    %v4981 = vunpack.c.h.b16 %v3549
    %v4982 = vunpack.c.l.b16 %v3550
    %v4983 = vunpack.c.h.b16 %v3550
    %v4984 = vunpack.c.l.b16 %v3551
    %v4985 = vunpack.c.h.b16 %v3551
    %v4986 = vunpack.c.l.b16 %v3552
    %v4987 = vunpack.c.h.b16 %v3552
    %v4988 = vunpack.c.l.b16 %v3553
    %v4989 = vunpack.c.h.b16 %v3553
    %v4990 = vunpack.c.l.b16 %v3554
    %v4991 = vunpack.c.h.b16 %v3554
    %v4992 = vunpack.c.l.b16 %v3555
    %v4993 = vunpack.c.h.b16 %v3555
    %v4994 = vunpack.c.l.b16 %v3556
    %v4995 = vunpack.c.h.b16 %v3556
    %v4996 = vunpack.c.l.b16 %v3557
    %v4997 = vunpack.c.h.b16 %v3557
    %v4998 = vunpack.c.l.b16 %v3558
    %v4999 = vunpack.c.h.b16 %v3558
    %v5000 = vunpack.c.l.b16 %v3559
    %v5001 = vunpack.c.h.b16 %v3559
    %v5002 = vunpack.c.l.b16 %v3560
    %v5003 = vunpack.c.h.b16 %v3560
    %v5004 = vunpack.c.l.b16 %v3561
    %v5005 = vunpack.c.h.b16 %v3561
    %v5006 = vunpack.c.l.b16 %v3562
    %v5007 = vunpack.c.h.b16 %v3562
    %v5008 = vunpack.c.l.b16 %v3563
    %v5009 = vunpack.c.h.b16 %v3563
    %v5010 = vunpack.c.l.b16 %v3564
    %v5011 = vunpack.c.h.b16 %v3564
    %v5012 = vunpack.c.l.b16 %v3565
    %v5013 = vunpack.c.h.b16 %v3565
    %v5014 = vunpack.c.l.b16 %v3566
    %v5015 = vunpack.c.h.b16 %v3566
    %v5016 = vunpack.c.l.b16 %v3567
    %v5017 = vunpack.c.h.b16 %v3567
    %v5018 = vunpack.c.l.b16 %v3568
    %v5019 = vunpack.c.h.b16 %v3568
    %v5020 = vunpack.c.l.b16 %v3569
    %v5021 = vunpack.c.h.b16 %v3569
    %v5022 = vunpack.c.l.b16 %v3570
    %v5023 = vunpack.c.h.b16 %v3570
    %v5024 = vunpack.c.l.b16 %v3571
    %v5025 = vunpack.c.h.b16 %v3571
    %v5026 = vunpack.c.l.b16 %v3572
    %v5027 = vunpack.c.h.b16 %v3572
    %v5028 = vunpack.c.l.b16 %v3573
    %v5029 = vunpack.c.h.b16 %v3573
    %v5030 = vunpack.c.l.b16 %v3574
    %v5031 = vunpack.c.h.b16 %v3574
    %v5032 = vunpack.c.l.b16 %v3575
    %v5033 = vunpack.c.h.b16 %v3575
    %v5034 = vunpack.c.l.b16 %v3576
    %v5035 = vunpack.c.h.b16 %v3576
    %v5036 = vunpack.c.l.b16 %v3577
    %v5037 = vunpack.c.h.b16 %v3577
    %v5038 = vunpack.c.l.b16 %v3578
    %v5039 = vunpack.c.h.b16 %v3578
    %v5040 = vunpack.c.l.b16 %v3579
    %v5041 = vunpack.c.h.b16 %v3579
    %v5042 = vunpack.c.l.b16 %v3580
    %v5043 = vunpack.c.h.b16 %v3580
    %v5044 = vunpack.c.l.b16 %v3581
    %v5045 = vunpack.c.h.b16 %v3581
    %v5046 = vunpack.c.l.b16 %v3582
    %v5047 = vunpack.c.h.b16 %v3582
    %v5048 = vunpack.c.l.b16 %v3583
    %v5049 = vunpack.c.h.b16 %v3583
    %v5050 = vunpack.c.l.b16 %v3584
    %v5051 = vunpack.c.h.b16 %v3584
    %v5052 = vunpack.c.l.b16 %v3585
    %v5053 = vunpack.c.h.b16 %v3585
    %v5054 = vunpack.c.l.b16 %v3586
    %v5055 = vunpack.c.h.b16 %v3586
    %v5056 = vunpack.c.l.b16 %v3587
    %v5057 = vunpack.c.h.b16 %v3587
    %v5058 = vunpack.c.l.b16 %v3588
    %v5059 = vunpack.c.h.b16 %v3588
    %v5060 = vunpack.c.l.b16 %v3589
    %v5061 = vunpack.c.h.b16 %v3589
    %v5062 = vunpack.c.l.b16 %v3590
    %v5063 = vunpack.c.h.b16 %v3590
    %v5064 = vunpack.c.l.b16 %v3591
    %v5065 = vunpack.c.h.b16 %v3591
    %v5066 = vunpack.c.l.b16 %v3592
    %v5067 = vunpack.c.h.b16 %v3592
    %v5068 = vunpack.c.l.b16 %v3593
    %v5069 = vunpack.c.h.b16 %v3593
    %v5070 = vunpack.c.l.b16 %v3594
    %v5071 = vunpack.c.h.b16 %v3594
    %v5072 = vunpack.c.l.b16 %v3595
    %v5073 = vunpack.c.h.b16 %v3595
    %v5074 = vunpack.c.l.b16 %v3596
    %v5075 = vunpack.c.h.b16 %v3596
    %v5076 = vunpack.c.l.b16 %v3597
    %v5077 = vunpack.c.h.b16 %v3597
    %v5078 = vunpack.c.l.b16 %v3598
    %v5079 = vunpack.c.h.b16 %v3598
    %v5080 = vunpack.c.l.b16 %v3599
    %v5081 = vunpack.c.h.b16 %v3599
    %v5082 = vunpack.c.l.b16 %v3600
    %v5083 = vunpack.c.h.b16 %v3600
    %v5084 = vunpack.c.l.b16 %v3601
    %v5085 = vunpack.c.h.b16 %v3601
    %v5086 = vunpack.c.l.b16 %v3602
    %v5087 = vunpack.c.h.b16 %v3602
    %v5088 = vunpack.c.l.b16 %v3603
    %v5089 = vunpack.c.h.b16 %v3603
    %v5090 = vunpack.c.l.b16 %v3604
    %v5091 = vunpack.c.h.b16 %v3604
    %v5092 = vunpack.c.l.b16 %v3605
    %v5093 = vunpack.c.h.b16 %v3605
    %v5094 = vunpack.c.l.b16 %v3606
    %v5095 = vunpack.c.h.b16 %v3606
    %v5096 = vunpack.c.l.b16 %v3607
    %v5097 = vunpack.c.h.b16 %v3607
    %v5098 = vunpack.c.l.b16 %v3608
    %v5099 = vunpack.c.h.b16 %v3608
    %v5100 = vunpack.c.l.b16 %v3609
    %v5101 = vunpack.c.h.b16 %v3609
    %v5102 = vunpack.c.l.b16 %v3610
    %v5103 = vunpack.c.h.b16 %v3610
    %v5104 = vunpack.c.l.b16 %v3611
    %v5105 = vunpack.c.h.b16 %v3611
    %v5106 = vunpack.c.l.b16 %v3612
    %v5107 = vunpack.c.h.b16 %v3612
    %v5108 = vunpack.c.l.b16 %v3613
    %v5109 = vunpack.c.h.b16 %v3613
    %v5110 = vunpack.c.l.b16 %v3614
    %v5111 = vunpack.c.h.b16 %v3614
    %v5112 = vunpack.c.l.b16 %v3615
    %v5113 = vunpack.c.h.b16 %v3615
    %v5114 = vunpack.c.l.b16 %v3616
    %v5115 = vunpack.c.h.b16 %v3616
    %v5116 = vunpack.c.l.b16 %v3617
    %v5117 = vunpack.c.h.b16 %v3617
    %v5118 = vunpack.c.l.b16 %v3618
    %v5119 = vunpack.c.h.b16 %v3618
    %v5120 = vunpack.c.l.b16 %v3619
    %v5121 = vunpack.c.h.b16 %v3619
    %v5122 = vunpack.c.l.b16 %v3620
    %v5123 = vunpack.c.h.b16 %v3620
    %v5124 = vunpack.c.l.b16 %v3621
    %v5125 = vunpack.c.h.b16 %v3621
    %v5126 = vunpack.c.l.b16 %v3622
    %v5127 = vunpack.c.h.b16 %v3622
    %v5128 = vunpack.c.l.b16 %v3623
    %v5129 = vunpack.c.h.b16 %v3623
    %v5130 = vunpack.c.l.b16 %v3624
    %v5131 = vunpack.c.h.b16 %v3624
    %v5132 = vunpack.c.l.b16 %v3625
    %v5133 = vunpack.c.h.b16 %v3625
    %v5134 = vunpack.c.l.b16 %v3626
    %v5135 = vunpack.c.h.b16 %v3626
    %v5136 = vunpack.c.l.b16 %v3627
    %v5137 = vunpack.c.h.b16 %v3627
    %v5138 = vunpack.c.l.b16 %v3628
    %v5139 = vunpack.c.h.b16 %v3628
    %v5140 = vunpack.c.l.b16 %v3629
    %v5141 = vunpack.c.h.b16 %v3629
    %v5142 = vunpack.c.l.b16 %v3630
    %v5143 = vunpack.c.h.b16 %v3630
    %v5144 = vunpack.c.l.b16 %v3631
    %v5145 = vunpack.c.h.b16 %v3631
    %v5146 = vunpack.c.l.b16 %v3632
    %v5147 = vunpack.c.h.b16 %v3632
    %v5148 = vunpack.c.l.b16 %v3633
    %v5149 = vunpack.c.h.b16 %v3633
    %v5150 = vunpack.c.l.b16 %v3634
    %v5151 = vunpack.c.h.b16 %v3634
    %v5152 = vunpack.c.l.b16 %v3635
    %v5153 = vunpack.c.h.b16 %v3635
    %v5154 = vunpack.c.l.b16 %v3636
    %v5155 = vunpack.c.h.b16 %v3636
    %v5156 = vunpack.c.l.b16 %v3637
    %v5157 = vunpack.c.h.b16 %v3637
    %v5158 = vunpack.c.l.b16 %v3638
    %v5159 = vunpack.c.h.b16 %v3638
    %v5160 = vunpack.c.l.b16 %v3639
    %v5161 = vunpack.c.h.b16 %v3639
    %v5162 = vunpack.c.l.b16 %v3640
    %v5163 = vunpack.c.h.b16 %v3640
    %v5164 = vunpack.c.l.b16 %v3641
    %v5165 = vunpack.c.h.b16 %v3641
    %v5166 = vunpack.c.l.b16 %v3642
    %v5167 = vunpack.c.h.b16 %v3642
    %v5168 = vunpack.c.l.b16 %v3643
    %v5169 = vunpack.c.h.b16 %v3643
    %v5170 = vunpack.c.l.b16 %v3644
    %v5171 = vunpack.c.h.b16 %v3644
    %v5172 = vunpack.c.l.b16 %v3645
    %v5173 = vunpack.c.h.b16 %v3645
    %v5174 = vunpack.c.l.b16 %v3646
    %v5175 = vunpack.c.h.b16 %v3646
    %v5176 = vunpack.c.l.b16 %v3647
    %v5177 = vunpack.c.h.b16 %v3647
    %v5178 = vunpack.c.l.b16 %v3648
    %v5179 = vunpack.c.h.b16 %v3648
    %v5180 = vunpack.c.l.b16 %v3649
    %v5181 = vunpack.c.h.b16 %v3649
    %v5182 = vunpack.c.l.b16 %v3650
    %v5183 = vunpack.c.h.b16 %v3650
    %v5184 = vunpack.c.l.b16 %v3651
    %v5185 = vunpack.c.h.b16 %v3651
    %v5186 = vunpack.c.l.b16 %v3652
    %v5187 = vunpack.c.h.b16 %v3652
    %v5188 = vunpack.c.l.b16 %v3653
    %v5189 = vunpack.c.h.b16 %v3653
    %v5190 = vpack.c.b16 %v4174, %v4166
    %v5191 = vpack.c.b16 %v4175, %v4167
    %v5192 = vpack.c.b16 %v4176, %v4168
    %v5193 = vpack.c.b16 %v4177, %v4169
    %v5194 = vpack.c.b16 %v4178, %v4170
    %v5195 = vpack.c.b16 %v4179, %v4171
    %v5196 = vpack.c.b16 %v4180, %v4172
    %v5197 = vpack.c.b16 %v4181, %v4173
    %v5198 = vpack.c.b16 %v4190, %v4182
    %v5199 = vpack.c.b16 %v4191, %v4183
    %v5200 = vpack.c.b16 %v4192, %v4184
    %v5201 = vpack.c.b16 %v4193, %v4185
    %v5202 = vpack.c.b16 %v4194, %v4186
    %v5203 = vpack.c.b16 %v4195, %v4187
    %v5204 = vpack.c.b16 %v4196, %v4188
    %v5205 = vpack.c.b16 %v4197, %v4189
    %v5206 = vpack.c.b16 %v4206, %v4198
    %v5207 = vpack.c.b16 %v4207, %v4199
    %v5208 = vpack.c.b16 %v4208, %v4200
    %v5209 = vpack.c.b16 %v4209, %v4201
    %v5210 = vpack.c.b16 %v4210, %v4202
    %v5211 = vpack.c.b16 %v4211, %v4203
    %v5212 = vpack.c.b16 %v4212, %v4204
    %v5213 = vpack.c.b16 %v4213, %v4205
    %v5214 = vpack.c.b16 %v4222, %v4214
    %v5215 = vpack.c.b16 %v4223, %v4215
    %v5216 = vpack.c.b16 %v4224, %v4216
    %v5217 = vpack.c.b16 %v4225, %v4217
    %v5218 = vpack.c.b16 %v4226, %v4218
    %v5219 = vpack.c.b16 %v4227, %v4219
    %v5220 = vpack.c.b16 %v4228, %v4220
    %v5221 = vpack.c.b16 %v4229, %v4221
    %v5222 = vpack.c.b16 %v4238, %v4230
    %v5223 = vpack.c.b16 %v4239, %v4231
    %v5224 = vpack.c.b16 %v4240, %v4232
    %v5225 = vpack.c.b16 %v4241, %v4233
    %v5226 = vpack.c.b16 %v4242, %v4234
    %v5227 = vpack.c.b16 %v4243, %v4235
    %v5228 = vpack.c.b16 %v4244, %v4236
    %v5229 = vpack.c.b16 %v4245, %v4237
    %v5230 = vpack.c.b16 %v4254, %v4246
    %v5231 = vpack.c.b16 %v4255, %v4247
    %v5232 = vpack.c.b16 %v4256, %v4248
    %v5233 = vpack.c.b16 %v4257, %v4249
    %v5234 = vpack.c.b16 %v4258, %v4250
    %v5235 = vpack.c.b16 %v4259, %v4251
    %v5236 = vpack.c.b16 %v4260, %v4252
    %v5237 = vpack.c.b16 %v4261, %v4253
    %v5238 = vpack.c.b16 %v4270, %v4262
    %v5239 = vpack.c.b16 %v4271, %v4263
    %v5240 = vpack.c.b16 %v4272, %v4264
    %v5241 = vpack.c.b16 %v4273, %v4265
    %v5242 = vpack.c.b16 %v4274, %v4266
    %v5243 = vpack.c.b16 %v4275, %v4267
    %v5244 = vpack.c.b16 %v4276, %v4268
    %v5245 = vpack.c.b16 %v4277, %v4269
    %v5246 = vpack.c.b16 %v4286, %v4278
    %v5247 = vpack.c.b16 %v4287, %v4279
    %v5248 = vpack.c.b16 %v4288, %v4280
    %v5249 = vpack.c.b16 %v4289, %v4281
    %v5250 = vpack.c.b16 %v4290, %v4282
    %v5251 = vpack.c.b16 %v4291, %v4283
    %v5252 = vpack.c.b16 %v4292, %v4284
    %v5253 = vpack.c.b16 %v4293, %v4285
    %v5254 = vpack.c.b16 %v4302, %v4294
    %v5255 = vpack.c.b16 %v4303, %v4295
    %v5256 = vpack.c.b16 %v4304, %v4296
    %v5257 = vpack.c.b16 %v4305, %v4297
    %v5258 = vpack.c.b16 %v4306, %v4298
    %v5259 = vpack.c.b16 %v4307, %v4299
    %v5260 = vpack.c.b16 %v4308, %v4300
    %v5261 = vpack.c.b16 %v4309, %v4301
    %v5262 = vpack.c.b16 %v4318, %v4310
    %v5263 = vpack.c.b16 %v4319, %v4311
    %v5264 = vpack.c.b16 %v4320, %v4312
    %v5265 = vpack.c.b16 %v4321, %v4313
    %v5266 = vpack.c.b16 %v4322, %v4314
    %v5267 = vpack.c.b16 %v4323, %v4315
    %v5268 = vpack.c.b16 %v4324, %v4316
    %v5269 = vpack.c.b16 %v4325, %v4317
    %v5270 = vpack.c.b16 %v4334, %v4326
    %v5271 = vpack.c.b16 %v4335, %v4327
    %v5272 = vpack.c.b16 %v4336, %v4328
    %v5273 = vpack.c.b16 %v4337, %v4329
    %v5274 = vpack.c.b16 %v4338, %v4330
    %v5275 = vpack.c.b16 %v4339, %v4331
    %v5276 = vpack.c.b16 %v4340, %v4332
    %v5277 = vpack.c.b16 %v4341, %v4333
    %v5278 = vpack.c.b16 %v4350, %v4342
    %v5279 = vpack.c.b16 %v4351, %v4343
    %v5280 = vpack.c.b16 %v4352, %v4344
    %v5281 = vpack.c.b16 %v4353, %v4345
    %v5282 = vpack.c.b16 %v4354, %v4346
    %v5283 = vpack.c.b16 %v4355, %v4347
    %v5284 = vpack.c.b16 %v4356, %v4348
    %v5285 = vpack.c.b16 %v4357, %v4349
    %v5286 = vpack.c.b16 %v4366, %v4358
    %v5287 = vpack.c.b16 %v4367, %v4359
    %v5288 = vpack.c.b16 %v4368, %v4360
    %v5289 = vpack.c.b16 %v4369, %v4361
    %v5290 = vpack.c.b16 %v4370, %v4362
    %v5291 = vpack.c.b16 %v4371, %v4363
    %v5292 = vpack.c.b16 %v4372, %v4364
    %v5293 = vpack.c.b16 %v4373, %v4365
    %v5294 = vpack.c.b16 %v4382, %v4374
    %v5295 = vpack.c.b16 %v4383, %v4375
    %v5296 = vpack.c.b16 %v4384, %v4376
    %v5297 = vpack.c.b16 %v4385, %v4377
    %v5298 = vpack.c.b16 %v4386, %v4378
    %v5299 = vpack.c.b16 %v4387, %v4379
    %v5300 = vpack.c.b16 %v4388, %v4380
    %v5301 = vpack.c.b16 %v4389, %v4381
    %v5302 = vpack.c.b16 %v4398, %v4390
    %v5303 = vpack.c.b16 %v4399, %v4391
    %v5304 = vpack.c.b16 %v4400, %v4392
    %v5305 = vpack.c.b16 %v4401, %v4393
    %v5306 = vpack.c.b16 %v4402, %v4394
    %v5307 = vpack.c.b16 %v4403, %v4395
    %v5308 = vpack.c.b16 %v4404, %v4396
    %v5309 = vpack.c.b16 %v4405, %v4397
    %v5310 = vpack.c.b16 %v4414, %v4406
    %v5311 = vpack.c.b16 %v4415, %v4407
    %v5312 = vpack.c.b16 %v4416, %v4408
    %v5313 = vpack.c.b16 %v4417, %v4409
    %v5314 = vpack.c.b16 %v4418, %v4410
    %v5315 = vpack.c.b16 %v4419, %v4411
    %v5316 = vpack.c.b16 %v4420, %v4412
    %v5317 = vpack.c.b16 %v4421, %v4413
    %v5318 = vpack.c.b16 %v4430, %v4422
    %v5319 = vpack.c.b16 %v4431, %v4423
    %v5320 = vpack.c.b16 %v4432, %v4424
    %v5321 = vpack.c.b16 %v4433, %v4425
    %v5322 = vpack.c.b16 %v4434, %v4426
    %v5323 = vpack.c.b16 %v4435, %v4427
    %v5324 = vpack.c.b16 %v4436, %v4428
    %v5325 = vpack.c.b16 %v4437, %v4429
    %v5326 = vpack.c.b16 %v4446, %v4438
    %v5327 = vpack.c.b16 %v4447, %v4439
    %v5328 = vpack.c.b16 %v4448, %v4440
    %v5329 = vpack.c.b16 %v4449, %v4441
    %v5330 = vpack.c.b16 %v4450, %v4442
    %v5331 = vpack.c.b16 %v4451, %v4443
    %v5332 = vpack.c.b16 %v4452, %v4444
    %v5333 = vpack.c.b16 %v4453, %v4445
    %v5334 = vpack.c.b16 %v4462, %v4454
    %v5335 = vpack.c.b16 %v4463, %v4455
    %v5336 = vpack.c.b16 %v4464, %v4456
    %v5337 = vpack.c.b16 %v4465, %v4457
    %v5338 = vpack.c.b16 %v4466, %v4458
    %v5339 = vpack.c.b16 %v4467, %v4459
    %v5340 = vpack.c.b16 %v4468, %v4460
    %v5341 = vpack.c.b16 %v4469, %v4461
    %v5342 = vpack.c.b16 %v4478, %v4470
    %v5343 = vpack.c.b16 %v4479, %v4471
    %v5344 = vpack.c.b16 %v4480, %v4472
    %v5345 = vpack.c.b16 %v4481, %v4473
    %v5346 = vpack.c.b16 %v4482, %v4474
    %v5347 = vpack.c.b16 %v4483, %v4475
    %v5348 = vpack.c.b16 %v4484, %v4476
    %v5349 = vpack.c.b16 %v4485, %v4477
    %v5350 = vpack.c.b16 %v4494, %v4486
    %v5351 = vpack.c.b16 %v4495, %v4487
    %v5352 = vpack.c.b16 %v4496, %v4488
    %v5353 = vpack.c.b16 %v4497, %v4489
    %v5354 = vpack.c.b16 %v4498, %v4490
    %v5355 = vpack.c.b16 %v4499, %v4491
    %v5356 = vpack.c.b16 %v4500, %v4492
    %v5357 = vpack.c.b16 %v4501, %v4493
    %v5358 = vpack.c.b16 %v4510, %v4502
    %v5359 = vpack.c.b16 %v4511, %v4503
    %v5360 = vpack.c.b16 %v4512, %v4504
    %v5361 = vpack.c.b16 %v4513, %v4505
    %v5362 = vpack.c.b16 %v4514, %v4506
    %v5363 = vpack.c.b16 %v4515, %v4507
    %v5364 = vpack.c.b16 %v4516, %v4508
    %v5365 = vpack.c.b16 %v4517, %v4509
    %v5366 = vpack.c.b16 %v4526, %v4518
    %v5367 = vpack.c.b16 %v4527, %v4519
    %v5368 = vpack.c.b16 %v4528, %v4520
    %v5369 = vpack.c.b16 %v4529, %v4521
    %v5370 = vpack.c.b16 %v4530, %v4522
    %v5371 = vpack.c.b16 %v4531, %v4523
    %v5372 = vpack.c.b16 %v4532, %v4524
    %v5373 = vpack.c.b16 %v4533, %v4525
    %v5374 = vpack.c.b16 %v4542, %v4534
    %v5375 = vpack.c.b16 %v4543, %v4535
    %v5376 = vpack.c.b16 %v4544, %v4536
    %v5377 = vpack.c.b16 %v4545, %v4537
    %v5378 = vpack.c.b16 %v4546, %v4538
    %v5379 = vpack.c.b16 %v4547, %v4539
    %v5380 = vpack.c.b16 %v4548, %v4540
    %v5381 = vpack.c.b16 %v4549, %v4541
    %v5382 = vpack.c.b16 %v4558, %v4550
    %v5383 = vpack.c.b16 %v4559, %v4551
    %v5384 = vpack.c.b16 %v4560, %v4552
    %v5385 = vpack.c.b16 %v4561, %v4553
    %v5386 = vpack.c.b16 %v4562, %v4554
    %v5387 = vpack.c.b16 %v4563, %v4555
    %v5388 = vpack.c.b16 %v4564, %v4556
    %v5389 = vpack.c.b16 %v4565, %v4557
    %v5390 = vpack.c.b16 %v4574, %v4566
    %v5391 = vpack.c.b16 %v4575, %v4567
    %v5392 = vpack.c.b16 %v4576, %v4568
    %v5393 = vpack.c.b16 %v4577, %v4569
    %v5394 = vpack.c.b16 %v4578, %v4570
    %v5395 = vpack.c.b16 %v4579, %v4571
    %v5396 = vpack.c.b16 %v4580, %v4572
    %v5397 = vpack.c.b16 %v4581, %v4573
    %v5398 = vpack.c.b16 %v4590, %v4582
    %v5399 = vpack.c.b16 %v4591, %v4583
    %v5400 = vpack.c.b16 %v4592, %v4584
    %v5401 = vpack.c.b16 %v4593, %v4585
    %v5402 = vpack.c.b16 %v4594, %v4586
    %v5403 = vpack.c.b16 %v4595, %v4587
    %v5404 = vpack.c.b16 %v4596, %v4588
    %v5405 = vpack.c.b16 %v4597, %v4589
    %v5406 = vpack.c.b16 %v4606, %v4598
    %v5407 = vpack.c.b16 %v4607, %v4599
    %v5408 = vpack.c.b16 %v4608, %v4600
    %v5409 = vpack.c.b16 %v4609, %v4601
    %v5410 = vpack.c.b16 %v4610, %v4602
    %v5411 = vpack.c.b16 %v4611, %v4603
    %v5412 = vpack.c.b16 %v4612, %v4604
    %v5413 = vpack.c.b16 %v4613, %v4605
    %v5414 = vpack.c.b16 %v4622, %v4614
    %v5415 = vpack.c.b16 %v4623, %v4615
    %v5416 = vpack.c.b16 %v4624, %v4616
    %v5417 = vpack.c.b16 %v4625, %v4617
    %v5418 = vpack.c.b16 %v4626, %v4618
    %v5419 = vpack.c.b16 %v4627, %v4619
    %v5420 = vpack.c.b16 %v4628, %v4620
    %v5421 = vpack.c.b16 %v4629, %v4621
    %v5422 = vpack.c.b16 %v4638, %v4630
    %v5423 = vpack.c.b16 %v4639, %v4631
    %v5424 = vpack.c.b16 %v4640, %v4632
    %v5425 = vpack.c.b16 %v4641, %v4633
    %v5426 = vpack.c.b16 %v4642, %v4634
    %v5427 = vpack.c.b16 %v4643, %v4635
    %v5428 = vpack.c.b16 %v4644, %v4636
    %v5429 = vpack.c.b16 %v4645, %v4637
    %v5430 = vpack.c.b16 %v4654, %v4646
    %v5431 = vpack.c.b16 %v4655, %v4647
    %v5432 = vpack.c.b16 %v4656, %v4648
    %v5433 = vpack.c.b16 %v4657, %v4649
    %v5434 = vpack.c.b16 %v4658, %v4650
    %v5435 = vpack.c.b16 %v4659, %v4651
    %v5436 = vpack.c.b16 %v4660, %v4652
    %v5437 = vpack.c.b16 %v4661, %v4653
    %v5438 = vpack.c.b16 %v4670, %v4662
    %v5439 = vpack.c.b16 %v4671, %v4663
    %v5440 = vpack.c.b16 %v4672, %v4664
    %v5441 = vpack.c.b16 %v4673, %v4665
    %v5442 = vpack.c.b16 %v4674, %v4666
    %v5443 = vpack.c.b16 %v4675, %v4667
    %v5444 = vpack.c.b16 %v4676, %v4668
    %v5445 = vpack.c.b16 %v4677, %v4669
    %v5446 = vpack.c.b16 %v4686, %v4678
    %v5447 = vpack.c.b16 %v4687, %v4679
    %v5448 = vpack.c.b16 %v4688, %v4680
    %v5449 = vpack.c.b16 %v4689, %v4681
    %v5450 = vpack.c.b16 %v4690, %v4682
    %v5451 = vpack.c.b16 %v4691, %v4683
    %v5452 = vpack.c.b16 %v4692, %v4684
    %v5453 = vpack.c.b16 %v4693, %v4685
    %v5454 = vpack.c.b16 %v4702, %v4694
    %v5455 = vpack.c.b16 %v4703, %v4695
    %v5456 = vpack.c.b16 %v4704, %v4696
    %v5457 = vpack.c.b16 %v4705, %v4697
    %v5458 = vpack.c.b16 %v4706, %v4698
    %v5459 = vpack.c.b16 %v4707, %v4699
    %v5460 = vpack.c.b16 %v4708, %v4700
    %v5461 = vpack.c.b16 %v4709, %v4701
    %v5462 = vpack.c.b16 %v4718, %v4710
    %v5463 = vpack.c.b16 %v4719, %v4711
    %v5464 = vpack.c.b16 %v4720, %v4712
    %v5465 = vpack.c.b16 %v4721, %v4713
    %v5466 = vpack.c.b16 %v4722, %v4714
    %v5467 = vpack.c.b16 %v4723, %v4715
    %v5468 = vpack.c.b16 %v4724, %v4716
    %v5469 = vpack.c.b16 %v4725, %v4717
    %v5470 = vpack.c.b16 %v4734, %v4726
    %v5471 = vpack.c.b16 %v4735, %v4727
    %v5472 = vpack.c.b16 %v4736, %v4728
    %v5473 = vpack.c.b16 %v4737, %v4729
    %v5474 = vpack.c.b16 %v4738, %v4730
    %v5475 = vpack.c.b16 %v4739, %v4731
    %v5476 = vpack.c.b16 %v4740, %v4732
    %v5477 = vpack.c.b16 %v4741, %v4733
    %v5478 = vpack.c.b16 %v4750, %v4742
    %v5479 = vpack.c.b16 %v4751, %v4743
    %v5480 = vpack.c.b16 %v4752, %v4744
    %v5481 = vpack.c.b16 %v4753, %v4745
    %v5482 = vpack.c.b16 %v4754, %v4746
    %v5483 = vpack.c.b16 %v4755, %v4747
    %v5484 = vpack.c.b16 %v4756, %v4748
    %v5485 = vpack.c.b16 %v4757, %v4749
    %v5486 = vpack.c.b16 %v4766, %v4758
    %v5487 = vpack.c.b16 %v4767, %v4759
    %v5488 = vpack.c.b16 %v4768, %v4760
    %v5489 = vpack.c.b16 %v4769, %v4761
    %v5490 = vpack.c.b16 %v4770, %v4762
    %v5491 = vpack.c.b16 %v4771, %v4763
    %v5492 = vpack.c.b16 %v4772, %v4764
    %v5493 = vpack.c.b16 %v4773, %v4765
    %v5494 = vpack.c.b16 %v4782, %v4774
    %v5495 = vpack.c.b16 %v4783, %v4775
    %v5496 = vpack.c.b16 %v4784, %v4776
    %v5497 = vpack.c.b16 %v4785, %v4777
    %v5498 = vpack.c.b16 %v4786, %v4778
    %v5499 = vpack.c.b16 %v4787, %v4779
    %v5500 = vpack.c.b16 %v4788, %v4780
    %v5501 = vpack.c.b16 %v4789, %v4781
    %v5502 = vpack.c.b16 %v4798, %v4790
    %v5503 = vpack.c.b16 %v4799, %v4791
    %v5504 = vpack.c.b16 %v4800, %v4792
    %v5505 = vpack.c.b16 %v4801, %v4793
    %v5506 = vpack.c.b16 %v4802, %v4794
    %v5507 = vpack.c.b16 %v4803, %v4795
    %v5508 = vpack.c.b16 %v4804, %v4796
    %v5509 = vpack.c.b16 %v4805, %v4797
    %v5510 = vpack.c.b16 %v4814, %v4806
    %v5511 = vpack.c.b16 %v4815, %v4807
    %v5512 = vpack.c.b16 %v4816, %v4808
    %v5513 = vpack.c.b16 %v4817, %v4809
    %v5514 = vpack.c.b16 %v4818, %v4810
    %v5515 = vpack.c.b16 %v4819, %v4811
    %v5516 = vpack.c.b16 %v4820, %v4812
    %v5517 = vpack.c.b16 %v4821, %v4813
    %v5518 = vpack.c.b16 %v4830, %v4822
    %v5519 = vpack.c.b16 %v4831, %v4823
    %v5520 = vpack.c.b16 %v4832, %v4824
    %v5521 = vpack.c.b16 %v4833, %v4825
    %v5522 = vpack.c.b16 %v4834, %v4826
    %v5523 = vpack.c.b16 %v4835, %v4827
    %v5524 = vpack.c.b16 %v4836, %v4828
    %v5525 = vpack.c.b16 %v4837, %v4829
    %v5526 = vpack.c.b16 %v4846, %v4838
    %v5527 = vpack.c.b16 %v4847, %v4839
    %v5528 = vpack.c.b16 %v4848, %v4840
    %v5529 = vpack.c.b16 %v4849, %v4841
    %v5530 = vpack.c.b16 %v4850, %v4842
    %v5531 = vpack.c.b16 %v4851, %v4843
    %v5532 = vpack.c.b16 %v4852, %v4844
    %v5533 = vpack.c.b16 %v4853, %v4845
    %v5534 = vpack.c.b16 %v4862, %v4854
    %v5535 = vpack.c.b16 %v4863, %v4855
    %v5536 = vpack.c.b16 %v4864, %v4856
    %v5537 = vpack.c.b16 %v4865, %v4857
    %v5538 = vpack.c.b16 %v4866, %v4858
    %v5539 = vpack.c.b16 %v4867, %v4859
    %v5540 = vpack.c.b16 %v4868, %v4860
    %v5541 = vpack.c.b16 %v4869, %v4861
    %v5542 = vpack.c.b16 %v4878, %v4870
    %v5543 = vpack.c.b16 %v4879, %v4871
    %v5544 = vpack.c.b16 %v4880, %v4872
    %v5545 = vpack.c.b16 %v4881, %v4873
    %v5546 = vpack.c.b16 %v4882, %v4874
    %v5547 = vpack.c.b16 %v4883, %v4875
    %v5548 = vpack.c.b16 %v4884, %v4876
    %v5549 = vpack.c.b16 %v4885, %v4877
    %v5550 = vpack.c.b16 %v4894, %v4886
    %v5551 = vpack.c.b16 %v4895, %v4887
    %v5552 = vpack.c.b16 %v4896, %v4888
    %v5553 = vpack.c.b16 %v4897, %v4889
    %v5554 = vpack.c.b16 %v4898, %v4890
    %v5555 = vpack.c.b16 %v4899, %v4891
    %v5556 = vpack.c.b16 %v4900, %v4892
    %v5557 = vpack.c.b16 %v4901, %v4893
    %v5558 = vpack.c.b16 %v4910, %v4902
    %v5559 = vpack.c.b16 %v4911, %v4903
    %v5560 = vpack.c.b16 %v4912, %v4904
    %v5561 = vpack.c.b16 %v4913, %v4905
    %v5562 = vpack.c.b16 %v4914, %v4906
    %v5563 = vpack.c.b16 %v4915, %v4907
    %v5564 = vpack.c.b16 %v4916, %v4908
    %v5565 = vpack.c.b16 %v4917, %v4909
    %v5566 = vpack.c.b16 %v4926, %v4918
    %v5567 = vpack.c.b16 %v4927, %v4919
    %v5568 = vpack.c.b16 %v4928, %v4920
    %v5569 = vpack.c.b16 %v4929, %v4921
    %v5570 = vpack.c.b16 %v4930, %v4922
    %v5571 = vpack.c.b16 %v4931, %v4923
    %v5572 = vpack.c.b16 %v4932, %v4924
    %v5573 = vpack.c.b16 %v4933, %v4925
    %v5574 = vpack.c.b16 %v4942, %v4934
    %v5575 = vpack.c.b16 %v4943, %v4935
    %v5576 = vpack.c.b16 %v4944, %v4936
    %v5577 = vpack.c.b16 %v4945, %v4937
    %v5578 = vpack.c.b16 %v4946, %v4938
    %v5579 = vpack.c.b16 %v4947, %v4939
    %v5580 = vpack.c.b16 %v4948, %v4940
    %v5581 = vpack.c.b16 %v4949, %v4941
    %v5582 = vpack.c.b16 %v4958, %v4950
    %v5583 = vpack.c.b16 %v4959, %v4951
    %v5584 = vpack.c.b16 %v4960, %v4952
    %v5585 = vpack.c.b16 %v4961, %v4953
    %v5586 = vpack.c.b16 %v4962, %v4954
    %v5587 = vpack.c.b16 %v4963, %v4955
    %v5588 = vpack.c.b16 %v4964, %v4956
    %v5589 = vpack.c.b16 %v4965, %v4957
    %v5590 = vpack.c.b16 %v4974, %v4966
    %v5591 = vpack.c.b16 %v4975, %v4967
    %v5592 = vpack.c.b16 %v4976, %v4968
    %v5593 = vpack.c.b16 %v4977, %v4969
    %v5594 = vpack.c.b16 %v4978, %v4970
    %v5595 = vpack.c.b16 %v4979, %v4971
    %v5596 = vpack.c.b16 %v4980, %v4972
    %v5597 = vpack.c.b16 %v4981, %v4973
    %v5598 = vpack.c.b16 %v4990, %v4982
    %v5599 = vpack.c.b16 %v4991, %v4983
    %v5600 = vpack.c.b16 %v4992, %v4984
    %v5601 = vpack.c.b16 %v4993, %v4985
    %v5602 = vpack.c.b16 %v4994, %v4986
    %v5603 = vpack.c.b16 %v4995, %v4987
    %v5604 = vpack.c.b16 %v4996, %v4988
    %v5605 = vpack.c.b16 %v4997, %v4989
    %v5606 = vpack.c.b16 %v5006, %v4998
    %v5607 = vpack.c.b16 %v5007, %v4999
    %v5608 = vpack.c.b16 %v5008, %v5000
    %v5609 = vpack.c.b16 %v5009, %v5001
    %v5610 = vpack.c.b16 %v5010, %v5002
    %v5611 = vpack.c.b16 %v5011, %v5003
    %v5612 = vpack.c.b16 %v5012, %v5004
    %v5613 = vpack.c.b16 %v5013, %v5005
    %v5614 = vpack.c.b16 %v5022, %v5014
    %v5615 = vpack.c.b16 %v5023, %v5015
    %v5616 = vpack.c.b16 %v5024, %v5016
    %v5617 = vpack.c.b16 %v5025, %v5017
    %v5618 = vpack.c.b16 %v5026, %v5018
    %v5619 = vpack.c.b16 %v5027, %v5019
    %v5620 = vpack.c.b16 %v5028, %v5020
    %v5621 = vpack.c.b16 %v5029, %v5021
    %v5622 = vpack.c.b16 %v5038, %v5030
    %v5623 = vpack.c.b16 %v5039, %v5031
    %v5624 = vpack.c.b16 %v5040, %v5032
    %v5625 = vpack.c.b16 %v5041, %v5033
    %v5626 = vpack.c.b16 %v5042, %v5034
    %v5627 = vpack.c.b16 %v5043, %v5035
    %v5628 = vpack.c.b16 %v5044, %v5036
    %v5629 = vpack.c.b16 %v5045, %v5037
    %v5630 = vpack.c.b16 %v5054, %v5046
    %v5631 = vpack.c.b16 %v5055, %v5047
    %v5632 = vpack.c.b16 %v5056, %v5048
    %v5633 = vpack.c.b16 %v5057, %v5049
    %v5634 = vpack.c.b16 %v5058, %v5050
    %v5635 = vpack.c.b16 %v5059, %v5051
    %v5636 = vpack.c.b16 %v5060, %v5052
    %v5637 = vpack.c.b16 %v5061, %v5053
    %v5638 = vpack.c.b16 %v5070, %v5062
    %v5639 = vpack.c.b16 %v5071, %v5063
    %v5640 = vpack.c.b16 %v5072, %v5064
    %v5641 = vpack.c.b16 %v5073, %v5065
    %v5642 = vpack.c.b16 %v5074, %v5066
    %v5643 = vpack.c.b16 %v5075, %v5067
    %v5644 = vpack.c.b16 %v5076, %v5068
    %v5645 = vpack.c.b16 %v5077, %v5069
    %v5646 = vpack.c.b16 %v5086, %v5078
    %v5647 = vpack.c.b16 %v5087, %v5079
    %v5648 = vpack.c.b16 %v5088, %v5080
    %v5649 = vpack.c.b16 %v5089, %v5081
    %v5650 = vpack.c.b16 %v5090, %v5082
    %v5651 = vpack.c.b16 %v5091, %v5083
    %v5652 = vpack.c.b16 %v5092, %v5084
    %v5653 = vpack.c.b16 %v5093, %v5085
    %v5654 = vpack.c.b16 %v5102, %v5094
    %v5655 = vpack.c.b16 %v5103, %v5095
    %v5656 = vpack.c.b16 %v5104, %v5096
    %v5657 = vpack.c.b16 %v5105, %v5097
    %v5658 = vpack.c.b16 %v5106, %v5098
    %v5659 = vpack.c.b16 %v5107, %v5099
    %v5660 = vpack.c.b16 %v5108, %v5100
    %v5661 = vpack.c.b16 %v5109, %v5101
    %v5662 = vpack.c.b16 %v5118, %v5110
    %v5663 = vpack.c.b16 %v5119, %v5111
    %v5664 = vpack.c.b16 %v5120, %v5112
    %v5665 = vpack.c.b16 %v5121, %v5113
    %v5666 = vpack.c.b16 %v5122, %v5114
    %v5667 = vpack.c.b16 %v5123, %v5115
    %v5668 = vpack.c.b16 %v5124, %v5116
    %v5669 = vpack.c.b16 %v5125, %v5117
    %v5670 = vpack.c.b16 %v5134, %v5126
    %v5671 = vpack.c.b16 %v5135, %v5127
    %v5672 = vpack.c.b16 %v5136, %v5128
    %v5673 = vpack.c.b16 %v5137, %v5129
    %v5674 = vpack.c.b16 %v5138, %v5130
    %v5675 = vpack.c.b16 %v5139, %v5131
    %v5676 = vpack.c.b16 %v5140, %v5132
    %v5677 = vpack.c.b16 %v5141, %v5133
    %v5678 = vpack.c.b16 %v5150, %v5142
    %v5679 = vpack.c.b16 %v5151, %v5143
    %v5680 = vpack.c.b16 %v5152, %v5144
    %v5681 = vpack.c.b16 %v5153, %v5145
    %v5682 = vpack.c.b16 %v5154, %v5146
    %v5683 = vpack.c.b16 %v5155, %v5147
    %v5684 = vpack.c.b16 %v5156, %v5148
    %v5685 = vpack.c.b16 %v5157, %v5149
    %v5686 = vpack.c.b16 %v5166, %v5158
    %v5687 = vpack.c.b16 %v5167, %v5159
    %v5688 = vpack.c.b16 %v5168, %v5160
    %v5689 = vpack.c.b16 %v5169, %v5161
    %v5690 = vpack.c.b16 %v5170, %v5162
    %v5691 = vpack.c.b16 %v5171, %v5163
    %v5692 = vpack.c.b16 %v5172, %v5164
    %v5693 = vpack.c.b16 %v5173, %v5165
    %v5694 = vpack.c.b16 %v5182, %v5174
    %v5695 = vpack.c.b16 %v5183, %v5175
    %v5696 = vpack.c.b16 %v5184, %v5176
    %v5697 = vpack.c.b16 %v5185, %v5177
    %v5698 = vpack.c.b16 %v5186, %v5178
    %v5699 = vpack.c.b16 %v5187, %v5179
    %v5700 = vpack.c.b16 %v5188, %v5180
    %v5701 = vpack.c.b16 %v5189, %v5181
    %6214 = vmatprep.subr.bf16.mxu0 %v5191
    %6215 = vmatpush1.bf16.msra.mxu0 %v5190
    %6216 = vmatprep.subr.bf16.mxu0 %v5199
    %6217 = vmatpush1.bf16.msra.mxu0 %v5198
    %6218 = vmatprep.subr.bf16.mxu0 %v5207
    %6219 = vmatpush1.bf16.msra.mxu0 %v5206
    %6220 = vmatprep.subr.bf16.mxu0 %v5215
    %6221 = vmatpush1.bf16.msra.mxu0 %v5214
    %6222 = vmatprep.subr.bf16.mxu0 %v5223
    %6223 = vmatpush1.bf16.msra.mxu0 %v5222
    %6224 = vmatprep.subr.bf16.mxu0 %v5231
    %6225 = vmatpush1.bf16.msra.mxu0 %v5230
    %6226 = vmatprep.subr.bf16.mxu0 %v5239
    %6227 = vmatpush1.bf16.msra.mxu0 %v5238
    %6228 = vmatprep.subr.bf16.mxu0 %v5247
    %6229 = vmatpush1.bf16.msra.mxu0 %v5246
    %6230 = vmatprep.subr.bf16.mxu0 %v5255
    %6231 = vmatpush1.bf16.msra.mxu0 %v5254
    %6232 = vmatprep.subr.bf16.mxu0 %v5263
    %6233 = vmatpush1.bf16.msra.mxu0 %v5262
    %6234 = vmatprep.subr.bf16.mxu0 %v5271
    %6235 = vmatpush1.bf16.msra.mxu0 %v5270
    %6236 = vmatprep.subr.bf16.mxu0 %v5279
    %6237 = vmatpush1.bf16.msra.mxu0 %v5278
    %6238 = vmatprep.subr.bf16.mxu0 %v5287
    %6239 = vmatpush1.bf16.msra.mxu0 %v5286
    %6240 = vmatprep.subr.bf16.mxu0 %v5295
    %6241 = vmatpush1.bf16.msra.mxu0 %v5294
    %6242 = vmatprep.subr.bf16.mxu0 %v5303
    %6243 = vmatpush1.bf16.msra.mxu0 %v5302
    %6244 = vmatprep.subr.bf16.mxu0 %v5311
    %6245 = vmatpush1.bf16.msra.mxu0 %v5310
    %6246 = vmatprep.mubr.bf16.mxu0 %v3135
    %6247 = vmatmul.mubr.bf16.gmra.mrb[0].mxu0 %v3134
    %v6248 = vpop.f32.mrb[0].mxu0
    %v6249 = vadd.f32 0.0, %v6248
    %v6250 = vpop.f32.mrb[0].mxu0
    %v6251 = vadd.f32 0.0, %v6250
    %v6252 = vpop.f32.mrb[0].mxu0
    %v6253 = vadd.f32 0.0, %v6252
    %v6254 = vpop.f32.mrb[0].mxu0
    %v6255 = vadd.f32 0.0, %v6254
    %6256 = vdwg.mxu0
    %6257 = vmatprep.subr.bf16.mxu0 %v5319
    %6258 = vmatpush1.bf16.msra.mxu0 %v5318
    %6259 = vmatprep.subr.bf16.mxu0 %v5327
    %6260 = vmatpush1.bf16.msra.mxu0 %v5326
    %6261 = vmatprep.subr.bf16.mxu0 %v5335
    %6262 = vmatpush1.bf16.msra.mxu0 %v5334
    %6263 = vmatprep.subr.bf16.mxu0 %v5343
    %6264 = vmatpush1.bf16.msra.mxu0 %v5342
    %6265 = vmatprep.subr.bf16.mxu0 %v5351
    %6266 = vmatpush1.bf16.msra.mxu0 %v5350
    %6267 = vmatprep.subr.bf16.mxu0 %v5359
    %6268 = vmatpush1.bf16.msra.mxu0 %v5358
    %6269 = vmatprep.subr.bf16.mxu0 %v5367
    %6270 = vmatpush1.bf16.msra.mxu0 %v5366
    %6271 = vmatprep.subr.bf16.mxu0 %v5375
    %6272 = vmatpush1.bf16.msra.mxu0 %v5374
    %6273 = vmatprep.subr.bf16.mxu0 %v5383
    %6274 = vmatpush1.bf16.msra.mxu0 %v5382
    %6275 = vmatprep.subr.bf16.mxu0 %v5391
    %6276 = vmatpush1.bf16.msra.mxu0 %v5390
    %6277 = vmatprep.subr.bf16.mxu0 %v5399
    %6278 = vmatpush1.bf16.msra.mxu0 %v5398
    %6279 = vmatprep.subr.bf16.mxu0 %v5407
    %6280 = vmatpush1.bf16.msra.mxu0 %v5406
    %6281 = vmatprep.subr.bf16.mxu0 %v5415
    %6282 = vmatpush1.bf16.msra.mxu0 %v5414
    %6283 = vmatprep.subr.bf16.mxu0 %v5423
    %6284 = vmatpush1.bf16.msra.mxu0 %v5422
    %6285 = vmatprep.subr.bf16.mxu0 %v5431
    %6286 = vmatpush1.bf16.msra.mxu0 %v5430
    %6287 = vmatprep.subr.bf16.mxu0 %v5439
    %6288 = vmatpush1.bf16.msra.mxu0 %v5438
    %6289 = vmatprep.mubr.bf16.mxu0 %v3137
    %6290 = vmatmul.mubr.bf16.gmra.mrb[0].mxu0 %v3136
    %v6291 = vpop.f32.mrb[0].mxu0
    %v6292 = vadd.f32 %v6249, %v6291
    %v6293 = vpop.f32.mrb[0].mxu0
    %v6294 = vadd.f32 %v6251, %v6293
    %v6295 = vpop.f32.mrb[0].mxu0
    %v6296 = vadd.f32 %v6253, %v6295
    %v6297 = vpop.f32.mrb[0].mxu0
    %v6298 = vadd.f32 %v6255, %v6297
    %6299 = vdwg.mxu0
    %6300 = vmatprep.subr.bf16.mxu0 %v5447
    %6301 = vmatpush1.bf16.msra.mxu0 %v5446
    %6302 = vmatprep.subr.bf16.mxu0 %v5455
    %6303 = vmatpush1.bf16.msra.mxu0 %v5454
    %6304 = vmatprep.subr.bf16.mxu0 %v5463
    %6305 = vmatpush1.bf16.msra.mxu0 %v5462
    %6306 = vmatprep.subr.bf16.mxu0 %v5471
    %6307 = vmatpush1.bf16.msra.mxu0 %v5470
    %6308 = vmatprep.subr.bf16.mxu0 %v5479
    %6309 = vmatpush1.bf16.msra.mxu0 %v5478
    %6310 = vmatprep.subr.bf16.mxu0 %v5487
    %6311 = vmatpush1.bf16.msra.mxu0 %v5486
    %6312 = vmatprep.subr.bf16.mxu0 %v5495
    %6313 = vmatpush1.bf16.msra.mxu0 %v5494
    %6314 = vmatprep.subr.bf16.mxu0 %v5503
    %6315 = vmatpush1.bf16.msra.mxu0 %v5502
    %6316 = vmatprep.subr.bf16.mxu0 %v5511
    %6317 = vmatpush1.bf16.msra.mxu0 %v5510
    %6318 = vmatprep.subr.bf16.mxu0 %v5519
    %6319 = vmatpush1.bf16.msra.mxu0 %v5518
    %6320 = vmatprep.subr.bf16.mxu0 %v5527
    %6321 = vmatpush1.bf16.msra.mxu0 %v5526
    %6322 = vmatprep.subr.bf16.mxu0 %v5535
    %6323 = vmatpush1.bf16.msra.mxu0 %v5534
    %6324 = vmatprep.subr.bf16.mxu0 %v5543
    %6325 = vmatpush1.bf16.msra.mxu0 %v5542
    %6326 = vmatprep.subr.bf16.mxu0 %v5551
    %6327 = vmatpush1.bf16.msra.mxu0 %v5550
    %6328 = vmatprep.subr.bf16.mxu0 %v5559
    %6329 = vmatpush1.bf16.msra.mxu0 %v5558
    %6330 = vmatprep.subr.bf16.mxu0 %v5567
    %6331 = vmatpush1.bf16.msra.mxu0 %v5566
    %6332 = vmatprep.mubr.bf16.mxu0 %v3139
    %6333 = vmatmul.mubr.bf16.gmra.mrb[0].mxu0 %v3138
    %v6334 = vpop.f32.mrb[0].mxu0
    %v6335 = vadd.f32 %v6292, %v6334
    %v6336 = vpop.f32.mrb[0].mxu0
    %v6337 = vadd.f32 %v6294, %v6336
    %v6338 = vpop.f32.mrb[0].mxu0
    %v6339 = vadd.f32 %v6296, %v6338
    %v6340 = vpop.f32.mrb[0].mxu0
    %v6341 = vadd.f32 %v6298, %v6340
    %6342 = vdwg.mxu0
    %6343 = vmatprep.subr.bf16.mxu0 %v5575
    %6344 = vmatpush1.bf16.msra.mxu0 %v5574
    %6345 = vmatprep.subr.bf16.mxu0 %v5583
    %6346 = vmatpush1.bf16.msra.mxu0 %v5582
    %6347 = vmatprep.subr.bf16.mxu0 %v5591
    %6348 = vmatpush1.bf16.msra.mxu0 %v5590
    %6349 = vmatprep.subr.bf16.mxu0 %v5599
    %6350 = vmatpush1.bf16.msra.mxu0 %v5598
    %6351 = vmatprep.subr.bf16.mxu0 %v5607
    %6352 = vmatpush1.bf16.msra.mxu0 %v5606
    %6353 = vmatprep.subr.bf16.mxu0 %v5615
    %6354 = vmatpush1.bf16.msra.mxu0 %v5614
    %6355 = vmatprep.subr.bf16.mxu0 %v5623
    %6356 = vmatpush1.bf16.msra.mxu0 %v5622
    %6357 = vmatprep.subr.bf16.mxu0 %v5631
    %6358 = vmatpush1.bf16.msra.mxu0 %v5630
    %6359 = vmatprep.subr.bf16.mxu0 %v5639
    %6360 = vmatpush1.bf16.msra.mxu0 %v5638
    %6361 = vmatprep.subr.bf16.mxu0 %v5647
    %6362 = vmatpush1.bf16.msra.mxu0 %v5646
    %6363 = vmatprep.subr.bf16.mxu0 %v5655
    %6364 = vmatpush1.bf16.msra.mxu0 %v5654
    %6365 = vmatprep.subr.bf16.mxu0 %v5663
    %6366 = vmatpush1.bf16.msra.mxu0 %v5662
    %6367 = vmatprep.subr.bf16.mxu0 %v5671
    %6368 = vmatpush1.bf16.msra.mxu0 %v5670
    %6369 = vmatprep.subr.bf16.mxu0 %v5679
    %6370 = vmatpush1.bf16.msra.mxu0 %v5678
    %6371 = vmatprep.subr.bf16.mxu0 %v5687
    %6372 = vmatpush1.bf16.msra.mxu0 %v5686
    %6373 = vmatprep.subr.bf16.mxu0 %v5695
    %6374 = vmatpush1.bf16.msra.mxu0 %v5694
    %6375 = vmatprep.mubr.bf16.mxu0 %v3141
    %6376 = vmatmul.mubr.bf16.gmra.mrb[0].mxu0 %v3140
    %v6377 = vpop.f32.mrb[0].mxu0
    %v6378 = vadd.f32 %v6335, %v6377
    %v6379 = vpop.f32.mrb[0].mxu0
    %v6380 = vadd.f32 %v6337, %v6379
    %v6381 = vpop.f32.mrb[0].mxu0
    %v6382 = vadd.f32 %v6339, %v6381
    %v6383 = vpop.f32.mrb[0].mxu0
    %v6384 = vadd.f32 %v6341, %v6383
    %6385 = vdwg.mxu0
    %6386 = vmatprep.subr.bf16.mxu0 %v5193
    %6387 = vmatpush1.bf16.msra.mxu0 %v5192
    %6388 = vmatprep.subr.bf16.mxu0 %v5201
    %6389 = vmatpush1.bf16.msra.mxu0 %v5200
    %6390 = vmatprep.subr.bf16.mxu0 %v5209
    %6391 = vmatpush1.bf16.msra.mxu0 %v5208
    %6392 = vmatprep.subr.bf16.mxu0 %v5217
    %6393 = vmatpush1.bf16.msra.mxu0 %v5216
    %6394 = vmatprep.subr.bf16.mxu0 %v5225
    %6395 = vmatpush1.bf16.msra.mxu0 %v5224
    %6396 = vmatprep.subr.bf16.mxu0 %v5233
    %6397 = vmatpush1.bf16.msra.mxu0 %v5232
    %6398 = vmatprep.subr.bf16.mxu0 %v5241
    %6399 = vmatpush1.bf16.msra.mxu0 %v5240
    %6400 = vmatprep.subr.bf16.mxu0 %v5249
    %6401 = vmatpush1.bf16.msra.mxu0 %v5248
    %6402 = vmatprep.subr.bf16.mxu0 %v5257
    %6403 = vmatpush1.bf16.msra.mxu0 %v5256
    %6404 = vmatprep.subr.bf16.mxu0 %v5265
    %6405 = vmatpush1.bf16.msra.mxu0 %v5264
    %6406 = vmatprep.subr.bf16.mxu0 %v5273
    %6407 = vmatpush1.bf16.msra.mxu0 %v5272
    %6408 = vmatprep.subr.bf16.mxu0 %v5281
    %6409 = vmatpush1.bf16.msra.mxu0 %v5280
    %6410 = vmatprep.subr.bf16.mxu0 %v5289
    %6411 = vmatpush1.bf16.msra.mxu0 %v5288
    %6412 = vmatprep.subr.bf16.mxu0 %v5297
    %6413 = vmatpush1.bf16.msra.mxu0 %v5296
    %6414 = vmatprep.subr.bf16.mxu0 %v5305
    %6415 = vmatpush1.bf16.msra.mxu0 %v5304
    %6416 = vmatprep.subr.bf16.mxu0 %v5313
    %6417 = vmatpush1.bf16.msra.mxu0 %v5312
    %6418 = vmatprep.mubr.bf16.mxu0 %v3135
    %6419 = vmatmul.mubr.bf16.gmra.mrb[0].mxu0 %v3134
    %v6420 = vpop.f32.mrb[0].mxu0
    %v6421 = vadd.f32 0.0, %v6420
    %v6422 = vpop.f32.mrb[0].mxu0
    %v6423 = vadd.f32 0.0, %v6422
    %v6424 = vpop.f32.mrb[0].mxu0
    %v6425 = vadd.f32 0.0, %v6424
    %v6426 = vpop.f32.mrb[0].mxu0
    %v6427 = vadd.f32 0.0, %v6426
    %6428 = vdwg.mxu0
    %6429 = vmatprep.subr.bf16.mxu0 %v5321
    %6430 = vmatpush1.bf16.msra.mxu0 %v5320
    %6431 = vmatprep.subr.bf16.mxu0 %v5329
    %6432 = vmatpush1.bf16.msra.mxu0 %v5328
    %6433 = vmatprep.subr.bf16.mxu0 %v5337
    %6434 = vmatpush1.bf16.msra.mxu0 %v5336
    %6435 = vmatprep.subr.bf16.mxu0 %v5345
    %6436 = vmatpush1.bf16.msra.mxu0 %v5344
    %6437 = vmatprep.subr.bf16.mxu0 %v5353
    %6438 = vmatpush1.bf16.msra.mxu0 %v5352
    %6439 = vmatprep.subr.bf16.mxu0 %v5361
    %6440 = vmatpush1.bf16.msra.mxu0 %v5360
    %6441 = vmatprep.subr.bf16.mxu0 %v5369
    %6442 = vmatpush1.bf16.msra.mxu0 %v5368
    %6443 = vmatprep.subr.bf16.mxu0 %v5377
    %6444 = vmatpush1.bf16.msra.mxu0 %v5376
    %6445 = vmatprep.subr.bf16.mxu0 %v5385
    %6446 = vmatpush1.bf16.msra.mxu0 %v5384
    %6447 = vmatprep.subr.bf16.mxu0 %v5393
    %6448 = vmatpush1.bf16.msra.mxu0 %v5392
    %6449 = vmatprep.subr.bf16.mxu0 %v5401
    %6450 = vmatpush1.bf16.msra.mxu0 %v5400
    %6451 = vmatprep.subr.bf16.mxu0 %v5409
    %6452 = vmatpush1.bf16.msra.mxu0 %v5408
    %6453 = vmatprep.subr.bf16.mxu0 %v5417
    %6454 = vmatpush1.bf16.msra.mxu0 %v5416
    %6455 = vmatprep.subr.bf16.mxu0 %v5425
    %6456 = vmatpush1.bf16.msra.mxu0 %v5424
    %6457 = vmatprep.subr.bf16.mxu0 %v5433
    %6458 = vmatpush1.bf16.msra.mxu0 %v5432
    %6459 = vmatprep.subr.bf16.mxu0 %v5441
    %6460 = vmatpush1.bf16.msra.mxu0 %v5440
    %6461 = vmatprep.mubr.bf16.mxu0 %v3137
    %6462 = vmatmul.mubr.bf16.gmra.mrb[0].mxu0 %v3136
    %v6463 = vpop.f32.mrb[0].mxu0
    %v6464 = vadd.f32 %v6421, %v6463
    %v6465 = vpop.f32.mrb[0].mxu0
    %v6466 = vadd.f32 %v6423, %v6465
    %v6467 = vpop.f32.mrb[0].mxu0
    %v6468 = vadd.f32 %v6425, %v6467
    %v6469 = vpop.f32.mrb[0].mxu0
    %v6470 = vadd.f32 %v6427, %v6469
    %6471 = vdwg.mxu0
    %6472 = vmatprep.subr.bf16.mxu0 %v5449
    %6473 = vmatpush1.bf16.msra.mxu0 %v5448
    %6474 = vmatprep.subr.bf16.mxu0 %v5457
    %6475 = vmatpush1.bf16.msra.mxu0 %v5456
    %6476 = vmatprep.subr.bf16.mxu0 %v5465
    %6477 = vmatpush1.bf16.msra.mxu0 %v5464
    %6478 = vmatprep.subr.bf16.mxu0 %v5473
    %6479 = vmatpush1.bf16.msra.mxu0 %v5472
    %6480 = vmatprep.subr.bf16.mxu0 %v5481
    %6481 = vmatpush1.bf16.msra.mxu0 %v5480
    %6482 = vmatprep.subr.bf16.mxu0 %v5489
    %6483 = vmatpush1.bf16.msra.mxu0 %v5488
    %6484 = vmatprep.subr.bf16.mxu0 %v5497
    %6485 = vmatpush1.bf16.msra.mxu0 %v5496
    %6486 = vmatprep.subr.bf16.mxu0 %v5505
    %6487 = vmatpush1.bf16.msra.mxu0 %v5504
    %6488 = vmatprep.subr.bf16.mxu0 %v5513
    %6489 = vmatpush1.bf16.msra.mxu0 %v5512
    %6490 = vmatprep.subr.bf16.mxu0 %v5521
    %6491 = vmatpush1.bf16.msra.mxu0 %v5520
    %6492 = vmatprep.subr.bf16.mxu0 %v5529
    %6493 = vmatpush1.bf16.msra.mxu0 %v5528
    %6494 = vmatprep.subr.bf16.mxu0 %v5537
    %6495 = vmatpush1.bf16.msra.mxu0 %v5536
    %6496 = vmatprep.subr.bf16.mxu0 %v5545
    %6497 = vmatpush1.bf16.msra.mxu0 %v5544
    %6498 = vmatprep.subr.bf16.mxu0 %v5553
    %6499 = vmatpush1.bf16.msra.mxu0 %v5552
    %6500 = vmatprep.subr.bf16.mxu0 %v5561
    %6501 = vmatpush1.bf16.msra.mxu0 %v5560
    %6502 = vmatprep.subr.bf16.mxu0 %v5569
    %6503 = vmatpush1.bf16.msra.mxu0 %v5568
    %6504 = vmatprep.mubr.bf16.mxu0 %v3139
    %6505 = vmatmul.mubr.bf16.gmra.mrb[0].mxu0 %v3138
    %v6506 = vpop.f32.mrb[0].mxu0
    %v6507 = vadd.f32 %v6464, %v6506
    %v6508 = vpop.f32.mrb[0].mxu0
    %v6509 = vadd.f32 %v6466, %v6508
    %v6510 = vpop.f32.mrb[0].mxu0
    %v6511 = vadd.f32 %v6468, %v6510
    %v6512 = vpop.f32.mrb[0].mxu0
    %v6513 = vadd.f32 %v6470, %v6512
    %6514 = vdwg.mxu0
    %6515 = vmatprep.subr.bf16.mxu0 %v5577
    %6516 = vmatpush1.bf16.msra.mxu0 %v5576
    %6517 = vmatprep.subr.bf16.mxu0 %v5585
    %6518 = vmatpush1.bf16.msra.mxu0 %v5584
    %6519 = vmatprep.subr.bf16.mxu0 %v5593
    %6520 = vmatpush1.bf16.msra.mxu0 %v5592
    %6521 = vmatprep.subr.bf16.mxu0 %v5601
    %6522 = vmatpush1.bf16.msra.mxu0 %v5600
    %6523 = vmatprep.subr.bf16.mxu0 %v5609
    %6524 = vmatpush1.bf16.msra.mxu0 %v5608
    %6525 = vmatprep.subr.bf16.mxu0 %v5617
    %6526 = vmatpush1.bf16.msra.mxu0 %v5616
    %6527 = vmatprep.subr.bf16.mxu0 %v5625
    %6528 = vmatpush1.bf16.msra.mxu0 %v5624
    %6529 = vmatprep.subr.bf16.mxu0 %v5633
    %6530 = vmatpush1.bf16.msra.mxu0 %v5632
    %6531 = vmatprep.subr.bf16.mxu0 %v5641
    %6532 = vmatpush1.bf16.msra.mxu0 %v5640
    %6533 = vmatprep.subr.bf16.mxu0 %v5649
    %6534 = vmatpush1.bf16.msra.mxu0 %v5648
    %6535 = vmatprep.subr.bf16.mxu0 %v5657
    %6536 = vmatpush1.bf16.msra.mxu0 %v5656
    %6537 = vmatprep.subr.bf16.mxu0 %v5665
    %6538 = vmatpush1.bf16.msra.mxu0 %v5664
    %6539 = vmatprep.subr.bf16.mxu0 %v5673
    %6540 = vmatpush1.bf16.msra.mxu0 %v5672
    %6541 = vmatprep.subr.bf16.mxu0 %v5681
    %6542 = vmatpush1.bf16.msra.mxu0 %v5680
    %6543 = vmatprep.subr.bf16.mxu0 %v5689
    %6544 = vmatpush1.bf16.msra.mxu0 %v5688
    %6545 = vmatprep.subr.bf16.mxu0 %v5697
    %6546 = vmatpush1.bf16.msra.mxu0 %v5696
    %6547 = vmatprep.mubr.bf16.mxu0 %v3141
    %6548 = vmatmul.mubr.bf16.gmra.mrb[0].mxu0 %v3140
    %v6549 = vpop.f32.mrb[0].mxu0
    %v6550 = vadd.f32 %v6507, %v6549
    %v6551 = vpop.f32.mrb[0].mxu0
    %v6552 = vadd.f32 %v6509, %v6551
    %v6553 = vpop.f32.mrb[0].mxu0
    %v6554 = vadd.f32 %v6511, %v6553
    %v6555 = vpop.f32.mrb[0].mxu0
    %v6556 = vadd.f32 %v6513, %v6555
    %6557 = vdwg.mxu0
    %6558 = vmatprep.subr.bf16.mxu0 %v5195
    %6559 = vmatpush1.bf16.msra.mxu0 %v5194
    %6560 = vmatprep.subr.bf16.mxu0 %v5203
    %6561 = vmatpush1.bf16.msra.mxu0 %v5202
    %6562 = vmatprep.subr.bf16.mxu0 %v5211
    %6563 = vmatpush1.bf16.msra.mxu0 %v5210
    %6564 = vmatprep.subr.bf16.mxu0 %v5219
    %6565 = vmatpush1.bf16.msra.mxu0 %v5218
    %6566 = vmatprep.subr.bf16.mxu0 %v5227
    %6567 = vmatpush1.bf16.msra.mxu0 %v5226
    %6568 = vmatprep.subr.bf16.mxu0 %v5235
    %6569 = vmatpush1.bf16.msra.mxu0 %v5234
    %6570 = vmatprep.subr.bf16.mxu0 %v5243
    %6571 = vmatpush1.bf16.msra.mxu0 %v5242
    %6572 = vmatprep.subr.bf16.mxu0 %v5251
    %6573 = vmatpush1.bf16.msra.mxu0 %v5250
    %6574 = vmatprep.subr.bf16.mxu0 %v5259
    %6575 = vmatpush1.bf16.msra.mxu0 %v5258
    %6576 = vmatprep.subr.bf16.mxu0 %v5267
    %6577 = vmatpush1.bf16.msra.mxu0 %v5266
    %6578 = vmatprep.subr.bf16.mxu0 %v5275
    %6579 = vmatpush1.bf16.msra.mxu0 %v5274
    %6580 = vmatprep.subr.bf16.mxu0 %v5283
    %6581 = vmatpush1.bf16.msra.mxu0 %v5282
    %6582 = vmatprep.subr.bf16.mxu0 %v5291
    %6583 = vmatpush1.bf16.msra.mxu0 %v5290
    %6584 = vmatprep.subr.bf16.mxu0 %v5299
    %6585 = vmatpush1.bf16.msra.mxu0 %v5298
    %6586 = vmatprep.subr.bf16.mxu0 %v5307
    %6587 = vmatpush1.bf16.msra.mxu0 %v5306
    %6588 = vmatprep.subr.bf16.mxu0 %v5315
    %6589 = vmatpush1.bf16.msra.mxu0 %v5314
    %6590 = vmatprep.mubr.bf16.mxu0 %v3135
    %6591 = vmatmul.mubr.bf16.gmra.mrb[0].mxu0 %v3134
    %v6592 = vpop.f32.mrb[0].mxu0
    %v6593 = vadd.f32 0.0, %v6592
    %v6594 = vpop.f32.mrb[0].mxu0
    %v6595 = vadd.f32 0.0, %v6594
    %v6596 = vpop.f32.mrb[0].mxu0
    %v6597 = vadd.f32 0.0, %v6596
    %v6598 = vpop.f32.mrb[0].mxu0
    %v6599 = vadd.f32 0.0, %v6598
    %6600 = vdwg.mxu0
    %6601 = vmatprep.subr.bf16.mxu0 %v5323
    %6602 = vmatpush1.bf16.msra.mxu0 %v5322
    %6603 = vmatprep.subr.bf16.mxu0 %v5331
    %6604 = vmatpush1.bf16.msra.mxu0 %v5330
    %6605 = vmatprep.subr.bf16.mxu0 %v5339
    %6606 = vmatpush1.bf16.msra.mxu0 %v5338
    %6607 = vmatprep.subr.bf16.mxu0 %v5347
    %6608 = vmatpush1.bf16.msra.mxu0 %v5346
    %6609 = vmatprep.subr.bf16.mxu0 %v5355
    %6610 = vmatpush1.bf16.msra.mxu0 %v5354
    %6611 = vmatprep.subr.bf16.mxu0 %v5363
    %6612 = vmatpush1.bf16.msra.mxu0 %v5362
    %6613 = vmatprep.subr.bf16.mxu0 %v5371
    %6614 = vmatpush1.bf16.msra.mxu0 %v5370
    %6615 = vmatprep.subr.bf16.mxu0 %v5379
    %6616 = vmatpush1.bf16.msra.mxu0 %v5378
    %6617 = vmatprep.subr.bf16.mxu0 %v5387
    %6618 = vmatpush1.bf16.msra.mxu0 %v5386
    %6619 = vmatprep.subr.bf16.mxu0 %v5395
    %6620 = vmatpush1.bf16.msra.mxu0 %v5394
    %6621 = vmatprep.subr.bf16.mxu0 %v5403
    %6622 = vmatpush1.bf16.msra.mxu0 %v5402
    %6623 = vmatprep.subr.bf16.mxu0 %v5411
    %6624 = vmatpush1.bf16.msra.mxu0 %v5410
    %6625 = vmatprep.subr.bf16.mxu0 %v5419
    %6626 = vmatpush1.bf16.msra.mxu0 %v5418
    %6627 = vmatprep.subr.bf16.mxu0 %v5427
    %6628 = vmatpush1.bf16.msra.mxu0 %v5426
    %6629 = vmatprep.subr.bf16.mxu0 %v5435
    %6630 = vmatpush1.bf16.msra.mxu0 %v5434
    %6631 = vmatprep.subr.bf16.mxu0 %v5443
    %6632 = vmatpush1.bf16.msra.mxu0 %v5442
    %6633 = vmatprep.mubr.bf16.mxu0 %v3137
    %6634 = vmatmul.mubr.bf16.gmra.mrb[0].mxu0 %v3136
    %v6635 = vpop.f32.mrb[0].mxu0
    %v6636 = vadd.f32 %v6593, %v6635
    %v6637 = vpop.f32.mrb[0].mxu0
    %v6638 = vadd.f32 %v6595, %v6637
    %v6639 = vpop.f32.mrb[0].mxu0
    %v6640 = vadd.f32 %v6597, %v6639
    %v6641 = vpop.f32.mrb[0].mxu0
    %v6642 = vadd.f32 %v6599, %v6641
    %6643 = vdwg.mxu0
    %6644 = vmatprep.subr.bf16.mxu0 %v5451
    %6645 = vmatpush1.bf16.msra.mxu0 %v5450
    %6646 = vmatprep.subr.bf16.mxu0 %v5459
    %6647 = vmatpush1.bf16.msra.mxu0 %v5458
    %6648 = vmatprep.subr.bf16.mxu0 %v5467
    %6649 = vmatpush1.bf16.msra.mxu0 %v5466
    %6650 = vmatprep.subr.bf16.mxu0 %v5475
    %6651 = vmatpush1.bf16.msra.mxu0 %v5474
    %6652 = vmatprep.subr.bf16.mxu0 %v5483
    %6653 = vmatpush1.bf16.msra.mxu0 %v5482
    %6654 = vmatprep.subr.bf16.mxu0 %v5491
    %6655 = vmatpush1.bf16.msra.mxu0 %v5490
    %6656 = vmatprep.subr.bf16.mxu0 %v5499
    %6657 = vmatpush1.bf16.msra.mxu0 %v5498
    %6658 = vmatprep.subr.bf16.mxu0 %v5507
    %6659 = vmatpush1.bf16.msra.mxu0 %v5506
    %6660 = vmatprep.subr.bf16.mxu0 %v5515
    %6661 = vmatpush1.bf16.msra.mxu0 %v5514
    %6662 = vmatprep.subr.bf16.mxu0 %v5523
    %6663 = vmatpush1.bf16.msra.mxu0 %v5522
    %6664 = vmatprep.subr.bf16.mxu0 %v5531
    %6665 = vmatpush1.bf16.msra.mxu0 %v5530
    %6666 = vmatprep.subr.bf16.mxu0 %v5539
    %6667 = vmatpush1.bf16.msra.mxu0 %v5538
    %6668 = vmatprep.subr.bf16.mxu0 %v5547
    %6669 = vmatpush1.bf16.msra.mxu0 %v5546
    %6670 = vmatprep.subr.bf16.mxu0 %v5555
    %6671 = vmatpush1.bf16.msra.mxu0 %v5554
    %6672 = vmatprep.subr.bf16.mxu0 %v5563
    %6673 = vmatpush1.bf16.msra.mxu0 %v5562
    %6674 = vmatprep.subr.bf16.mxu0 %v5571
    %6675 = vmatpush1.bf16.msra.mxu0 %v5570
    %6676 = vmatprep.mubr.bf16.mxu0 %v3139
    %6677 = vmatmul.mubr.bf16.gmra.mrb[0].mxu0 %v3138
    %v6678 = vpop.f32.mrb[0].mxu0
    %v6679 = vadd.f32 %v6636, %v6678
    %v6680 = vpop.f32.mrb[0].mxu0
    %v6681 = vadd.f32 %v6638, %v6680
    %v6682 = vpop.f32.mrb[0].mxu0
    %v6683 = vadd.f32 %v6640, %v6682
    %v6684 = vpop.f32.mrb[0].mxu0
    %v6685 = vadd.f32 %v6642, %v6684
    %6686 = vdwg.mxu0
    %6687 = vmatprep.subr.bf16.mxu0 %v5579
    %6688 = vmatpush1.bf16.msra.mxu0 %v5578
    %6689 = vmatprep.subr.bf16.mxu0 %v5587
    %6690 = vmatpush1.bf16.msra.mxu0 %v5586
    %6691 = vmatprep.subr.bf16.mxu0 %v5595
    %6692 = vmatpush1.bf16.msra.mxu0 %v5594
    %6693 = vmatprep.subr.bf16.mxu0 %v5603
    %6694 = vmatpush1.bf16.msra.mxu0 %v5602
    %6695 = vmatprep.subr.bf16.mxu0 %v5611
    %6696 = vmatpush1.bf16.msra.mxu0 %v5610
    %6697 = vmatprep.subr.bf16.mxu0 %v5619
    %6698 = vmatpush1.bf16.msra.mxu0 %v5618
    %6699 = vmatprep.subr.bf16.mxu0 %v5627
    %6700 = vmatpush1.bf16.msra.mxu0 %v5626
    %6701 = vmatprep.subr.bf16.mxu0 %v5635
    %6702 = vmatpush1.bf16.msra.mxu0 %v5634
    %6703 = vmatprep.subr.bf16.mxu0 %v5643
    %6704 = vmatpush1.bf16.msra.mxu0 %v5642
    %6705 = vmatprep.subr.bf16.mxu0 %v5651
    %6706 = vmatpush1.bf16.msra.mxu0 %v5650
    %6707 = vmatprep.subr.bf16.mxu0 %v5659
    %6708 = vmatpush1.bf16.msra.mxu0 %v5658
    %6709 = vmatprep.subr.bf16.mxu0 %v5667
    %6710 = vmatpush1.bf16.msra.mxu0 %v5666
    %6711 = vmatprep.subr.bf16.mxu0 %v5675
    %6712 = vmatpush1.bf16.msra.mxu0 %v5674
    %6713 = vmatprep.subr.bf16.mxu0 %v5683
    %6714 = vmatpush1.bf16.msra.mxu0 %v5682
    %6715 = vmatprep.subr.bf16.mxu0 %v5691
    %6716 = vmatpush1.bf16.msra.mxu0 %v5690
    %6717 = vmatprep.subr.bf16.mxu0 %v5699
    %6718 = vmatpush1.bf16.msra.mxu0 %v5698
    %6719 = vmatprep.mubr.bf16.mxu0 %v3141
    %6720 = vmatmul.mubr.bf16.gmra.mrb[0].mxu0 %v3140
    %v6721 = vpop.f32.mrb[0].mxu0
    %v6722 = vadd.f32 %v6679, %v6721
    %v6723 = vpop.f32.mrb[0].mxu0
    %v6724 = vadd.f32 %v6681, %v6723
    %v6725 = vpop.f32.mrb[0].mxu0
    %v6726 = vadd.f32 %v6683, %v6725
    %v6727 = vpop.f32.mrb[0].mxu0
    %v6728 = vadd.f32 %v6685, %v6727
    %6729 = vdwg.mxu0
    %6730 = vmatprep.subr.bf16.mxu0 %v5197
    %6731 = vmatpush1.bf16.msra.mxu0 %v5196
    %6732 = vmatprep.subr.bf16.mxu0 %v5205
    %6733 = vmatpush1.bf16.msra.mxu0 %v5204
    %6734 = vmatprep.subr.bf16.mxu0 %v5213
    %6735 = vmatpush1.bf16.msra.mxu0 %v5212
    %6736 = vmatprep.subr.bf16.mxu0 %v5221
    %6737 = vmatpush1.bf16.msra.mxu0 %v5220
    %6738 = vmatprep.subr.bf16.mxu0 %v5229
    %6739 = vmatpush1.bf16.msra.mxu0 %v5228
    %6740 = vmatprep.subr.bf16.mxu0 %v5237
    %6741 = vmatpush1.bf16.msra.mxu0 %v5236
    %6742 = vmatprep.subr.bf16.mxu0 %v5245
    %6743 = vmatpush1.bf16.msra.mxu0 %v5244
    %6744 = vmatprep.subr.bf16.mxu0 %v5253
    %6745 = vmatpush1.bf16.msra.mxu0 %v5252
    %6746 = vmatprep.subr.bf16.mxu0 %v5261
    %6747 = vmatpush1.bf16.msra.mxu0 %v5260
    %6748 = vmatprep.subr.bf16.mxu0 %v5269
    %6749 = vmatpush1.bf16.msra.mxu0 %v5268
    %6750 = vmatprep.subr.bf16.mxu0 %v5277
    %6751 = vmatpush1.bf16.msra.mxu0 %v5276
    %6752 = vmatprep.subr.bf16.mxu0 %v5285
    %6753 = vmatpush1.bf16.msra.mxu0 %v5284
    %6754 = vmatprep.subr.bf16.mxu0 %v5293
    %6755 = vmatpush1.bf16.msra.mxu0 %v5292
    %6756 = vmatprep.subr.bf16.mxu0 %v5301
    %6757 = vmatpush1.bf16.msra.mxu0 %v5300
    %6758 = vmatprep.subr.bf16.mxu0 %v5309
    %6759 = vmatpush1.bf16.msra.mxu0 %v5308
    %6760 = vmatprep.subr.bf16.mxu0 %v5317
    %6761 = vmatpush1.bf16.msra.mxu0 %v5316
    %6762 = vmatprep.mubr.bf16.mxu0 %v3135
    %6763 = vmatmul.mubr.bf16.gmra.mrb[0].mxu0 %v3134
    %v6764 = vpop.f32.mrb[0].mxu0
    %v6765 = vadd.f32 0.0, %v6764
    %v6766 = vpop.f32.mrb[0].mxu0
    %v6767 = vadd.f32 0.0, %v6766
    %v6768 = vpop.f32.mrb[0].mxu0
    %v6769 = vadd.f32 0.0, %v6768
    %v6770 = vpop.f32.mrb[0].mxu0
    %v6771 = vadd.f32 0.0, %v6770
    %6772 = vdwg.mxu0
    %6773 = vmatprep.subr.bf16.mxu0 %v5325
    %6774 = vmatpush1.bf16.msra.mxu0 %v5324
    %6775 = vmatprep.subr.bf16.mxu0 %v5333
    %6776 = vmatpush1.bf16.msra.mxu0 %v5332
    %6777 = vmatprep.subr.bf16.mxu0 %v5341
    %6778 = vmatpush1.bf16.msra.mxu0 %v5340
    %6779 = vmatprep.subr.bf16.mxu0 %v5349
    %6780 = vmatpush1.bf16.msra.mxu0 %v5348
    %6781 = vmatprep.subr.bf16.mxu0 %v5357
    %6782 = vmatpush1.bf16.msra.mxu0 %v5356
    %6783 = vmatprep.subr.bf16.mxu0 %v5365
    %6784 = vmatpush1.bf16.msra.mxu0 %v5364
    %6785 = vmatprep.subr.bf16.mxu0 %v5373
    %6786 = vmatpush1.bf16.msra.mxu0 %v5372
    %6787 = vmatprep.subr.bf16.mxu0 %v5381
    %6788 = vmatpush1.bf16.msra.mxu0 %v5380
    %6789 = vmatprep.subr.bf16.mxu0 %v5389
    %6790 = vmatpush1.bf16.msra.mxu0 %v5388
    %6791 = vmatprep.subr.bf16.mxu0 %v5397
    %6792 = vmatpush1.bf16.msra.mxu0 %v5396
    %6793 = vmatprep.subr.bf16.mxu0 %v5405
    %6794 = vmatpush1.bf16.msra.mxu0 %v5404
    %6795 = vmatprep.subr.bf16.mxu0 %v5413
    %6796 = vmatpush1.bf16.msra.mxu0 %v5412
    %6797 = vmatprep.subr.bf16.mxu0 %v5421
    %6798 = vmatpush1.bf16.msra.mxu0 %v5420
    %6799 = vmatprep.subr.bf16.mxu0 %v5429
    %6800 = vmatpush1.bf16.msra.mxu0 %v5428
    %6801 = vmatprep.subr.bf16.mxu0 %v5437
    %6802 = vmatpush1.bf16.msra.mxu0 %v5436
    %6803 = vmatprep.subr.bf16.mxu0 %v5445
    %6804 = vmatpush1.bf16.msra.mxu0 %v5444
    %6805 = vmatprep.mubr.bf16.mxu0 %v3137
    %6806 = vmatmul.mubr.bf16.gmra.mrb[0].mxu0 %v3136
    %v6807 = vpop.f32.mrb[0].mxu0
    %v6808 = vadd.f32 %v6765, %v6807
    %v6809 = vpop.f32.mrb[0].mxu0
    %v6810 = vadd.f32 %v6767, %v6809
    %v6811 = vpop.f32.mrb[0].mxu0
    %v6812 = vadd.f32 %v6769, %v6811
    %v6813 = vpop.f32.mrb[0].mxu0
    %v6814 = vadd.f32 %v6771, %v6813
    %6815 = vdwg.mxu0
    %6816 = vmatprep.subr.bf16.mxu0 %v5453
    %6817 = vmatpush1.bf16.msra.mxu0 %v5452
    %6818 = vmatprep.subr.bf16.mxu0 %v5461
    %6819 = vmatpush1.bf16.msra.mxu0 %v5460
    %6820 = vmatprep.subr.bf16.mxu0 %v5469
    %6821 = vmatpush1.bf16.msra.mxu0 %v5468
    %6822 = vmatprep.subr.bf16.mxu0 %v5477
    %6823 = vmatpush1.bf16.msra.mxu0 %v5476
    %6824 = vmatprep.subr.bf16.mxu0 %v5485
    %6825 = vmatpush1.bf16.msra.mxu0 %v5484
    %6826 = vmatprep.subr.bf16.mxu0 %v5493
    %6827 = vmatpush1.bf16.msra.mxu0 %v5492
    %6828 = vmatprep.subr.bf16.mxu0 %v5501
    %6829 = vmatpush1.bf16.msra.mxu0 %v5500
    %6830 = vmatprep.subr.bf16.mxu0 %v5509
    %6831 = vmatpush1.bf16.msra.mxu0 %v5508
    %6832 = vmatprep.subr.bf16.mxu0 %v5517
    %6833 = vmatpush1.bf16.msra.mxu0 %v5516
    %6834 = vmatprep.subr.bf16.mxu0 %v5525
    %6835 = vmatpush1.bf16.msra.mxu0 %v5524
    %6836 = vmatprep.subr.bf16.mxu0 %v5533
    %6837 = vmatpush1.bf16.msra.mxu0 %v5532
    %6838 = vmatprep.subr.bf16.mxu0 %v5541
    %6839 = vmatpush1.bf16.msra.mxu0 %v5540
    %6840 = vmatprep.subr.bf16.mxu0 %v5549
    %6841 = vmatpush1.bf16.msra.mxu0 %v5548
    %6842 = vmatprep.subr.bf16.mxu0 %v5557
    %6843 = vmatpush1.bf16.msra.mxu0 %v5556
    %6844 = vmatprep.subr.bf16.mxu0 %v5565
    %6845 = vmatpush1.bf16.msra.mxu0 %v5564
    %6846 = vmatprep.subr.bf16.mxu0 %v5573
    %6847 = vmatpush1.bf16.msra.mxu0 %v5572
    %6848 = vmatprep.mubr.bf16.mxu0 %v3139
    %6849 = vmatmul.mubr.bf16.gmra.mrb[0].mxu0 %v3138
    %v6850 = vpop.f32.mrb[0].mxu0
    %v6851 = vadd.f32 %v6808, %v6850
    %v6852 = vpop.f32.mrb[0].mxu0
    %v6853 = vadd.f32 %v6810, %v6852
    %v6854 = vpop.f32.mrb[0].mxu0
    %v6855 = vadd.f32 %v6812, %v6854
    %v6856 = vpop.f32.mrb[0].mxu0
    %v6857 = vadd.f32 %v6814, %v6856
    %6858 = vdwg.mxu0
    %6859 = vmatprep.subr.bf16.mxu0 %v5581
    %6860 = vmatpush1.bf16.msra.mxu0 %v5580
    %6861 = vmatprep.subr.bf16.mxu0 %v5589
    %6862 = vmatpush1.bf16.msra.mxu0 %v5588
    %6863 = vmatprep.subr.bf16.mxu0 %v5597
    %6864 = vmatpush1.bf16.msra.mxu0 %v5596
    %6865 = vmatprep.subr.bf16.mxu0 %v5605
    %6866 = vmatpush1.bf16.msra.mxu0 %v5604
    %6867 = vmatprep.subr.bf16.mxu0 %v5613
    %6868 = vmatpush1.bf16.msra.mxu0 %v5612
    %6869 = vmatprep.subr.bf16.mxu0 %v5621
    %6870 = vmatpush1.bf16.msra.mxu0 %v5620
    %6871 = vmatprep.subr.bf16.mxu0 %v5629
    %6872 = vmatpush1.bf16.msra.mxu0 %v5628
    %6873 = vmatprep.subr.bf16.mxu0 %v5637
    %6874 = vmatpush1.bf16.msra.mxu0 %v5636
    %6875 = vmatprep.subr.bf16.mxu0 %v5645
    %6876 = vmatpush1.bf16.msra.mxu0 %v5644
    %6877 = vmatprep.subr.bf16.mxu0 %v5653
    %6878 = vmatpush1.bf16.msra.mxu0 %v5652
    %6879 = vmatprep.subr.bf16.mxu0 %v5661
    %6880 = vmatpush1.bf16.msra.mxu0 %v5660
    %6881 = vmatprep.subr.bf16.mxu0 %v5669
    %6882 = vmatpush1.bf16.msra.mxu0 %v5668
    %6883 = vmatprep.subr.bf16.mxu0 %v5677
    %6884 = vmatpush1.bf16.msra.mxu0 %v5676
    %6885 = vmatprep.subr.bf16.mxu0 %v5685
    %6886 = vmatpush1.bf16.msra.mxu0 %v5684
    %6887 = vmatprep.subr.bf16.mxu0 %v5693
    %6888 = vmatpush1.bf16.msra.mxu0 %v5692
    %6889 = vmatprep.subr.bf16.mxu0 %v5701
    %6890 = vmatpush1.bf16.msra.mxu0 %v5700
    %6891 = vmatprep.mubr.bf16.mxu0 %v3141
    %6892 = vmatmul.mubr.bf16.gmra.mrb[0].mxu0 %v3140
    %v6893 = vpop.f32.mrb[0].mxu0
    %v6894 = vadd.f32 %v6851, %v6893
    %v6895 = vpop.f32.mrb[0].mxu0
    %v6896 = vadd.f32 %v6853, %v6895
    %v6897 = vpop.f32.mrb[0].mxu0
    %v6898 = vadd.f32 %v6855, %v6897
    %v6899 = vpop.f32.mrb[0].mxu0
    %v6900 = vadd.f32 %v6857, %v6899
    %6901 = vdwg.mxu0
    %v6902 = vld [vmem:[#allocation11] sm:$0xff]
    %v6904 = vlaneseq
    %v6905 = vshrl.u32 %v6904, 7
    %v6906 = vsub.s32 0, %v6905
    %v6907 = vrot.slane %v6902, %v6906
    %v6908 = vlaneseq
    %v6909 = vshrl.u32 %v6908, 7
    %v6910 = vsub.s32 1, %v6909
    %v6911 = vrot.slane %v6902, %v6910
    %v6912 = vlaneseq
    %v6913 = vshrl.u32 %v6912, 7
    %v6914 = vsub.s32 2, %v6913
    %v6915 = vrot.slane %v6902, %v6914
    %v6916 = vlaneseq
    %v6917 = vshrl.u32 %v6916, 7
    %v6918 = vsub.s32 3, %v6917
    %v6919 = vrot.slane %v6902, %v6918
    %v6920 = vlaneseq
    %v6921 = vshrl.u32 %v6920, 7
    %v6922 = vsub.s32 4, %v6921
    %v6923 = vrot.slane %v6902, %v6922
    %v6924 = vlaneseq
    %v6925 = vshrl.u32 %v6924, 7
    %v6926 = vsub.s32 5, %v6925
    %v6927 = vrot.slane %v6902, %v6926
    %v6928 = vlaneseq
    %v6929 = vshrl.u32 %v6928, 7
    %v6930 = vsub.s32 6, %v6929
    %v6931 = vrot.slane %v6902, %v6930
    %v6932 = vlaneseq
    %v6933 = vshrl.u32 %v6932, 7
    %v6934 = vsub.s32 7, %v6933
    %v6935 = vrot.slane %v6902, %v6934
    %v6944 = vmul.f32 %v6378, %v6907
    %v6945 = vmul.f32 %v6380, %v6911
    %v6946 = vmul.f32 %v6550, %v6915
    %v6947 = vmul.f32 %v6552, %v6919
    %v6948 = vmul.f32 %v6722, %v6923
    %v6949 = vmul.f32 %v6724, %v6927
    %v6950 = vmul.f32 %v6894, %v6931
    %v6951 = vmul.f32 %v6896, %v6935
    %v6952 = vmul.f32 %v6382, %v6907
    %v6953 = vmul.f32 %v6384, %v6911
    %v6954 = vmul.f32 %v6554, %v6915
    %v6955 = vmul.f32 %v6556, %v6919
    %v6956 = vmul.f32 %v6726, %v6923
    %v6957 = vmul.f32 %v6728, %v6927
    %v6958 = vmul.f32 %v6898, %v6931
    %v6959 = vmul.f32 %v6900, %v6935
    %v6960 = vld [vmem:[#allocation13] sm:$0xff]
    %v6962 = vlaneseq
    %v6963 = vshrl.u32 %v6962, 7
    %v6964 = vsub.s32 0, %v6963
    %v6965 = vrot.slane %v6960, %v6964
    %v6966 = vlaneseq
    %v6967 = vshrl.u32 %v6966, 7
    %v6968 = vsub.s32 1, %v6967
    %v6969 = vrot.slane %v6960, %v6968
    %v6970 = vlaneseq
    %v6971 = vshrl.u32 %v6970, 7
    %v6972 = vsub.s32 2, %v6971
    %v6973 = vrot.slane %v6960, %v6972
    %v6974 = vlaneseq
    %v6975 = vshrl.u32 %v6974, 7
    %v6976 = vsub.s32 3, %v6975
    %v6977 = vrot.slane %v6960, %v6976
    %v6978 = vlaneseq
    %v6979 = vshrl.u32 %v6978, 7
    %v6980 = vsub.s32 4, %v6979
    %v6981 = vrot.slane %v6960, %v6980
    %v6982 = vlaneseq
    %v6983 = vshrl.u32 %v6982, 7
    %v6984 = vsub.s32 5, %v6983
    %v6985 = vrot.slane %v6960, %v6984
    %v6986 = vlaneseq
    %v6987 = vshrl.u32 %v6986, 7
    %v6988 = vsub.s32 6, %v6987
    %v6989 = vrot.slane %v6960, %v6988
    %v6990 = vlaneseq
    %v6991 = vshrl.u32 %v6990, 7
    %v6992 = vsub.s32 7, %v6991
    %v6993 = vrot.slane %v6960, %v6992
    %v7002 = vadd.f32 %v6944, %v6965
    %v7003 = vadd.f32 %v6945, %v6969
    %v7004 = vadd.f32 %v6946, %v6973
    %v7005 = vadd.f32 %v6947, %v6977
    %v7006 = vadd.f32 %v6948, %v6981
    %v7007 = vadd.f32 %v6949, %v6985
    %v7008 = vadd.f32 %v6950, %v6989
    %v7009 = vadd.f32 %v6951, %v6993
    %v7010 = vadd.f32 %v6952, %v6965
    %v7011 = vadd.f32 %v6953, %v6969
    %v7012 = vadd.f32 %v6954, %v6973
    %v7013 = vadd.f32 %v6955, %v6977
    %v7014 = vadd.f32 %v6956, %v6981
    %v7015 = vadd.f32 %v6957, %v6985
    %v7016 = vadd.f32 %v6958, %v6989
    %v7017 = vadd.f32 %v6959, %v6993
    %v7018 = vmax.f32 %v7002, 0.0
    %v7019 = vmax.f32 %v7003, 0.0
    %v7020 = vmax.f32 %v7004, 0.0
    %v7021 = vmax.f32 %v7005, 0.0
    %v7022 = vmax.f32 %v7006, 0.0
    %v7023 = vmax.f32 %v7007, 0.0
    %v7024 = vmax.f32 %v7008, 0.0
    %v7025 = vmax.f32 %v7009, 0.0
    %v7026 = vmax.f32 %v7010, 0.0
    %v7027 = vmax.f32 %v7011, 0.0
    %v7028 = vmax.f32 %v7012, 0.0
    %v7029 = vmax.f32 %v7013, 0.0
    %v7030 = vmax.f32 %v7014, 0.0
    %v7031 = vmax.f32 %v7015, 0.0
    %v7032 = vmax.f32 %v7016, 0.0
    %v7033 = vmax.f32 %v7017, 0.0
    %v7034 = vpack.c.bf16 %v7026, %v7018
    %v7035 = vpack.c.bf16 %v7027, %v7019
    %v7036 = vpack.c.bf16 %v7028, %v7020
    %v7037 = vpack.c.bf16 %v7029, %v7021
    %v7038 = vpack.c.bf16 %v7030, %v7022
    %v7039 = vpack.c.bf16 %v7031, %v7023
    %v7040 = vpack.c.bf16 %v7032, %v7024
    %v7041 = vpack.c.bf16 %v7033, %v7025
    %v7042 = vld [vmem:[#allocation14] sm:$0xf]
    %v7043 = vld [vmem:[#allocation14 + $0x4] sm:$0xf]
    %v7044 = vld [vmem:[#allocation14 + $0x8] sm:$0xf]
    %v7045 = vld [vmem:[#allocation14 + $0xc] sm:$0xf]
    %v7046 = vld [vmem:[#allocation14 + $0x10] sm:$0xf]
    %v7047 = vld [vmem:[#allocation14 + $0x14] sm:$0xf]
    %v7048 = vld [vmem:[#allocation14 + $0x18] sm:$0xf]
    %v7049 = vld [vmem:[#allocation14 + $0x1c] sm:$0xf]
    %v7050 = vld [vmem:[#allocation14 + $0x20] sm:$0xf]
    %v7051 = vld [vmem:[#allocation14 + $0x24] sm:$0xf]
    %v7052 = vld [vmem:[#allocation14 + $0x28] sm:$0xf]
    %v7053 = vld [vmem:[#allocation14 + $0x2c] sm:$0xf]
    %v7054 = vld [vmem:[#allocation14 + $0x30] sm:$0xf]
    %v7055 = vld [vmem:[#allocation14 + $0x34] sm:$0xf]
    %v7056 = vld [vmem:[#allocation14 + $0x38] sm:$0xf]
    %v7057 = vld [vmem:[#allocation14 + $0x3c] sm:$0xf]
    %v7058 = vld [vmem:[#allocation14 + $0x40] sm:$0xf]
    %v7059 = vld [vmem:[#allocation14 + $0x44] sm:$0xf]
    %v7060 = vld [vmem:[#allocation14 + $0x48] sm:$0xf]
    %v7061 = vld [vmem:[#allocation14 + $0x4c] sm:$0xf]
    %v7062 = vld [vmem:[#allocation14 + $0x50] sm:$0xf]
    %v7063 = vld [vmem:[#allocation14 + $0x54] sm:$0xf]
    %v7064 = vld [vmem:[#allocation14 + $0x58] sm:$0xf]
    %v7065 = vld [vmem:[#allocation14 + $0x5c] sm:$0xf]
    %v7066 = vld [vmem:[#allocation14 + $0x60] sm:$0xf]
    %v7067 = vld [vmem:[#allocation14 + $0x64] sm:$0xf]
    %v7068 = vld [vmem:[#allocation14 + $0x68] sm:$0xf]
    %v7069 = vld [vmem:[#allocation14 + $0x6c] sm:$0xf]
    %v7070 = vld [vmem:[#allocation14 + $0x70] sm:$0xf]
    %v7071 = vld [vmem:[#allocation14 + $0x74] sm:$0xf]
    %v7072 = vld [vmem:[#allocation14 + $0x78] sm:$0xf]
    %v7073 = vld [vmem:[#allocation14 + $0x7c] sm:$0xf]
    %v7074 = vld [vmem:[#allocation14 + $0x80] sm:$0xf]
    %v7075 = vld [vmem:[#allocation14 + $0x84] sm:$0xf]
    %v7076 = vld [vmem:[#allocation14 + $0x88] sm:$0xf]
    %v7077 = vld [vmem:[#allocation14 + $0x8c] sm:$0xf]
    %v7078 = vld [vmem:[#allocation14 + $0x90] sm:$0xf]
    %v7079 = vld [vmem:[#allocation14 + $0x94] sm:$0xf]
    %v7080 = vld [vmem:[#allocation14 + $0x98] sm:$0xf]
    %v7081 = vld [vmem:[#allocation14 + $0x9c] sm:$0xf]
    %v7082 = vld [vmem:[#allocation14 + $0xa0] sm:$0xf]
    %v7083 = vld [vmem:[#allocation14 + $0xa4] sm:$0xf]
    %v7084 = vld [vmem:[#allocation14 + $0xa8] sm:$0xf]
    %v7085 = vld [vmem:[#allocation14 + $0xac] sm:$0xf]
    %v7086 = vld [vmem:[#allocation14 + $0xb0] sm:$0xf]
    %v7087 = vld [vmem:[#allocation14 + $0xb4] sm:$0xf]
    %v7088 = vld [vmem:[#allocation14 + $0xb8] sm:$0xf]
    %v7089 = vld [vmem:[#allocation14 + $0xbc] sm:$0xf]
    %v7090 = vld [vmem:[#allocation14 + $0xc0] sm:$0xf]
    %v7091 = vld [vmem:[#allocation14 + $0xc4] sm:$0xf]
    %v7092 = vld [vmem:[#allocation14 + $0xc8] sm:$0xf]
    %v7093 = vld [vmem:[#allocation14 + $0xcc] sm:$0xf]
    %v7094 = vld [vmem:[#allocation14 + $0xd0] sm:$0xf]
    %v7095 = vld [vmem:[#allocation14 + $0xd4] sm:$0xf]
    %v7096 = vld [vmem:[#allocation14 + $0xd8] sm:$0xf]
    %v7097 = vld [vmem:[#allocation14 + $0xdc] sm:$0xf]
    %v7098 = vld [vmem:[#allocation14 + $0xe0] sm:$0xf]
    %v7099 = vld [vmem:[#allocation14 + $0xe4] sm:$0xf]
    %v7100 = vld [vmem:[#allocation14 + $0xe8] sm:$0xf]
    %v7101 = vld [vmem:[#allocation14 + $0xec] sm:$0xf]
    %v7102 = vld [vmem:[#allocation14 + $0xf0] sm:$0xf]
    %v7103 = vld [vmem:[#allocation14 + $0xf4] sm:$0xf]
    %v7104 = vld [vmem:[#allocation14 + $0xf8] sm:$0xf]
    %v7105 = vld [vmem:[#allocation14 + $0xfc] sm:$0xf]
    %v7106 = vld [vmem:[#allocation14 + $0x100] sm:$0xf]
    %v7107 = vld [vmem:[#allocation14 + $0x104] sm:$0xf]
    %v7108 = vld [vmem:[#allocation14 + $0x108] sm:$0xf]
    %v7109 = vld [vmem:[#allocation14 + $0x10c] sm:$0xf]
    %v7110 = vld [vmem:[#allocation14 + $0x110] sm:$0xf]
    %v7111 = vld [vmem:[#allocation14 + $0x114] sm:$0xf]
    %v7112 = vld [vmem:[#allocation14 + $0x118] sm:$0xf]
    %v7113 = vld [vmem:[#allocation14 + $0x11c] sm:$0xf]
    %v7114 = vld [vmem:[#allocation14 + $0x120] sm:$0xf]
    %v7115 = vld [vmem:[#allocation14 + $0x124] sm:$0xf]
    %v7116 = vld [vmem:[#allocation14 + $0x128] sm:$0xf]
    %v7117 = vld [vmem:[#allocation14 + $0x12c] sm:$0xf]
    %v7118 = vld [vmem:[#allocation14 + $0x130] sm:$0xf]
    %v7119 = vld [vmem:[#allocation14 + $0x134] sm:$0xf]
    %v7120 = vld [vmem:[#allocation14 + $0x138] sm:$0xf]
    %v7121 = vld [vmem:[#allocation14 + $0x13c] sm:$0xf]
    %v7122 = vld [vmem:[#allocation14 + $0x140] sm:$0xf]
    %v7123 = vld [vmem:[#allocation14 + $0x144] sm:$0xf]
    %v7124 = vld [vmem:[#allocation14 + $0x148] sm:$0xf]
    %v7125 = vld [vmem:[#allocation14 + $0x14c] sm:$0xf]
    %v7126 = vld [vmem:[#allocation14 + $0x150] sm:$0xf]
    %v7127 = vld [vmem:[#allocation14 + $0x154] sm:$0xf]
    %v7128 = vld [vmem:[#allocation14 + $0x158] sm:$0xf]
    %v7129 = vld [vmem:[#allocation14 + $0x15c] sm:$0xf]
    %v7130 = vld [vmem:[#allocation14 + $0x160] sm:$0xf]
    %v7131 = vld [vmem:[#allocation14 + $0x164] sm:$0xf]
    %v7132 = vld [vmem:[#allocation14 + $0x168] sm:$0xf]
    %v7133 = vld [vmem:[#allocation14 + $0x16c] sm:$0xf]
    %v7134 = vld [vmem:[#allocation14 + $0x170] sm:$0xf]
    %v7135 = vld [vmem:[#allocation14 + $0x174] sm:$0xf]
    %v7136 = vld [vmem:[#allocation14 + $0x178] sm:$0xf]
    %v7137 = vld [vmem:[#allocation14 + $0x17c] sm:$0xf]
    %v7138 = vld [vmem:[#allocation14 + $0x180] sm:$0xf]
    %v7139 = vld [vmem:[#allocation14 + $0x184] sm:$0xf]
    %v7140 = vld [vmem:[#allocation14 + $0x188] sm:$0xf]
    %v7141 = vld [vmem:[#allocation14 + $0x18c] sm:$0xf]
    %v7142 = vld [vmem:[#allocation14 + $0x190] sm:$0xf]
    %v7143 = vld [vmem:[#allocation14 + $0x194] sm:$0xf]
    %v7144 = vld [vmem:[#allocation14 + $0x198] sm:$0xf]
    %v7145 = vld [vmem:[#allocation14 + $0x19c] sm:$0xf]
    %v7146 = vld [vmem:[#allocation14 + $0x1a0] sm:$0xf]
    %v7147 = vld [vmem:[#allocation14 + $0x1a4] sm:$0xf]
    %v7148 = vld [vmem:[#allocation14 + $0x1a8] sm:$0xf]
    %v7149 = vld [vmem:[#allocation14 + $0x1ac] sm:$0xf]
    %v7150 = vld [vmem:[#allocation14 + $0x1b0] sm:$0xf]
    %v7151 = vld [vmem:[#allocation14 + $0x1b4] sm:$0xf]
    %v7152 = vld [vmem:[#allocation14 + $0x1b8] sm:$0xf]
    %v7153 = vld [vmem:[#allocation14 + $0x1bc] sm:$0xf]
    %v7154 = vld [vmem:[#allocation14 + $0x1c0] sm:$0xf]
    %v7155 = vld [vmem:[#allocation14 + $0x1c4] sm:$0xf]
    %v7156 = vld [vmem:[#allocation14 + $0x1c8] sm:$0xf]
    %v7157 = vld [vmem:[#allocation14 + $0x1cc] sm:$0xf]
    %v7158 = vld [vmem:[#allocation14 + $0x1d0] sm:$0xf]
    %v7159 = vld [vmem:[#allocation14 + $0x1d4] sm:$0xf]
    %v7160 = vld [vmem:[#allocation14 + $0x1d8] sm:$0xf]
    %v7161 = vld [vmem:[#allocation14 + $0x1dc] sm:$0xf]
    %v7162 = vld [vmem:[#allocation14 + $0x1e0] sm:$0xf]
    %v7163 = vld [vmem:[#allocation14 + $0x1e4] sm:$0xf]
    %v7164 = vld [vmem:[#allocation14 + $0x1e8] sm:$0xf]
    %v7165 = vld [vmem:[#allocation14 + $0x1ec] sm:$0xf]
    %v7166 = vld [vmem:[#allocation14 + $0x1f0] sm:$0xf]
    %v7167 = vld [vmem:[#allocation14 + $0x1f4] sm:$0xf]
    %v7168 = vld [vmem:[#allocation14 + $0x1f8] sm:$0xf]
    %v7169 = vld [vmem:[#allocation14 + $0x1fc] sm:$0xf]
    %v7170 = vld [vmem:[#allocation16] sm:$0x1]
    %v7172 = vlaneseq
    %v7173 = vshrl.u32 %v7172, 7
    %v7174 = vsub.s32 0, %v7173
    %v7175 = vrot.slane %v7170, %v7174
    %v7305 = vunpack.c.l.b16 %v7042
    %v7306 = vunpack.c.l.b16 %v7043
    %v7307 = vunpack.c.l.b16 %v7044
    %v7308 = vunpack.c.l.b16 %v7045
    %v7309 = vunpack.c.l.b16 %v7046
    %v7310 = vunpack.c.l.b16 %v7047
    %v7311 = vunpack.c.l.b16 %v7048
    %v7312 = vunpack.c.l.b16 %v7049
    %v7313 = vunpack.c.l.b16 %v7050
    %v7314 = vunpack.c.l.b16 %v7051
    %v7315 = vunpack.c.l.b16 %v7052
    %v7316 = vunpack.c.l.b16 %v7053
    %v7317 = vunpack.c.l.b16 %v7054
    %v7318 = vunpack.c.l.b16 %v7055
    %v7319 = vunpack.c.l.b16 %v7056
    %v7320 = vunpack.c.l.b16 %v7057
    %v7321 = vunpack.c.l.b16 %v7058
    %v7322 = vunpack.c.l.b16 %v7059
    %v7323 = vunpack.c.l.b16 %v7060
    %v7324 = vunpack.c.l.b16 %v7061
    %v7325 = vunpack.c.l.b16 %v7062
    %v7326 = vunpack.c.l.b16 %v7063
    %v7327 = vunpack.c.l.b16 %v7064
    %v7328 = vunpack.c.l.b16 %v7065
    %v7329 = vunpack.c.l.b16 %v7066
    %v7330 = vunpack.c.l.b16 %v7067
    %v7331 = vunpack.c.l.b16 %v7068
    %v7332 = vunpack.c.l.b16 %v7069
    %v7333 = vunpack.c.l.b16 %v7070
    %v7334 = vunpack.c.l.b16 %v7071
    %v7335 = vunpack.c.l.b16 %v7072
    %v7336 = vunpack.c.l.b16 %v7073
    %v7337 = vunpack.c.l.b16 %v7074
    %v7338 = vunpack.c.l.b16 %v7075
    %v7339 = vunpack.c.l.b16 %v7076
    %v7340 = vunpack.c.l.b16 %v7077
    %v7341 = vunpack.c.l.b16 %v7078
    %v7342 = vunpack.c.l.b16 %v7079
    %v7343 = vunpack.c.l.b16 %v7080
    %v7344 = vunpack.c.l.b16 %v7081
    %v7345 = vunpack.c.l.b16 %v7082
    %v7346 = vunpack.c.l.b16 %v7083
    %v7347 = vunpack.c.l.b16 %v7084
    %v7348 = vunpack.c.l.b16 %v7085
    %v7349 = vunpack.c.l.b16 %v7086
    %v7350 = vunpack.c.l.b16 %v7087
    %v7351 = vunpack.c.l.b16 %v7088
    %v7352 = vunpack.c.l.b16 %v7089
    %v7353 = vunpack.c.l.b16 %v7090
    %v7354 = vunpack.c.l.b16 %v7091
    %v7355 = vunpack.c.l.b16 %v7092
    %v7356 = vunpack.c.l.b16 %v7093
    %v7357 = vunpack.c.l.b16 %v7094
    %v7358 = vunpack.c.l.b16 %v7095
    %v7359 = vunpack.c.l.b16 %v7096
    %v7360 = vunpack.c.l.b16 %v7097
    %v7361 = vunpack.c.l.b16 %v7098
    %v7362 = vunpack.c.l.b16 %v7099
    %v7363 = vunpack.c.l.b16 %v7100
    %v7364 = vunpack.c.l.b16 %v7101
    %v7365 = vunpack.c.l.b16 %v7102
    %v7366 = vunpack.c.l.b16 %v7103
    %v7367 = vunpack.c.l.b16 %v7104
    %v7368 = vunpack.c.l.b16 %v7105
    %v7369 = vunpack.c.l.b16 %v7106
    %v7370 = vunpack.c.l.b16 %v7107
    %v7371 = vunpack.c.l.b16 %v7108
    %v7372 = vunpack.c.l.b16 %v7109
    %v7373 = vunpack.c.l.b16 %v7110
    %v7374 = vunpack.c.l.b16 %v7111
    %v7375 = vunpack.c.l.b16 %v7112
    %v7376 = vunpack.c.l.b16 %v7113
    %v7377 = vunpack.c.l.b16 %v7114
    %v7378 = vunpack.c.l.b16 %v7115
    %v7379 = vunpack.c.l.b16 %v7116
    %v7380 = vunpack.c.l.b16 %v7117
    %v7381 = vunpack.c.l.b16 %v7118
    %v7382 = vunpack.c.l.b16 %v7119
    %v7383 = vunpack.c.l.b16 %v7120
    %v7384 = vunpack.c.l.b16 %v7121
    %v7385 = vunpack.c.l.b16 %v7122
    %v7386 = vunpack.c.l.b16 %v7123
    %v7387 = vunpack.c.l.b16 %v7124
    %v7388 = vunpack.c.l.b16 %v7125
    %v7389 = vunpack.c.l.b16 %v7126
    %v7390 = vunpack.c.l.b16 %v7127
    %v7391 = vunpack.c.l.b16 %v7128
    %v7392 = vunpack.c.l.b16 %v7129
    %v7393 = vunpack.c.l.b16 %v7130
    %v7394 = vunpack.c.l.b16 %v7131
    %v7395 = vunpack.c.l.b16 %v7132
    %v7396 = vunpack.c.l.b16 %v7133
    %v7397 = vunpack.c.l.b16 %v7134
    %v7398 = vunpack.c.l.b16 %v7135
    %v7399 = vunpack.c.l.b16 %v7136
    %v7400 = vunpack.c.l.b16 %v7137
    %v7401 = vunpack.c.l.b16 %v7138
    %v7402 = vunpack.c.l.b16 %v7139
    %v7403 = vunpack.c.l.b16 %v7140
    %v7404 = vunpack.c.l.b16 %v7141
    %v7405 = vunpack.c.l.b16 %v7142
    %v7406 = vunpack.c.l.b16 %v7143
    %v7407 = vunpack.c.l.b16 %v7144
    %v7408 = vunpack.c.l.b16 %v7145
    %v7409 = vunpack.c.l.b16 %v7146
    %v7410 = vunpack.c.l.b16 %v7147
    %v7411 = vunpack.c.l.b16 %v7148
    %v7412 = vunpack.c.l.b16 %v7149
    %v7413 = vunpack.c.l.b16 %v7150
    %v7414 = vunpack.c.l.b16 %v7151
    %v7415 = vunpack.c.l.b16 %v7152
    %v7416 = vunpack.c.l.b16 %v7153
    %v7417 = vunpack.c.l.b16 %v7154
    %v7418 = vunpack.c.l.b16 %v7155
    %v7419 = vunpack.c.l.b16 %v7156
    %v7420 = vunpack.c.l.b16 %v7157
    %v7421 = vunpack.c.l.b16 %v7158
    %v7422 = vunpack.c.l.b16 %v7159
    %v7423 = vunpack.c.l.b16 %v7160
    %v7424 = vunpack.c.l.b16 %v7161
    %v7425 = vunpack.c.l.b16 %v7162
    %v7426 = vunpack.c.l.b16 %v7163
    %v7427 = vunpack.c.l.b16 %v7164
    %v7428 = vunpack.c.l.b16 %v7165
    %v7429 = vunpack.c.l.b16 %v7166
    %v7430 = vunpack.c.l.b16 %v7167
    %v7431 = vunpack.c.l.b16 %v7168
    %v7432 = vunpack.c.l.b16 %v7169
    %v7433 = vpack.c.b16 %v7306, %v7305
    %v7434 = vpack.c.b16 %v7308, %v7307
    %v7435 = vpack.c.b16 %v7310, %v7309
    %v7436 = vpack.c.b16 %v7312, %v7311
    %v7437 = vpack.c.b16 %v7314, %v7313
    %v7438 = vpack.c.b16 %v7316, %v7315
    %v7439 = vpack.c.b16 %v7318, %v7317
    %v7440 = vpack.c.b16 %v7320, %v7319
    %v7441 = vpack.c.b16 %v7322, %v7321
    %v7442 = vpack.c.b16 %v7324, %v7323
    %v7443 = vpack.c.b16 %v7326, %v7325
    %v7444 = vpack.c.b16 %v7328, %v7327
    %v7445 = vpack.c.b16 %v7330, %v7329
    %v7446 = vpack.c.b16 %v7332, %v7331
    %v7447 = vpack.c.b16 %v7334, %v7333
    %v7448 = vpack.c.b16 %v7336, %v7335
    %v7449 = vpack.c.b16 %v7338, %v7337
    %v7450 = vpack.c.b16 %v7340, %v7339
    %v7451 = vpack.c.b16 %v7342, %v7341
    %v7452 = vpack.c.b16 %v7344, %v7343
    %v7453 = vpack.c.b16 %v7346, %v7345
    %v7454 = vpack.c.b16 %v7348, %v7347
    %v7455 = vpack.c.b16 %v7350, %v7349
    %v7456 = vpack.c.b16 %v7352, %v7351
    %v7457 = vpack.c.b16 %v7354, %v7353
    %v7458 = vpack.c.b16 %v7356, %v7355
    %v7459 = vpack.c.b16 %v7358, %v7357
    %v7460 = vpack.c.b16 %v7360, %v7359
    %v7461 = vpack.c.b16 %v7362, %v7361
    %v7462 = vpack.c.b16 %v7364, %v7363
    %v7463 = vpack.c.b16 %v7366, %v7365
    %v7464 = vpack.c.b16 %v7368, %v7367
    %v7465 = vpack.c.b16 %v7370, %v7369
    %v7466 = vpack.c.b16 %v7372, %v7371
    %v7467 = vpack.c.b16 %v7374, %v7373
    %v7468 = vpack.c.b16 %v7376, %v7375
    %v7469 = vpack.c.b16 %v7378, %v7377
    %v7470 = vpack.c.b16 %v7380, %v7379
    %v7471 = vpack.c.b16 %v7382, %v7381
    %v7472 = vpack.c.b16 %v7384, %v7383
    %v7473 = vpack.c.b16 %v7386, %v7385
    %v7474 = vpack.c.b16 %v7388, %v7387
    %v7475 = vpack.c.b16 %v7390, %v7389
    %v7476 = vpack.c.b16 %v7392, %v7391
    %v7477 = vpack.c.b16 %v7394, %v7393
    %v7478 = vpack.c.b16 %v7396, %v7395
    %v7479 = vpack.c.b16 %v7398, %v7397
    %v7480 = vpack.c.b16 %v7400, %v7399
    %v7481 = vpack.c.b16 %v7402, %v7401
    %v7482 = vpack.c.b16 %v7404, %v7403
    %v7483 = vpack.c.b16 %v7406, %v7405
    %v7484 = vpack.c.b16 %v7408, %v7407
    %v7485 = vpack.c.b16 %v7410, %v7409
    %v7486 = vpack.c.b16 %v7412, %v7411
    %v7487 = vpack.c.b16 %v7414, %v7413
    %v7488 = vpack.c.b16 %v7416, %v7415
    %v7489 = vpack.c.b16 %v7418, %v7417
    %v7490 = vpack.c.b16 %v7420, %v7419
    %v7491 = vpack.c.b16 %v7422, %v7421
    %v7492 = vpack.c.b16 %v7424, %v7423
    %v7493 = vpack.c.b16 %v7426, %v7425
    %v7494 = vpack.c.b16 %v7428, %v7427
    %v7495 = vpack.c.b16 %v7430, %v7429
    %v7496 = vpack.c.b16 %v7432, %v7431
    %7561 = vmatprep.subr.bf16.mxu0 0
    %7562 = vmatpush1.bf16.msra.mxu0 %v7433
    %7563 = vmatprep.subr.bf16.mxu0 0
    %7564 = vmatpush1.bf16.msra.mxu0 %v7434
    %7565 = vmatprep.subr.bf16.mxu0 0
    %7566 = vmatpush1.bf16.msra.mxu0 %v7435
    %7567 = vmatprep.subr.bf16.mxu0 0
    %7568 = vmatpush1.bf16.msra.mxu0 %v7436
    %7569 = vmatprep.subr.bf16.mxu0 0
    %7570 = vmatpush1.bf16.msra.mxu0 %v7437
    %7571 = vmatprep.subr.bf16.mxu0 0
    %7572 = vmatpush1.bf16.msra.mxu0 %v7438
    %7573 = vmatprep.subr.bf16.mxu0 0
    %7574 = vmatpush1.bf16.msra.mxu0 %v7439
    %7575 = vmatprep.subr.bf16.mxu0 0
    %7576 = vmatpush1.bf16.msra.mxu0 %v7440
    %7577 = vmatprep.subr.bf16.mxu0 0
    %7578 = vmatpush1.bf16.msra.mxu0 %v7441
    %7579 = vmatprep.subr.bf16.mxu0 0
    %7580 = vmatpush1.bf16.msra.mxu0 %v7442
    %7581 = vmatprep.subr.bf16.mxu0 0
    %7582 = vmatpush1.bf16.msra.mxu0 %v7443
    %7583 = vmatprep.subr.bf16.mxu0 0
    %7584 = vmatpush1.bf16.msra.mxu0 %v7444
    %7585 = vmatprep.subr.bf16.mxu0 0
    %7586 = vmatpush1.bf16.msra.mxu0 %v7445
    %7587 = vmatprep.subr.bf16.mxu0 0
    %7588 = vmatpush1.bf16.msra.mxu0 %v7446
    %7589 = vmatprep.subr.bf16.mxu0 0
    %7590 = vmatpush1.bf16.msra.mxu0 %v7447
    %7591 = vmatprep.subr.bf16.mxu0 0
    %7592 = vmatpush1.bf16.msra.mxu0 %v7448
    %7593 = vmatprep.mubr.bf16.mxu0 %v7035
    %7594 = vmatmul.mubr.bf16.gmra.mrb[0].mxu0 %v7034
    %v7595 = vpop.f32.mrb[0].mxu0
    %v7596 = vadd.f32 %v7175, %v7595
    %v7597 = vpop.f32.mrb[0].mxu0
    %v7598 = vpop.f32.mrb[0].mxu0
    %v7599 = vadd.f32 %v7175, %v7598
    %v7600 = vpop.f32.mrb[0].mxu0
    %7601 = vdwg.mxu0
    %7602 = vmatprep.subr.bf16.mxu0 0
    %7603 = vmatpush1.bf16.msra.mxu0 %v7449
    %7604 = vmatprep.subr.bf16.mxu0 0
    %7605 = vmatpush1.bf16.msra.mxu0 %v7450
    %7606 = vmatprep.subr.bf16.mxu0 0
    %7607 = vmatpush1.bf16.msra.mxu0 %v7451
    %7608 = vmatprep.subr.bf16.mxu0 0
    %7609 = vmatpush1.bf16.msra.mxu0 %v7452
    %7610 = vmatprep.subr.bf16.mxu0 0
    %7611 = vmatpush1.bf16.msra.mxu0 %v7453
    %7612 = vmatprep.subr.bf16.mxu0 0
    %7613 = vmatpush1.bf16.msra.mxu0 %v7454
    %7614 = vmatprep.subr.bf16.mxu0 0
    %7615 = vmatpush1.bf16.msra.mxu0 %v7455
    %7616 = vmatprep.subr.bf16.mxu0 0
    %7617 = vmatpush1.bf16.msra.mxu0 %v7456
    %7618 = vmatprep.subr.bf16.mxu0 0
    %7619 = vmatpush1.bf16.msra.mxu0 %v7457
    %7620 = vmatprep.subr.bf16.mxu0 0
    %7621 = vmatpush1.bf16.msra.mxu0 %v7458
    %7622 = vmatprep.subr.bf16.mxu0 0
    %7623 = vmatpush1.bf16.msra.mxu0 %v7459
    %7624 = vmatprep.subr.bf16.mxu0 0
    %7625 = vmatpush1.bf16.msra.mxu0 %v7460
    %7626 = vmatprep.subr.bf16.mxu0 0
    %7627 = vmatpush1.bf16.msra.mxu0 %v7461
    %7628 = vmatprep.subr.bf16.mxu0 0
    %7629 = vmatpush1.bf16.msra.mxu0 %v7462
    %7630 = vmatprep.subr.bf16.mxu0 0
    %7631 = vmatpush1.bf16.msra.mxu0 %v7463
    %7632 = vmatprep.subr.bf16.mxu0 0
    %7633 = vmatpush1.bf16.msra.mxu0 %v7464
    %7634 = vmatprep.mubr.bf16.mxu0 %v7037
    %7635 = vmatmul.mubr.bf16.gmra.mrb[0].mxu0 %v7036
    %v7636 = vpop.f32.mrb[0].mxu0
    %v7637 = vadd.f32 %v7596, %v7636
    %v7638 = vpop.f32.mrb[0].mxu0
    %v7639 = vpop.f32.mrb[0].mxu0
    %v7640 = vadd.f32 %v7599, %v7639
    %v7641 = vpop.f32.mrb[0].mxu0
    %7642 = vdwg.mxu0
    %7643 = vmatprep.subr.bf16.mxu0 0
    %7644 = vmatpush1.bf16.msra.mxu0 %v7465
    %7645 = vmatprep.subr.bf16.mxu0 0
    %7646 = vmatpush1.bf16.msra.mxu0 %v7466
    %7647 = vmatprep.subr.bf16.mxu0 0
    %7648 = vmatpush1.bf16.msra.mxu0 %v7467
    %7649 = vmatprep.subr.bf16.mxu0 0
    %7650 = vmatpush1.bf16.msra.mxu0 %v7468
    %7651 = vmatprep.subr.bf16.mxu0 0
    %7652 = vmatpush1.bf16.msra.mxu0 %v7469
    %7653 = vmatprep.subr.bf16.mxu0 0
    %7654 = vmatpush1.bf16.msra.mxu0 %v7470
    %7655 = vmatprep.subr.bf16.mxu0 0
    %7656 = vmatpush1.bf16.msra.mxu0 %v7471
    %7657 = vmatprep.subr.bf16.mxu0 0
    %7658 = vmatpush1.bf16.msra.mxu0 %v7472
    %7659 = vmatprep.subr.bf16.mxu0 0
    %7660 = vmatpush1.bf16.msra.mxu0 %v7473
    %7661 = vmatprep.subr.bf16.mxu0 0
    %7662 = vmatpush1.bf16.msra.mxu0 %v7474
    %7663 = vmatprep.subr.bf16.mxu0 0
    %7664 = vmatpush1.bf16.msra.mxu0 %v7475
    %7665 = vmatprep.subr.bf16.mxu0 0
    %7666 = vmatpush1.bf16.msra.mxu0 %v7476
    %7667 = vmatprep.subr.bf16.mxu0 0
    %7668 = vmatpush1.bf16.msra.mxu0 %v7477
    %7669 = vmatprep.subr.bf16.mxu0 0
    %7670 = vmatpush1.bf16.msra.mxu0 %v7478
    %7671 = vmatprep.subr.bf16.mxu0 0
    %7672 = vmatpush1.bf16.msra.mxu0 %v7479
    %7673 = vmatprep.subr.bf16.mxu0 0
    %7674 = vmatpush1.bf16.msra.mxu0 %v7480
    %7675 = vmatprep.mubr.bf16.mxu0 %v7039
    %7676 = vmatmul.mubr.bf16.gmra.mrb[0].mxu0 %v7038
    %v7677 = vpop.f32.mrb[0].mxu0
    %v7678 = vadd.f32 %v7637, %v7677
    %v7679 = vpop.f32.mrb[0].mxu0
    %v7680 = vpop.f32.mrb[0].mxu0
    %v7681 = vadd.f32 %v7640, %v7680
    %v7682 = vpop.f32.mrb[0].mxu0
    %7683 = vdwg.mxu0
    %7684 = vmatprep.subr.bf16.mxu0 0
    %7685 = vmatpush1.bf16.msra.mxu0 %v7481
    %7686 = vmatprep.subr.bf16.mxu0 0
    %7687 = vmatpush1.bf16.msra.mxu0 %v7482
    %7688 = vmatprep.subr.bf16.mxu0 0
    %7689 = vmatpush1.bf16.msra.mxu0 %v7483
    %7690 = vmatprep.subr.bf16.mxu0 0
    %7691 = vmatpush1.bf16.msra.mxu0 %v7484
    %7692 = vmatprep.subr.bf16.mxu0 0
    %7693 = vmatpush1.bf16.msra.mxu0 %v7485
    %7694 = vmatprep.subr.bf16.mxu0 0
    %7695 = vmatpush1.bf16.msra.mxu0 %v7486
    %7696 = vmatprep.subr.bf16.mxu0 0
    %7697 = vmatpush1.bf16.msra.mxu0 %v7487
    %7698 = vmatprep.subr.bf16.mxu0 0
    %7699 = vmatpush1.bf16.msra.mxu0 %v7488
    %7700 = vmatprep.subr.bf16.mxu0 0
    %7701 = vmatpush1.bf16.msra.mxu0 %v7489
    %7702 = vmatprep.subr.bf16.mxu0 0
    %7703 = vmatpush1.bf16.msra.mxu0 %v7490
    %7704 = vmatprep.subr.bf16.mxu0 0
    %7705 = vmatpush1.bf16.msra.mxu0 %v7491
    %7706 = vmatprep.subr.bf16.mxu0 0
    %7707 = vmatpush1.bf16.msra.mxu0 %v7492
    %7708 = vmatprep.subr.bf16.mxu0 0
    %7709 = vmatpush1.bf16.msra.mxu0 %v7493
    %7710 = vmatprep.subr.bf16.mxu0 0
    %7711 = vmatpush1.bf16.msra.mxu0 %v7494
    %7712 = vmatprep.subr.bf16.mxu0 0
    %7713 = vmatpush1.bf16.msra.mxu0 %v7495
    %7714 = vmatprep.subr.bf16.mxu0 0
    %7715 = vmatpush1.bf16.msra.mxu0 %v7496
    %7716 = vmatprep.mubr.bf16.mxu0 %v7041
    %7717 = vmatmul.mubr.bf16.gmra.mrb[0].mxu0 %v7040
    %v7718 = vpop.f32.mrb[0].mxu0
    %v7719 = vadd.f32 %v7678, %v7718
    %v7720 = vpop.f32.mrb[0].mxu0
    %v7721 = vpop.f32.mrb[0].mxu0
    %v7722 = vadd.f32 %v7681, %v7721
    %v7723 = vpop.f32.mrb[0].mxu0
    %7724 = vdwg.mxu0
    %v7725 = vpack.c.bf16 %v7722, %v7719
    %v7727 = vunpack.c.l.b16 %v7725
    %v7728 = vunpack.c.h.b16 %v7725
    %v7729 = vpack.c.b16 %v7727, %v7727
    %v7730 = vpack.c.b16 %v7728, %v7728
    %7733 = vst [vmem:[#allocation17] sm:$0xf] %v7729
    %7734 = vst [vmem:[#allocation17 + $0x4] sm:$0xf] %v7730
    // Predicated region
    $region74: #{tpu_custom_call.1} parent=1 // pred_check
      _
    $region75: #{tpu_custom_call.1} parent=1 // pred_check_branch
      %7736 = sbr.rel (0) target = $region77
    $region76: #{tpu_custom_call.1} parent=1 // pred_region
      %s7738 = ssub.s32 128, 128
      %7739 = vsyncadd [#allocation4], %s7738
      %s7740 = sshll.u32 [#allocation17], 4
      %s7741 = int_to_ptr.vmem [resolvable:$true] %s7740
      %7746 = dma.vmem_to_hbm [thread:$0]  %s7741, 128, %s9, [#allocation4], 64, 64, 4
    $region77: #{tpu_custom_call.1} parent=1 // pred_fallthru
      _
    // Predicated region
    $region78: #{tpu_custom_call.1} parent=1 // pred_check
      _
    $region79: #{tpu_custom_call.1} parent=1 // pred_check_branch
      %7748 = sbr.rel (0) target = $region81
    $region80: #{tpu_custom_call.1} parent=1 // pred_region
      %7749 = dma.done [#allocation4], 128
    $region81: #{tpu_custom_call.1} parent=1 // pred_fallthru
      _
    %7750 = vsyncpa [#allocation3], 1
    %7751 = vsyncpa [#allocation6], 1
    %7752 = vsyncpa [#allocation9], 1
    %7753 = vsyncpa [#allocation12], 1
    %7754 = vsyncpa [#allocation15], 1
    %7755 = vsyncpa [#allocation4], 1

</llo_original>
